<compile_context>
chip_gen: v5e
topology: v5e:2x2
jax: 0.10.0
libtpu: 0.0.40
codegen_flags: <defaults>
</compile_context>

<pallas_src>
import functools

import jax
import jax.numpy as jnp
from jax.experimental import pallas as pl
from jax.experimental.pallas import tpu as pltpu


# ---------------------------------------------------------------------------
# Fused kernel
# ---------------------------------------------------------------------------
def _fused_convdqn_kernel(
    p1_ref, w1_ref, b1_ref, w2_ref, b2_ref, w3_ref, b3_ref,
    wf1_ref, bf1_ref, wf2_ref, bf2_ref, wf3_ref, bf3_ref,
    out_ref,
    a1_ref, p2_ref, a2_ref, p3_ref, a3_ref, f_ref,
    *, dims):
    (N, Hh, Wh, H2, W2, H3, W3, C1, C2, C3) = dims
    G = Hh * Wh                       # padded (half-resolution) spatial grid
    L2 = (H2 - 1) * Wh + W2           # contiguous row span covering conv2 outputs
    L3 = (H3 - 1) * Wh + W3           # contiguous row span covering conv3 outputs

    # Rows of the padded grids that are never written stay zero (finite, and
    # never read back into valid rows).
    p2_ref[...] = jnp.zeros_like(p2_ref)
    p3_ref[...] = jnp.zeros_like(p3_ref)

    # ---- conv1: 1->32, k3, s1.  K = 9 -> 9 VPU multiply-adds (no MXU pad). ----
    p1 = p1_ref[...]                                  # (4*N*G, 9)  parity-major rows
    w1 = w1_ref[...]                                  # (9, C1)
    acc = p1[:, 0:1] * w1[0:1, :]
    for k in range(1, 9):
        acc = acc + p1[:, k:k + 1] * w1[k:k + 1, :]
    a1_ref[...] = jnp.maximum(acc + b1_ref[...], 0.0)  # (4*N*G, C1)

    # ---- conv2: 32->64, k4, s2.  im2col by shifted plane copies, 1 MXU matmul. ----
    # a1 row layout: ((pi*2+pj)*N + n)*G + r*Wh + s  <->  conv1 out at (2r+pi, 2s+pj)
    # p2 row layout: n*G + i*Wh + j                   <->  conv2 out at (i, j)
    for n in range(N):
        for di in range(4):
            for dj in range(4):
                pi, oi = di % 2, di // 2
                pj, oj = dj % 2, dj // 2
                t = di * 4 + dj
                src = ((pi * 2 + pj) * N + n) * G + oi * Wh + oj
                p2_ref[n * G:n * G + L2, t * C1:(t + 1) * C1] = \
                    a1_ref[src:src + L2, :]

    a2 = jnp.dot(p2_ref[...], w2_ref[...], preferred_element_type=jnp.float32)
    a2_ref[...] = jnp.maximum(a2 + b2_ref[...], 0.0)    # (N*G, C2)

    # ---- conv3: 64->16, k3, s1. ----
    for n in range(N):
        for di in range(3):
            for dj in range(3):
                t = di * 3 + dj
                src = n * G + di * Wh + dj
                p3_ref[n * G:n * G + L3, t * C2:(t + 1) * C2] = \
                    a2_ref[src:src + L3, :]

    a3 = jnp.dot(p3_ref[...], w3_ref[...], preferred_element_type=jnp.float32)
    a3_ref[...] = jnp.maximum(a3 + b3_ref[...], 0.0)    # (N*G, C3)

    # ---- flatten (channels-last order; fc1 weight rows were pre-permuted to
    #      reproduce PyTorch's NCHW .view(N, -1) ordering exactly). ----
    for n in range(N):
        for i in range(H3):
            for j in range(W3):
                row = n * G + i * Wh + j
                col = (i * W3 + j) * C3
                f_ref[n:n + 1, col:col + C3] = a3_ref[row:row + 1, :]

    # ---- FC head: fc_in -> 64 -> 32 -> out. ----
    f = f_ref[...]
    h = jnp.maximum(
        jnp.dot(f, wf1_ref[...], preferred_element_type=jnp.float32) + bf1_ref[...],
        0.0)
    h = jnp.maximum(
        jnp.dot(h, wf2_ref[...], preferred_element_type=jnp.float32) + bf2_ref[...],
        0.0)
    out_ref[...] = (
        jnp.dot(h, wf3_ref[...], preferred_element_type=jnp.float32) + bf3_ref[...])


# ---------------------------------------------------------------------------
# Parameter init (PyTorch-like) and one-time preprocessing
# ---------------------------------------------------------------------------
def _conv_sizes(input_dim):
    C, H, W = input_dim
    H1, W1 = H - 2, W - 2                       # conv1 k3 s1
    H2, W2 = (H1 - 4) // 2 + 1, (W1 - 4) // 2 + 1  # conv2 k4 s2
    H3, W3 = H2 - 2, W2 - 2                     # conv3 k3 s1
    return H1, W1, H2, W2, H3, W3


def init_params(key, input_dim, output_dim):
    """Deterministic parameter init (PyTorch-like uniform(-1/sqrt(fan_in), ...))."""
    def lin_init(k, fan_in, shape):
        s = 1.0 / jnp.sqrt(fan_in)
        return jax.random.uniform(k, shape, jnp.float32, -s, s)

    keys = jax.random.split(key, 12)
    C, H, W = input_dim
    _, _, _, _, H3, W3 = _conv_sizes(input_dim)
    fc_in = 16 * H3 * W3

    params = {}
    params["c1_w"] = lin_init(keys[0], C * 9, (32, C, 3, 3))
    params["c1_b"] = lin_init(keys[1], C * 9, (32,))
    params["c2_w"] = lin_init(keys[2], 32 * 16, (64, 32, 4, 4))
    params["c2_b"] = lin_init(keys[3], 32 * 16, (64,))
    params["c3_w"] = lin_init(keys[4], 64 * 9, (16, 64, 3, 3))
    params["c3_b"] = lin_init(keys[5], 64 * 9, (16,))
    params["f1_w"] = lin_init(keys[6], fc_in, (64, fc_in))
    params["f1_b"] = lin_init(keys[7], fc_in, (64,))
    params["f2_w"] = lin_init(keys[8], 64, (32, 64))
    params["f2_b"] = lin_init(keys[9], 64, (32,))
    params["f3_w"] = lin_init(keys[10], 32, (output_dim, 32))
    params["f3_b"] = lin_init(keys[11], 32, (output_dim,))
    return params


def preprocess_params(params, input_dim):
    """Hoisted, one-time re-layout of all weights into kernel-ready matrices."""
    _, _, _, _, H3, W3 = _conv_sizes(input_dim)
    prep = {
        # conv1: (OC,1,3,3) -> (ki*3+kj, OC)
        "w1": params["c1_w"][:, 0].transpose(1, 2, 0).reshape(9, 32),
        "b1": params["c1_b"].reshape(1, 32),
        # conv2: (OC,IC,4,4) -> ((di*4+dj)*IC + c, OC)
        "w2": params["c2_w"].transpose(2, 3, 1, 0).reshape(4 * 4 * 32, 64),
        "b2": params["c2_b"].reshape(1, 64),
        # conv3: (OC,IC,3,3) -> ((di*3+dj)*IC + c, OC)
        "w3": params["c3_w"].transpose(2, 3, 1, 0).reshape(3 * 3 * 64, 16),
        "b3": params["c3_b"].reshape(1, 16),
        # fc1: fold PyTorch NCHW flatten order into a row permutation
        #   rows ordered (i, j, c) to match the kernel's channels-last flatten.
        "wf1": params["f1_w"].reshape(64, 16, H3, W3)
                              .transpose(2, 3, 1, 0)
                              .reshape(H3 * W3 * 16, 64),
        "bf1": params["f1_b"].reshape(1, 64),
        "wf2": params["f2_w"].T,
        "bf2": params["f2_b"].reshape(1, 32),
        "wf3": params["f3_w"].T,
        "bf3": params["f3_b"].reshape(1, -1),
    }
    return prep


# ---------------------------------------------------------------------------
# Forward
# ---------------------------------------------------------------------------
def conv_dqn_forward(prep, state):
    """state: (N, 1, H, W) float32 -> qvals (N, output_dim)."""
    N, C, H, W = state.shape
    assert C == 1, "ConvDQN's first conv has in_channels=1"
    H1, W1, H2, W2, H3, W3 = _conv_sizes((C, H, W))
    assert H1 % 2 == 0 and W1 % 2 == 0 and H3 >= 1 and W3 >= 1
    Hh, Wh = H1 // 2, W1 // 2
    C1, C2, C3 = 32, 64, 16
    G = Hh * Wh
    out_dim = prep["bf3"].shape[1]

    # --- model-boundary glue: im2col of the raw input for conv1, rows ordered
    # parity-major (pi, pj, n, r, s) so conv2's stride-2 access becomes
    # contiguous shift-copies inside the kernel. ---
    x = state[:, 0].astype(jnp.float32)                       # (N, H, W)
    taps = [x[:, ki:ki + H1, kj:kj + W1] for ki in range(3) for kj in range(3)]
    t = jnp.stack(taps, axis=-1)                              # (N, H1, W1, 9)
    t = t.reshape(N, Hh, 2, Wh, 2, 9).transpose(2, 4, 0, 1, 3, 5)
    p1 = t.reshape(4 * N * G, 9)                              # (4*N*G, 9)

    dims = (N, Hh, Wh, H2, W2, H3, W3, C1, C2, C3)
    kernel = functools.partial(_fused_convdqn_kernel, dims=dims)
    vmem = pltpu.MemorySpace.VMEM

    out = pl.pallas_call(
        kernel,
        out_shape=jax.ShapeDtypeStruct((N, out_dim), jnp.float32),
        in_specs=[pl.BlockSpec(memory_space=vmem)] * 13,
        out_specs=pl.BlockSpec(memory_space=vmem),
        scratch_shapes=[
            pltpu.VMEM((4 * N * G, C1), jnp.float32),      # a1 (conv1 out)
            pltpu.VMEM((N * G, 16 * C1), jnp.float32),     # p2 (conv2 patches)
            pltpu.VMEM((N * G, C2), jnp.float32),          # a2 (conv2 out)
            pltpu.VMEM((N * G, 9 * C2), jnp.float32),      # p3 (conv3 patches)
            pltpu.VMEM((N * G, C3), jnp.float32),          # a3 (conv3 out)
            pltpu.VMEM((N, H3 * W3 * C3), jnp.float32),    # flattened features
        ],
    )(p1, prep["w1"], prep["b1"], prep["w2"], prep["b2"], prep["w3"], prep["b3"],
      prep["wf1"], prep["bf1"], prep["wf2"], prep["bf2"], prep["wf3"], prep["bf3"])
    return out


# TODO(synk): optim.Adam / MSELoss / .to(device) from the PyTorch module are
# training-side state, not part of the forward pass, and are not translated.

if __name__ == "__main__":
    key = jax.random.PRNGKey(0)
    k_param, k_input = jax.random.split(key)

    input_dim = (1, 16, 16)   # (C, H, W) as implied by nn.Conv2d(1, ...)
    output_dim = 4
    batch = 2

    params = init_params(k_param, input_dim, output_dim)
    prep = preprocess_params(params, input_dim)
    state = jax.random.normal(k_input, (batch,) + input_dim, jnp.float32)

    fwd = jax.jit(conv_dqn_forward)
    qvals = jax.block_until_ready(fwd(prep, state))
    assert qvals.shape == (batch, output_dim), qvals.shape
    print("KERNEL_OK")
</pallas_src>

<mosaic_0001>
module attributes {stable_mosaic.version = 11 : i64} {
  func.func @_fused_convdqn_kernel(%arg0: memref<392x9xf32, #tpu.memory_space<vmem>>, %arg1: memref<9x32xf32, #tpu.memory_space<vmem>>, %arg2: memref<1x32xf32, #tpu.memory_space<vmem>>, %arg3: memref<512x64xf32, #tpu.memory_space<vmem>>, %arg4: memref<1x64xf32, #tpu.memory_space<vmem>>, %arg5: memref<576x16xf32, #tpu.memory_space<vmem>>, %arg6: memref<1x16xf32, #tpu.memory_space<vmem>>, %arg7: memref<256x64xf32, #tpu.memory_space<vmem>>, %arg8: memref<1x64xf32, #tpu.memory_space<vmem>>, %arg9: memref<64x32xf32, #tpu.memory_space<vmem>>, %arg10: memref<1x32xf32, #tpu.memory_space<vmem>>, %arg11: memref<32x4xf32, #tpu.memory_space<vmem>>, %arg12: memref<1x4xf32, #tpu.memory_space<vmem>>, %arg13: memref<2x4xf32, #tpu.memory_space<vmem>>, %arg14: memref<392x32xf32, #tpu.memory_space<vmem>>, %arg15: memref<98x512xf32, #tpu.memory_space<vmem>>, %arg16: memref<98x64xf32, #tpu.memory_space<vmem>>, %arg17: memref<98x576xf32, #tpu.memory_space<vmem>>, %arg18: memref<98x16xf32, #tpu.memory_space<vmem>>, %arg19: memref<2x256xf32, #tpu.memory_space<vmem>>) attributes {dimension_semantics = [], scalar_prefetch = 0 : i64, scratch_operands = 6 : i64, tpu.core_type = #tpu.core_type<tc>} {
    %cst = arith.constant 0.000000e+00 : f32
    %0 = vector.broadcast %cst : f32 to vector<98x512xf32>
    %c0 = arith.constant 0 : index
    %c0_0 = arith.constant 0 : index
    %1 = vector.load %arg15[%c0, %c0_0] : memref<98x512xf32, #tpu.memory_space<vmem>>, vector<98x512xf32>
    tpu.vector_store %arg15[%c0, %c0_0], %0 {strides = array<i32>} : memref<98x512xf32, #tpu.memory_space<vmem>>, vector<98x512xf32>,
    %cst_1 = arith.constant 0.000000e+00 : f32
    %2 = vector.broadcast %cst_1 : f32 to vector<98x576xf32>
    %c0_2 = arith.constant 0 : index
    %c0_3 = arith.constant 0 : index
    %3 = vector.load %arg17[%c0_2, %c0_3] : memref<98x576xf32, #tpu.memory_space<vmem>>, vector<98x576xf32>
    tpu.vector_store %arg17[%c0_2, %c0_3], %2 {strides = array<i32>} : memref<98x576xf32, #tpu.memory_space<vmem>>, vector<98x576xf32>,
    %c0_4 = arith.constant 0 : index
    %c0_5 = arith.constant 0 : index
    %4 = vector.load %arg0[%c0_4, %c0_5] : memref<392x9xf32, #tpu.memory_space<vmem>>, vector<392x9xf32>
    %c0_6 = arith.constant 0 : index
    %c0_7 = arith.constant 0 : index
    %5 = vector.load %arg1[%c0_6, %c0_7] : memref<9x32xf32, #tpu.memory_space<vmem>>, vector<9x32xf32>
    %6 = vector.extract_strided_slice %4 {offsets = [0, 0], sizes = [392, 1], strides = [1, 1]} : vector<392x9xf32> to vector<392x1xf32>
    %7 = vector.extract_strided_slice %5 {offsets = [0, 0], sizes = [1, 32], strides = [1, 1]} : vector<9x32xf32> to vector<1x32xf32>
    %8 = vector.broadcast %6 : vector<392x1xf32> to vector<392x32xf32>
    %9 = vector.broadcast %7 : vector<1x32xf32> to vector<392x32xf32>
    %10 = arith.mulf %8, %9 : vector<392x32xf32>
    %11 = vector.extract_strided_slice %4 {offsets = [0, 1], sizes = [392, 1], strides = [1, 1]} : vector<392x9xf32> to vector<392x1xf32>
    %12 = vector.extract_strided_slice %5 {offsets = [1, 0], sizes = [1, 32], strides = [1, 1]} : vector<9x32xf32> to vector<1x32xf32>
    %13 = vector.broadcast %11 : vector<392x1xf32> to vector<392x32xf32>
    %14 = vector.broadcast %12 : vector<1x32xf32> to vector<392x32xf32>
    %15 = arith.mulf %13, %14 : vector<392x32xf32>
    %16 = arith.addf %10, %15 : vector<392x32xf32>
    %17 = vector.extract_strided_slice %4 {offsets = [0, 2], sizes = [392, 1], strides = [1, 1]} : vector<392x9xf32> to vector<392x1xf32>
    %18 = vector.extract_strided_slice %5 {offsets = [2, 0], sizes = [1, 32], strides = [1, 1]} : vector<9x32xf32> to vector<1x32xf32>
    %19 = vector.broadcast %17 : vector<392x1xf32> to vector<392x32xf32>
    %20 = vector.broadcast %18 : vector<1x32xf32> to vector<392x32xf32>
    %21 = arith.mulf %19, %20 : vector<392x32xf32>
    %22 = arith.addf %16, %21 : vector<392x32xf32>
    %23 = vector.extract_strided_slice %4 {offsets = [0, 3], sizes = [392, 1], strides = [1, 1]} : vector<392x9xf32> to vector<392x1xf32>
    %24 = vector.extract_strided_slice %5 {offsets = [3, 0], sizes = [1, 32], strides = [1, 1]} : vector<9x32xf32> to vector<1x32xf32>
    %25 = vector.broadcast %23 : vector<392x1xf32> to vector<392x32xf32>
    %26 = vector.broadcast %24 : vector<1x32xf32> to vector<392x32xf32>
    %27 = arith.mulf %25, %26 : vector<392x32xf32>
    %28 = arith.addf %22, %27 : vector<392x32xf32>
    %29 = vector.extract_strided_slice %4 {offsets = [0, 4], sizes = [392, 1], strides = [1, 1]} : vector<392x9xf32> to vector<392x1xf32>
    %30 = vector.extract_strided_slice %5 {offsets = [4, 0], sizes = [1, 32], strides = [1, 1]} : vector<9x32xf32> to vector<1x32xf32>
    %31 = vector.broadcast %29 : vector<392x1xf32> to vector<392x32xf32>
    %32 = vector.broadcast %30 : vector<1x32xf32> to vector<392x32xf32>
    %33 = arith.mulf %31, %32 : vector<392x32xf32>
    %34 = arith.addf %28, %33 : vector<392x32xf32>
    %35 = vector.extract_strided_slice %4 {offsets = [0, 5], sizes = [392, 1], strides = [1, 1]} : vector<392x9xf32> to vector<392x1xf32>
    %36 = vector.extract_strided_slice %5 {offsets = [5, 0], sizes = [1, 32], strides = [1, 1]} : vector<9x32xf32> to vector<1x32xf32>
    %37 = vector.broadcast %35 : vector<392x1xf32> to vector<392x32xf32>
    %38 = vector.broadcast %36 : vector<1x32xf32> to vector<392x32xf32>
    %39 = arith.mulf %37, %38 : vector<392x32xf32>
    %40 = arith.addf %34, %39 : vector<392x32xf32>
    %41 = vector.extract_strided_slice %4 {offsets = [0, 6], sizes = [392, 1], strides = [1, 1]} : vector<392x9xf32> to vector<392x1xf32>
    %42 = vector.extract_strided_slice %5 {offsets = [6, 0], sizes = [1, 32], strides = [1, 1]} : vector<9x32xf32> to vector<1x32xf32>
    %43 = vector.broadcast %41 : vector<392x1xf32> to vector<392x32xf32>
    %44 = vector.broadcast %42 : vector<1x32xf32> to vector<392x32xf32>
    %45 = arith.mulf %43, %44 : vector<392x32xf32>
    %46 = arith.addf %40, %45 : vector<392x32xf32>
    %47 = vector.extract_strided_slice %4 {offsets = [0, 7], sizes = [392, 1], strides = [1, 1]} : vector<392x9xf32> to vector<392x1xf32>
    %48 = vector.extract_strided_slice %5 {offsets = [7, 0], sizes = [1, 32], strides = [1, 1]} : vector<9x32xf32> to vector<1x32xf32>
    %49 = vector.broadcast %47 : vector<392x1xf32> to vector<392x32xf32>
    %50 = vector.broadcast %48 : vector<1x32xf32> to vector<392x32xf32>
    %51 = arith.mulf %49, %50 : vector<392x32xf32>
    %52 = arith.addf %46, %51 : vector<392x32xf32>
    %53 = vector.extract_strided_slice %4 {offsets = [0, 8], sizes = [392, 1], strides = [1, 1]} : vector<392x9xf32> to vector<392x1xf32>
    %54 = vector.extract_strided_slice %5 {offsets = [8, 0], sizes = [1, 32], strides = [1, 1]} : vector<9x32xf32> to vector<1x32xf32>
    %55 = vector.broadcast %53 : vector<392x1xf32> to vector<392x32xf32>
    %56 = vector.broadcast %54 : vector<1x32xf32> to vector<392x32xf32>
    %57 = arith.mulf %55, %56 : vector<392x32xf32>
    %58 = arith.addf %52, %57 : vector<392x32xf32>
    %c0_8 = arith.constant 0 : index
    %c0_9 = arith.constant 0 : index
    %59 = vector.load %arg2[%c0_8, %c0_9] : memref<1x32xf32, #tpu.memory_space<vmem>>, vector<1x32xf32>
    %60 = vector.broadcast %59 : vector<1x32xf32> to vector<392x32xf32>
    %61 = arith.addf %58, %60 : vector<392x32xf32>
    %cst_10 = arith.constant 0.000000e+00 : f32
    %62 = vector.broadcast %cst_10 : f32 to vector<392x32xf32>
    %63 = arith.maximumf %61, %62 : vector<392x32xf32>
    %c0_11 = arith.constant 0 : index
    %c0_12 = arith.constant 0 : index
    %64 = vector.load %arg14[%c0_11, %c0_12] : memref<392x32xf32, #tpu.memory_space<vmem>>, vector<392x32xf32>
    tpu.vector_store %arg14[%c0_11, %c0_12], %63 {strides = array<i32>} : memref<392x32xf32, #tpu.memory_space<vmem>>, vector<392x32xf32>,
    %c0_13 = arith.constant 0 : index
    %c0_14 = arith.constant 0 : index
    %65 = vector.load %arg14[%c0_13, %c0_14] : memref<392x32xf32, #tpu.memory_space<vmem>>, vector<41x32xf32>
    %c0_15 = arith.constant 0 : index
    %c0_16 = arith.constant 0 : index
    %66 = vector.load %arg15[%c0_15, %c0_16] : memref<98x512xf32, #tpu.memory_space<vmem>>, vector<41x32xf32>
    tpu.vector_store %arg15[%c0_15, %c0_16], %65 {strides = array<i32>} : memref<98x512xf32, #tpu.memory_space<vmem>>, vector<41x32xf32>,
    %c98 = arith.constant 98 : index
    %c0_17 = arith.constant 0 : index
    %67 = vector.load %arg14[%c98, %c0_17] : memref<392x32xf32, #tpu.memory_space<vmem>>, vector<41x32xf32>
    %c0_18 = arith.constant 0 : index
    %c32 = arith.constant 32 : index
    %68 = vector.load %arg15[%c0_18, %c32] : memref<98x512xf32, #tpu.memory_space<vmem>>, vector<41x32xf32>
    tpu.vector_store %arg15[%c0_18, %c32], %67 {strides = array<i32>} : memref<98x512xf32, #tpu.memory_space<vmem>>, vector<41x32xf32>,
    %c1 = arith.constant 1 : index
    %c0_19 = arith.constant 0 : index
    %69 = vector.load %arg14[%c1, %c0_19] : memref<392x32xf32, #tpu.memory_space<vmem>>, vector<41x32xf32>
    %c0_20 = arith.constant 0 : index
    %c64 = arith.constant 64 : index
    %70 = vector.load %arg15[%c0_20, %c64] : memref<98x512xf32, #tpu.memory_space<vmem>>, vector<41x32xf32>
    tpu.vector_store %arg15[%c0_20, %c64], %69 {strides = array<i32>} : memref<98x512xf32, #tpu.memory_space<vmem>>, vector<41x32xf32>,
    %c99 = arith.constant 99 : index
    %c0_21 = arith.constant 0 : index
    %71 = vector.load %arg14[%c99, %c0_21] : memref<392x32xf32, #tpu.memory_space<vmem>>, vector<41x32xf32>
    %c0_22 = arith.constant 0 : index
    %c96 = arith.constant 96 : index
    %72 = vector.load %arg15[%c0_22, %c96] : memref<98x512xf32, #tpu.memory_space<vmem>>, vector<41x32xf32>
    tpu.vector_store %arg15[%c0_22, %c96], %71 {strides = array<i32>} : memref<98x512xf32, #tpu.memory_space<vmem>>, vector<41x32xf32>,
    %c196 = arith.constant 196 : index
    %c0_23 = arith.constant 0 : index
    %73 = vector.load %arg14[%c196, %c0_23] : memref<392x32xf32, #tpu.memory_space<vmem>>, vector<41x32xf32>
    %c0_24 = arith.constant 0 : index
    %c128 = arith.constant 128 : index
    %74 = vector.load %arg15[%c0_24, %c128] : memref<98x512xf32, #tpu.memory_space<vmem>>, vector<41x32xf32>
    tpu.vector_store %arg15[%c0_24, %c128], %73 {strides = array<i32>} : memref<98x512xf32, #tpu.memory_space<vmem>>, vector<41x32xf32>,
    %c294 = arith.constant 294 : index
    %c0_25 = arith.constant 0 : index
    %75 = vector.load %arg14[%c294, %c0_25] : memref<392x32xf32, #tpu.memory_space<vmem>>, vector<41x32xf32>
    %c0_26 = arith.constant 0 : index
    %c160 = arith.constant 160 : index
    %76 = vector.load %arg15[%c0_26, %c160] : memref<98x512xf32, #tpu.memory_space<vmem>>, vector<41x32xf32>
    tpu.vector_store %arg15[%c0_26, %c160], %75 {strides = array<i32>} : memref<98x512xf32, #tpu.memory_space<vmem>>, vector<41x32xf32>,
    %c197 = arith.constant 197 : index
    %c0_27 = arith.constant 0 : index
    %77 = vector.load %arg14[%c197, %c0_27] : memref<392x32xf32, #tpu.memory_space<vmem>>, vector<41x32xf32>
    %c0_28 = arith.constant 0 : index
    %c192 = arith.constant 192 : index
    %78 = vector.load %arg15[%c0_28, %c192] : memref<98x512xf32, #tpu.memory_space<vmem>>, vector<41x32xf32>
    tpu.vector_store %arg15[%c0_28, %c192], %77 {strides = array<i32>} : memref<98x512xf32, #tpu.memory_space<vmem>>, vector<41x32xf32>,
    %c295 = arith.constant 295 : index
    %c0_29 = arith.constant 0 : index
    %79 = vector.load %arg14[%c295, %c0_29] : memref<392x32xf32, #tpu.memory_space<vmem>>, vector<41x32xf32>
    %c0_30 = arith.constant 0 : index
    %c224 = arith.constant 224 : index
    %80 = vector.load %arg15[%c0_30, %c224] : memref<98x512xf32, #tpu.memory_space<vmem>>, vector<41x32xf32>
    tpu.vector_store %arg15[%c0_30, %c224], %79 {strides = array<i32>} : memref<98x512xf32, #tpu.memory_space<vmem>>, vector<41x32xf32>,
    %c7 = arith.constant 7 : index
    %c0_31 = arith.constant 0 : index
    %81 = vector.load %arg14[%c7, %c0_31] : memref<392x32xf32, #tpu.memory_space<vmem>>, vector<41x32xf32>
    %c0_32 = arith.constant 0 : index
    %c256 = arith.constant 256 : index
    %82 = vector.load %arg15[%c0_32, %c256] : memref<98x512xf32, #tpu.memory_space<vmem>>, vector<41x32xf32>
    tpu.vector_store %arg15[%c0_32, %c256], %81 {strides = array<i32>} : memref<98x512xf32, #tpu.memory_space<vmem>>, vector<41x32xf32>,
    %c105 = arith.constant 105 : index
    %c0_33 = arith.constant 0 : index
    %83 = vector.load %arg14[%c105, %c0_33] : memref<392x32xf32, #tpu.memory_space<vmem>>, vector<41x32xf32>
    %c0_34 = arith.constant 0 : index
    %c288 = arith.constant 288 : index
    %84 = vector.load %arg15[%c0_34, %c288] : memref<98x512xf32, #tpu.memory_space<vmem>>, vector<41x32xf32>
    tpu.vector_store %arg15[%c0_34, %c288], %83 {strides = array<i32>} : memref<98x512xf32, #tpu.memory_space<vmem>>, vector<41x32xf32>,
    %c8 = arith.constant 8 : index
    %c0_35 = arith.constant 0 : index
    %85 = vector.load %arg14[%c8, %c0_35] : memref<392x32xf32, #tpu.memory_space<vmem>>, vector<41x32xf32>
    %c0_36 = arith.constant 0 : index
    %c320 = arith.constant 320 : index
    %86 = vector.load %arg15[%c0_36, %c320] : memref<98x512xf32, #tpu.memory_space<vmem>>, vector<41x32xf32>
    tpu.vector_store %arg15[%c0_36, %c320], %85 {strides = array<i32>} : memref<98x512xf32, #tpu.memory_space<vmem>>, vector<41x32xf32>,
    %c106 = arith.constant 106 : index
    %c0_37 = arith.constant 0 : index
    %87 = vector.load %arg14[%c106, %c0_37] : memref<392x32xf32, #tpu.memory_space<vmem>>, vector<41x32xf32>
    %c0_38 = arith.constant 0 : index
    %c352 = arith.constant 352 : index
    %88 = vector.load %arg15[%c0_38, %c352] : memref<98x512xf32, #tpu.memory_space<vmem>>, vector<41x32xf32>
    tpu.vector_store %arg15[%c0_38, %c352], %87 {strides = array<i32>} : memref<98x512xf32, #tpu.memory_space<vmem>>, vector<41x32xf32>,
    %c203 = arith.constant 203 : index
    %c0_39 = arith.constant 0 : index
    %89 = vector.load %arg14[%c203, %c0_39] : memref<392x32xf32, #tpu.memory_space<vmem>>, vector<41x32xf32>
    %c0_40 = arith.constant 0 : index
    %c384 = arith.constant 384 : index
    %90 = vector.load %arg15[%c0_40, %c384] : memref<98x512xf32, #tpu.memory_space<vmem>>, vector<41x32xf32>
    tpu.vector_store %arg15[%c0_40, %c384], %89 {strides = array<i32>} : memref<98x512xf32, #tpu.memory_space<vmem>>, vector<41x32xf32>,
    %c301 = arith.constant 301 : index
    %c0_41 = arith.constant 0 : index
    %91 = vector.load %arg14[%c301, %c0_41] : memref<392x32xf32, #tpu.memory_space<vmem>>, vector<41x32xf32>
    %c0_42 = arith.constant 0 : index
    %c416 = arith.constant 416 : index
    %92 = vector.load %arg15[%c0_42, %c416] : memref<98x512xf32, #tpu.memory_space<vmem>>, vector<41x32xf32>
    tpu.vector_store %arg15[%c0_42, %c416], %91 {strides = array<i32>} : memref<98x512xf32, #tpu.memory_space<vmem>>, vector<41x32xf32>,
    %c204 = arith.constant 204 : index
    %c0_43 = arith.constant 0 : index
    %93 = vector.load %arg14[%c204, %c0_43] : memref<392x32xf32, #tpu.memory_space<vmem>>, vector<41x32xf32>
    %c0_44 = arith.constant 0 : index
    %c448 = arith.constant 448 : index
    %94 = vector.load %arg15[%c0_44, %c448] : memref<98x512xf32, #tpu.memory_space<vmem>>, vector<41x32xf32>
    tpu.vector_store %arg15[%c0_44, %c448], %93 {strides = array<i32>} : memref<98x512xf32, #tpu.memory_space<vmem>>, vector<41x32xf32>,
    %c302 = arith.constant 302 : index
    %c0_45 = arith.constant 0 : index
    %95 = vector.load %arg14[%c302, %c0_45] : memref<392x32xf32, #tpu.memory_space<vmem>>, vector<41x32xf32>
    %c0_46 = arith.constant 0 : index
    %c480 = arith.constant 480 : index
    %96 = vector.load %arg15[%c0_46, %c480] : memref<98x512xf32, #tpu.memory_space<vmem>>, vector<41x32xf32>
    tpu.vector_store %arg15[%c0_46, %c480], %95 {strides = array<i32>} : memref<98x512xf32, #tpu.memory_space<vmem>>, vector<41x32xf32>,
    %c49 = arith.constant 49 : index
    %c0_47 = arith.constant 0 : index
    %97 = vector.load %arg14[%c49, %c0_47] : memref<392x32xf32, #tpu.memory_space<vmem>>, vector<41x32xf32>
    %c49_48 = arith.constant 49 : index
    %c0_49 = arith.constant 0 : index
    %98 = vector.load %arg15[%c49_48, %c0_49] : memref<98x512xf32, #tpu.memory_space<vmem>>, vector<41x32xf32>
    tpu.vector_store %arg15[%c49_48, %c0_49], %97 {strides = array<i32>} : memref<98x512xf32, #tpu.memory_space<vmem>>, vector<41x32xf32>,
    %c147 = arith.constant 147 : index
    %c0_50 = arith.constant 0 : index
    %99 = vector.load %arg14[%c147, %c0_50] : memref<392x32xf32, #tpu.memory_space<vmem>>, vector<41x32xf32>
    %c49_51 = arith.constant 49 : index
    %c32_52 = arith.constant 32 : index
    %100 = vector.load %arg15[%c49_51, %c32_52] : memref<98x512xf32, #tpu.memory_space<vmem>>, vector<41x32xf32>
    tpu.vector_store %arg15[%c49_51, %c32_52], %99 {strides = array<i32>} : memref<98x512xf32, #tpu.memory_space<vmem>>, vector<41x32xf32>,
    %c50 = arith.constant 50 : index
    %c0_53 = arith.constant 0 : index
    %101 = vector.load %arg14[%c50, %c0_53] : memref<392x32xf32, #tpu.memory_space<vmem>>, vector<41x32xf32>
    %c49_54 = arith.constant 49 : index
    %c64_55 = arith.constant 64 : index
    %102 = vector.load %arg15[%c49_54, %c64_55] : memref<98x512xf32, #tpu.memory_space<vmem>>, vector<41x32xf32>
    tpu.vector_store %arg15[%c49_54, %c64_55], %101 {strides = array<i32>} : memref<98x512xf32, #tpu.memory_space<vmem>>, vector<41x32xf32>,
    %c148 = arith.constant 148 : index
    %c0_56 = arith.constant 0 : index
    %103 = vector.load %arg14[%c148, %c0_56] : memref<392x32xf32, #tpu.memory_space<vmem>>, vector<41x32xf32>
    %c49_57 = arith.constant 49 : index
    %c96_58 = arith.constant 96 : index
    %104 = vector.load %arg15[%c49_57, %c96_58] : memref<98x512xf32, #tpu.memory_space<vmem>>, vector<41x32xf32>
    tpu.vector_store %arg15[%c49_57, %c96_58], %103 {strides = array<i32>} : memref<98x512xf32, #tpu.memory_space<vmem>>, vector<41x32xf32>,
    %c245 = arith.constant 245 : index
    %c0_59 = arith.constant 0 : index
    %105 = vector.load %arg14[%c245, %c0_59] : memref<392x32xf32, #tpu.memory_space<vmem>>, vector<41x32xf32>
    %c49_60 = arith.constant 49 : index
    %c128_61 = arith.constant 128 : index
    %106 = vector.load %arg15[%c49_60, %c128_61] : memref<98x512xf32, #tpu.memory_space<vmem>>, vector<41x32xf32>
    tpu.vector_store %arg15[%c49_60, %c128_61], %105 {strides = array<i32>} : memref<98x512xf32, #tpu.memory_space<vmem>>, vector<41x32xf32>,
    %c343 = arith.constant 343 : index
    %c0_62 = arith.constant 0 : index
    %107 = vector.load %arg14[%c343, %c0_62] : memref<392x32xf32, #tpu.memory_space<vmem>>, vector<41x32xf32>
    %c49_63 = arith.constant 49 : index
    %c160_64 = arith.constant 160 : index
    %108 = vector.load %arg15[%c49_63, %c160_64] : memref<98x512xf32, #tpu.memory_space<vmem>>, vector<41x32xf32>
    tpu.vector_store %arg15[%c49_63, %c160_64], %107 {strides = array<i32>} : memref<98x512xf32, #tpu.memory_space<vmem>>, vector<41x32xf32>,
    %c246 = arith.constant 246 : index
    %c0_65 = arith.constant 0 : index
    %109 = vector.load %arg14[%c246, %c0_65] : memref<392x32xf32, #tpu.memory_space<vmem>>, vector<41x32xf32>
    %c49_66 = arith.constant 49 : index
    %c192_67 = arith.constant 192 : index
    %110 = vector.load %arg15[%c49_66, %c192_67] : memref<98x512xf32, #tpu.memory_space<vmem>>, vector<41x32xf32>
    tpu.vector_store %arg15[%c49_66, %c192_67], %109 {strides = array<i32>} : memref<98x512xf32, #tpu.memory_space<vmem>>, vector<41x32xf32>,
    %c344 = arith.constant 344 : index
    %c0_68 = arith.constant 0 : index
    %111 = vector.load %arg14[%c344, %c0_68] : memref<392x32xf32, #tpu.memory_space<vmem>>, vector<41x32xf32>
    %c49_69 = arith.constant 49 : index
    %c224_70 = arith.constant 224 : index
    %112 = vector.load %arg15[%c49_69, %c224_70] : memref<98x512xf32, #tpu.memory_space<vmem>>, vector<41x32xf32>
    tpu.vector_store %arg15[%c49_69, %c224_70], %111 {strides = array<i32>} : memref<98x512xf32, #tpu.memory_space<vmem>>, vector<41x32xf32>,
    %c56 = arith.constant 56 : index
    %c0_71 = arith.constant 0 : index
    %113 = vector.load %arg14[%c56, %c0_71] : memref<392x32xf32, #tpu.memory_space<vmem>>, vector<41x32xf32>
    %c49_72 = arith.constant 49 : index
    %c256_73 = arith.constant 256 : index
    %114 = vector.load %arg15[%c49_72, %c256_73] : memref<98x512xf32, #tpu.memory_space<vmem>>, vector<41x32xf32>
    tpu.vector_store %arg15[%c49_72, %c256_73], %113 {strides = array<i32>} : memref<98x512xf32, #tpu.memory_space<vmem>>, vector<41x32xf32>,
    %c154 = arith.constant 154 : index
    %c0_74 = arith.constant 0 : index
    %115 = vector.load %arg14[%c154, %c0_74] : memref<392x32xf32, #tpu.memory_space<vmem>>, vector<41x32xf32>
    %c49_75 = arith.constant 49 : index
    %c288_76 = arith.constant 288 : index
    %116 = vector.load %arg15[%c49_75, %c288_76] : memref<98x512xf32, #tpu.memory_space<vmem>>, vector<41x32xf32>
    tpu.vector_store %arg15[%c49_75, %c288_76], %115 {strides = array<i32>} : memref<98x512xf32, #tpu.memory_space<vmem>>, vector<41x32xf32>,
    %c57 = arith.constant 57 : index
    %c0_77 = arith.constant 0 : index
    %117 = vector.load %arg14[%c57, %c0_77] : memref<392x32xf32, #tpu.memory_space<vmem>>, vector<41x32xf32>
    %c49_78 = arith.constant 49 : index
    %c320_79 = arith.constant 320 : index
    %118 = vector.load %arg15[%c49_78, %c320_79] : memref<98x512xf32, #tpu.memory_space<vmem>>, vector<41x32xf32>
    tpu.vector_store %arg15[%c49_78, %c320_79], %117 {strides = array<i32>} : memref<98x512xf32, #tpu.memory_space<vmem>>, vector<41x32xf32>,
    %c155 = arith.constant 155 : index
    %c0_80 = arith.constant 0 : index
    %119 = vector.load %arg14[%c155, %c0_80] : memref<392x32xf32, #tpu.memory_space<vmem>>, vector<41x32xf32>
    %c49_81 = arith.constant 49 : index
    %c352_82 = arith.constant 352 : index
    %120 = vector.load %arg15[%c49_81, %c352_82] : memref<98x512xf32, #tpu.memory_space<vmem>>, vector<41x32xf32>
    tpu.vector_store %arg15[%c49_81, %c352_82], %119 {strides = array<i32>} : memref<98x512xf32, #tpu.memory_space<vmem>>, vector<41x32xf32>,
    %c252 = arith.constant 252 : index
    %c0_83 = arith.constant 0 : index
    %121 = vector.load %arg14[%c252, %c0_83] : memref<392x32xf32, #tpu.memory_space<vmem>>, vector<41x32xf32>
    %c49_84 = arith.constant 49 : index
    %c384_85 = arith.constant 384 : index
    %122 = vector.load %arg15[%c49_84, %c384_85] : memref<98x512xf32, #tpu.memory_space<vmem>>, vector<41x32xf32>
    tpu.vector_store %arg15[%c49_84, %c384_85], %121 {strides = array<i32>} : memref<98x512xf32, #tpu.memory_space<vmem>>, vector<41x32xf32>,
    %c350 = arith.constant 350 : index
    %c0_86 = arith.constant 0 : index
    %123 = vector.load %arg14[%c350, %c0_86] : memref<392x32xf32, #tpu.memory_space<vmem>>, vector<41x32xf32>
    %c49_87 = arith.constant 49 : index
    %c416_88 = arith.constant 416 : index
    %124 = vector.load %arg15[%c49_87, %c416_88] : memref<98x512xf32, #tpu.memory_space<vmem>>, vector<41x32xf32>
    tpu.vector_store %arg15[%c49_87, %c416_88], %123 {strides = array<i32>} : memref<98x512xf32, #tpu.memory_space<vmem>>, vector<41x32xf32>,
    %c253 = arith.constant 253 : index
    %c0_89 = arith.constant 0 : index
    %125 = vector.load %arg14[%c253, %c0_89] : memref<392x32xf32, #tpu.memory_space<vmem>>, vector<41x32xf32>
    %c49_90 = arith.constant 49 : index
    %c448_91 = arith.constant 448 : index
    %126 = vector.load %arg15[%c49_90, %c448_91] : memref<98x512xf32, #tpu.memory_space<vmem>>, vector<41x32xf32>
    tpu.vector_store %arg15[%c49_90, %c448_91], %125 {strides = array<i32>} : memref<98x512xf32, #tpu.memory_space<vmem>>, vector<41x32xf32>,
    %c351 = arith.constant 351 : index
    %c0_92 = arith.constant 0 : index
    %127 = vector.load %arg14[%c351, %c0_92] : memref<392x32xf32, #tpu.memory_space<vmem>>, vector<41x32xf32>
    %c49_93 = arith.constant 49 : index
    %c480_94 = arith.constant 480 : index
    %128 = vector.load %arg15[%c49_93, %c480_94] : memref<98x512xf32, #tpu.memory_space<vmem>>, vector<41x32xf32>
    tpu.vector_store %arg15[%c49_93, %c480_94], %127 {strides = array<i32>} : memref<98x512xf32, #tpu.memory_space<vmem>>, vector<41x32xf32>,
    %c0_95 = arith.constant 0 : index
    %c0_96 = arith.constant 0 : index
    %129 = vector.load %arg15[%c0_95, %c0_96] : memref<98x512xf32, #tpu.memory_space<vmem>>, vector<98x512xf32>
    %c0_97 = arith.constant 0 : index
    %c0_98 = arith.constant 0 : index
    %130 = vector.load %arg3[%c0_97, %c0_98] : memref<512x64xf32, #tpu.memory_space<vmem>>, vector<512x64xf32>
    %cst_99 = arith.constant dense<0.000000e+00> : vector<98x64xf32>
    %131 = tpu.matmul %129, %130, %cst_99 {dimension_numbers = #tpu.dot_dimension_numbers<[1], [0], [0], [1], [0, 0, 1, 1], [], []>} : vector<98x512xf32>, vector<512x64xf32>, vector<98x64xf32> -> vector<98x64xf32>
    %c0_100 = arith.constant 0 : index
    %c0_101 = arith.constant 0 : index
    %132 = vector.load %arg4[%c0_100, %c0_101] : memref<1x64xf32, #tpu.memory_space<vmem>>, vector<1x64xf32>
    %133 = vector.broadcast %132 : vector<1x64xf32> to vector<98x64xf32>
    %134 = arith.addf %131, %133 : vector<98x64xf32>
    %cst_102 = arith.constant 0.000000e+00 : f32
    %135 = vector.broadcast %cst_102 : f32 to vector<98x64xf32>
    %136 = arith.maximumf %134, %135 : vector<98x64xf32>
    %c0_103 = arith.constant 0 : index
    %c0_104 = arith.constant 0 : index
    %137 = vector.load %arg16[%c0_103, %c0_104] : memref<98x64xf32, #tpu.memory_space<vmem>>, vector<98x64xf32>
    tpu.vector_store %arg16[%c0_103, %c0_104], %136 {strides = array<i32>} : memref<98x64xf32, #tpu.memory_space<vmem>>, vector<98x64xf32>,
    %c0_105 = arith.constant 0 : index
    %c0_106 = arith.constant 0 : index
    %138 = vector.load %arg16[%c0_105, %c0_106] : memref<98x64xf32, #tpu.memory_space<vmem>>, vector<25x64xf32>
    %c0_107 = arith.constant 0 : index
    %c0_108 = arith.constant 0 : index
    %139 = vector.load %arg17[%c0_107, %c0_108] : memref<98x576xf32, #tpu.memory_space<vmem>>, vector<25x64xf32>
    tpu.vector_store %arg17[%c0_107, %c0_108], %138 {strides = array<i32>} : memref<98x576xf32, #tpu.memory_space<vmem>>, vector<25x64xf32>,
    %c1_109 = arith.constant 1 : index
    %c0_110 = arith.constant 0 : index
    %140 = vector.load %arg16[%c1_109, %c0_110] : memref<98x64xf32, #tpu.memory_space<vmem>>, vector<25x64xf32>
    %c0_111 = arith.constant 0 : index
    %c64_112 = arith.constant 64 : index
    %141 = vector.load %arg17[%c0_111, %c64_112] : memref<98x576xf32, #tpu.memory_space<vmem>>, vector<25x64xf32>
    tpu.vector_store %arg17[%c0_111, %c64_112], %140 {strides = array<i32>} : memref<98x576xf32, #tpu.memory_space<vmem>>, vector<25x64xf32>,
    %c2 = arith.constant 2 : index
    %c0_113 = arith.constant 0 : index
    %142 = vector.load %arg16[%c2, %c0_113] : memref<98x64xf32, #tpu.memory_space<vmem>>, vector<25x64xf32>
    %c0_114 = arith.constant 0 : index
    %c128_115 = arith.constant 128 : index
    %143 = vector.load %arg17[%c0_114, %c128_115] : memref<98x576xf32, #tpu.memory_space<vmem>>, vector<25x64xf32>
    tpu.vector_store %arg17[%c0_114, %c128_115], %142 {strides = array<i32>} : memref<98x576xf32, #tpu.memory_space<vmem>>, vector<25x64xf32>,
    %c7_116 = arith.constant 7 : index
    %c0_117 = arith.constant 0 : index
    %144 = vector.load %arg16[%c7_116, %c0_117] : memref<98x64xf32, #tpu.memory_space<vmem>>, vector<25x64xf32>
    %c0_118 = arith.constant 0 : index
    %c192_119 = arith.constant 192 : index
    %145 = vector.load %arg17[%c0_118, %c192_119] : memref<98x576xf32, #tpu.memory_space<vmem>>, vector<25x64xf32>
    tpu.vector_store %arg17[%c0_118, %c192_119], %144 {strides = array<i32>} : memref<98x576xf32, #tpu.memory_space<vmem>>, vector<25x64xf32>,
    %c8_120 = arith.constant 8 : index
    %c0_121 = arith.constant 0 : index
    %146 = vector.load %arg16[%c8_120, %c0_121] : memref<98x64xf32, #tpu.memory_space<vmem>>, vector<25x64xf32>
    %c0_122 = arith.constant 0 : index
    %c256_123 = arith.constant 256 : index
    %147 = vector.load %arg17[%c0_122, %c256_123] : memref<98x576xf32, #tpu.memory_space<vmem>>, vector<25x64xf32>
    tpu.vector_store %arg17[%c0_122, %c256_123], %146 {strides = array<i32>} : memref<98x576xf32, #tpu.memory_space<vmem>>, vector<25x64xf32>,
    %c9 = arith.constant 9 : index
    %c0_124 = arith.constant 0 : index
    %148 = vector.load %arg16[%c9, %c0_124] : memref<98x64xf32, #tpu.memory_space<vmem>>, vector<25x64xf32>
    %c0_125 = arith.constant 0 : index
    %c320_126 = arith.constant 320 : index
    %149 = vector.load %arg17[%c0_125, %c320_126] : memref<98x576xf32, #tpu.memory_space<vmem>>, vector<25x64xf32>
    tpu.vector_store %arg17[%c0_125, %c320_126], %148 {strides = array<i32>} : memref<98x576xf32, #tpu.memory_space<vmem>>, vector<25x64xf32>,
    %c14 = arith.constant 14 : index
    %c0_127 = arith.constant 0 : index
    %150 = vector.load %arg16[%c14, %c0_127] : memref<98x64xf32, #tpu.memory_space<vmem>>, vector<25x64xf32>
    %c0_128 = arith.constant 0 : index
    %c384_129 = arith.constant 384 : index
    %151 = vector.load %arg17[%c0_128, %c384_129] : memref<98x576xf32, #tpu.memory_space<vmem>>, vector<25x64xf32>
    tpu.vector_store %arg17[%c0_128, %c384_129], %150 {strides = array<i32>} : memref<98x576xf32, #tpu.memory_space<vmem>>, vector<25x64xf32>,
    %c15 = arith.constant 15 : index
    %c0_130 = arith.constant 0 : index
    %152 = vector.load %arg16[%c15, %c0_130] : memref<98x64xf32, #tpu.memory_space<vmem>>, vector<25x64xf32>
    %c0_131 = arith.constant 0 : index
    %c448_132 = arith.constant 448 : index
    %153 = vector.load %arg17[%c0_131, %c448_132] : memref<98x576xf32, #tpu.memory_space<vmem>>, vector<25x64xf32>
    tpu.vector_store %arg17[%c0_131, %c448_132], %152 {strides = array<i32>} : memref<98x576xf32, #tpu.memory_space<vmem>>, vector<25x64xf32>,
    %c16 = arith.constant 16 : index
    %c0_133 = arith.constant 0 : index
    %154 = vector.load %arg16[%c16, %c0_133] : memref<98x64xf32, #tpu.memory_space<vmem>>, vector<25x64xf32>
    %c0_134 = arith.constant 0 : index
    %c512 = arith.constant 512 : index
    %155 = vector.load %arg17[%c0_134, %c512] : memref<98x576xf32, #tpu.memory_space<vmem>>, vector<25x64xf32>
    tpu.vector_store %arg17[%c0_134, %c512], %154 {strides = array<i32>} : memref<98x576xf32, #tpu.memory_space<vmem>>, vector<25x64xf32>,
    %c49_135 = arith.constant 49 : index
    %c0_136 = arith.constant 0 : index
    %156 = vector.load %arg16[%c49_135, %c0_136] : memref<98x64xf32, #tpu.memory_space<vmem>>, vector<25x64xf32>
    %c49_137 = arith.constant 49 : index
    %c0_138 = arith.constant 0 : index
    %157 = vector.load %arg17[%c49_137, %c0_138] : memref<98x576xf32, #tpu.memory_space<vmem>>, vector<25x64xf32>
    tpu.vector_store %arg17[%c49_137, %c0_138], %156 {strides = array<i32>} : memref<98x576xf32, #tpu.memory_space<vmem>>, vector<25x64xf32>,
    %c50_139 = arith.constant 50 : index
    %c0_140 = arith.constant 0 : index
    %158 = vector.load %arg16[%c50_139, %c0_140] : memref<98x64xf32, #tpu.memory_space<vmem>>, vector<25x64xf32>
    %c49_141 = arith.constant 49 : index
    %c64_142 = arith.constant 64 : index
    %159 = vector.load %arg17[%c49_141, %c64_142] : memref<98x576xf32, #tpu.memory_space<vmem>>, vector<25x64xf32>
    tpu.vector_store %arg17[%c49_141, %c64_142], %158 {strides = array<i32>} : memref<98x576xf32, #tpu.memory_space<vmem>>, vector<25x64xf32>,
    %c51 = arith.constant 51 : index
    %c0_143 = arith.constant 0 : index
    %160 = vector.load %arg16[%c51, %c0_143] : memref<98x64xf32, #tpu.memory_space<vmem>>, vector<25x64xf32>
    %c49_144 = arith.constant 49 : index
    %c128_145 = arith.constant 128 : index
    %161 = vector.load %arg17[%c49_144, %c128_145] : memref<98x576xf32, #tpu.memory_space<vmem>>, vector<25x64xf32>
    tpu.vector_store %arg17[%c49_144, %c128_145], %160 {strides = array<i32>} : memref<98x576xf32, #tpu.memory_space<vmem>>, vector<25x64xf32>,
    %c56_146 = arith.constant 56 : index
    %c0_147 = arith.constant 0 : index
    %162 = vector.load %arg16[%c56_146, %c0_147] : memref<98x64xf32, #tpu.memory_space<vmem>>, vector<25x64xf32>
    %c49_148 = arith.constant 49 : index
    %c192_149 = arith.constant 192 : index
    %163 = vector.load %arg17[%c49_148, %c192_149] : memref<98x576xf32, #tpu.memory_space<vmem>>, vector<25x64xf32>
    tpu.vector_store %arg17[%c49_148, %c192_149], %162 {strides = array<i32>} : memref<98x576xf32, #tpu.memory_space<vmem>>, vector<25x64xf32>,
    %c57_150 = arith.constant 57 : index
    %c0_151 = arith.constant 0 : index
    %164 = vector.load %arg16[%c57_150, %c0_151] : memref<98x64xf32, #tpu.memory_space<vmem>>, vector<25x64xf32>
    %c49_152 = arith.constant 49 : index
    %c256_153 = arith.constant 256 : index
    %165 = vector.load %arg17[%c49_152, %c256_153] : memref<98x576xf32, #tpu.memory_space<vmem>>, vector<25x64xf32>
    tpu.vector_store %arg17[%c49_152, %c256_153], %164 {strides = array<i32>} : memref<98x576xf32, #tpu.memory_space<vmem>>, vector<25x64xf32>,
    %c58 = arith.constant 58 : index
    %c0_154 = arith.constant 0 : index
    %166 = vector.load %arg16[%c58, %c0_154] : memref<98x64xf32, #tpu.memory_space<vmem>>, vector<25x64xf32>
    %c49_155 = arith.constant 49 : index
    %c320_156 = arith.constant 320 : index
    %167 = vector.load %arg17[%c49_155, %c320_156] : memref<98x576xf32, #tpu.memory_space<vmem>>, vector<25x64xf32>
    tpu.vector_store %arg17[%c49_155, %c320_156], %166 {strides = array<i32>} : memref<98x576xf32, #tpu.memory_space<vmem>>, vector<25x64xf32>,
    %c63 = arith.constant 63 : index
    %c0_157 = arith.constant 0 : index
    %168 = vector.load %arg16[%c63, %c0_157] : memref<98x64xf32, #tpu.memory_space<vmem>>, vector<25x64xf32>
    %c49_158 = arith.constant 49 : index
    %c384_159 = arith.constant 384 : index
    %169 = vector.load %arg17[%c49_158, %c384_159] : memref<98x576xf32, #tpu.memory_space<vmem>>, vector<25x64xf32>
    tpu.vector_store %arg17[%c49_158, %c384_159], %168 {strides = array<i32>} : memref<98x576xf32, #tpu.memory_space<vmem>>, vector<25x64xf32>,
    %c64_160 = arith.constant 64 : index
    %c0_161 = arith.constant 0 : index
    %170 = vector.load %arg16[%c64_160, %c0_161] : memref<98x64xf32, #tpu.memory_space<vmem>>, vector<25x64xf32>
    %c49_162 = arith.constant 49 : index
    %c448_163 = arith.constant 448 : index
    %171 = vector.load %arg17[%c49_162, %c448_163] : memref<98x576xf32, #tpu.memory_space<vmem>>, vector<25x64xf32>
    tpu.vector_store %arg17[%c49_162, %c448_163], %170 {strides = array<i32>} : memref<98x576xf32, #tpu.memory_space<vmem>>, vector<25x64xf32>,
    %c65 = arith.constant 65 : index
    %c0_164 = arith.constant 0 : index
    %172 = vector.load %arg16[%c65, %c0_164] : memref<98x64xf32, #tpu.memory_space<vmem>>, vector<25x64xf32>
    %c49_165 = arith.constant 49 : index
    %c512_166 = arith.constant 512 : index
    %173 = vector.load %arg17[%c49_165, %c512_166] : memref<98x576xf32, #tpu.memory_space<vmem>>, vector<25x64xf32>
    tpu.vector_store %arg17[%c49_165, %c512_166], %172 {strides = array<i32>} : memref<98x576xf32, #tpu.memory_space<vmem>>, vector<25x64xf32>,
    %c0_167 = arith.constant 0 : index
    %c0_168 = arith.constant 0 : index
    %174 = vector.load %arg17[%c0_167, %c0_168] : memref<98x576xf32, #tpu.memory_space<vmem>>, vector<98x576xf32>
    %c0_169 = arith.constant 0 : index
    %c0_170 = arith.constant 0 : index
    %175 = vector.load %arg5[%c0_169, %c0_170] : memref<576x16xf32, #tpu.memory_space<vmem>>, vector<576x16xf32>
    %cst_171 = arith.constant dense<0.000000e+00> : vector<98x16xf32>
    %176 = tpu.matmul %174, %175, %cst_171 {dimension_numbers = #tpu.dot_dimension_numbers<[1], [0], [0], [1], [0, 0, 1, 1], [], []>} : vector<98x576xf32>, vector<576x16xf32>, vector<98x16xf32> -> vector<98x16xf32>
    %c0_172 = arith.constant 0 : index
    %c0_173 = arith.constant 0 : index
    %177 = vector.load %arg6[%c0_172, %c0_173] : memref<1x16xf32, #tpu.memory_space<vmem>>, vector<1x16xf32>
    %178 = vector.broadcast %177 : vector<1x16xf32> to vector<98x16xf32>
    %179 = arith.addf %176, %178 : vector<98x16xf32>
    %cst_174 = arith.constant 0.000000e+00 : f32
    %180 = vector.broadcast %cst_174 : f32 to vector<98x16xf32>
    %181 = arith.maximumf %179, %180 : vector<98x16xf32>
    %c0_175 = arith.constant 0 : index
    %c0_176 = arith.constant 0 : index
    %182 = vector.load %arg18[%c0_175, %c0_176] : memref<98x16xf32, #tpu.memory_space<vmem>>, vector<98x16xf32>
    tpu.vector_store %arg18[%c0_175, %c0_176], %181 {strides = array<i32>} : memref<98x16xf32, #tpu.memory_space<vmem>>, vector<98x16xf32>,
    %c0_177 = arith.constant 0 : index
    %c0_178 = arith.constant 0 : index
    %183 = vector.load %arg18[%c0_177, %c0_178] : memref<98x16xf32, #tpu.memory_space<vmem>>, vector<1x16xf32>
    %c0_179 = arith.constant 0 : index
    %c0_180 = arith.constant 0 : index
    %184 = vector.load %arg19[%c0_179, %c0_180] : memref<2x256xf32, #tpu.memory_space<vmem>>, vector<1x16xf32>
    tpu.vector_store %arg19[%c0_179, %c0_180], %183 {strides = array<i32>} : memref<2x256xf32, #tpu.memory_space<vmem>>, vector<1x16xf32>,
    %c1_181 = arith.constant 1 : index
    %c0_182 = arith.constant 0 : index
    %185 = vector.load %arg18[%c1_181, %c0_182] : memref<98x16xf32, #tpu.memory_space<vmem>>, vector<1x16xf32>
    %c0_183 = arith.constant 0 : index
    %c16_184 = arith.constant 16 : index
    %186 = vector.load %arg19[%c0_183, %c16_184] : memref<2x256xf32, #tpu.memory_space<vmem>>, vector<1x16xf32>
    tpu.vector_store %arg19[%c0_183, %c16_184], %185 {strides = array<i32>} : memref<2x256xf32, #tpu.memory_space<vmem>>, vector<1x16xf32>,
    %c2_185 = arith.constant 2 : index
    %c0_186 = arith.constant 0 : index
    %187 = vector.load %arg18[%c2_185, %c0_186] : memref<98x16xf32, #tpu.memory_space<vmem>>, vector<1x16xf32>
    %c0_187 = arith.constant 0 : index
    %c32_188 = arith.constant 32 : index
    %188 = vector.load %arg19[%c0_187, %c32_188] : memref<2x256xf32, #tpu.memory_space<vmem>>, vector<1x16xf32>
    tpu.vector_store %arg19[%c0_187, %c32_188], %187 {strides = array<i32>} : memref<2x256xf32, #tpu.memory_space<vmem>>, vector<1x16xf32>,
    %c3 = arith.constant 3 : index
    %c0_189 = arith.constant 0 : index
    %189 = vector.load %arg18[%c3, %c0_189] : memref<98x16xf32, #tpu.memory_space<vmem>>, vector<1x16xf32>
    %c0_190 = arith.constant 0 : index
    %c48 = arith.constant 48 : index
    %190 = vector.load %arg19[%c0_190, %c48] : memref<2x256xf32, #tpu.memory_space<vmem>>, vector<1x16xf32>
    tpu.vector_store %arg19[%c0_190, %c48], %189 {strides = array<i32>} : memref<2x256xf32, #tpu.memory_space<vmem>>, vector<1x16xf32>,
    %c7_191 = arith.constant 7 : index
    %c0_192 = arith.constant 0 : index
    %191 = vector.load %arg18[%c7_191, %c0_192] : memref<98x16xf32, #tpu.memory_space<vmem>>, vector<1x16xf32>
    %c0_193 = arith.constant 0 : index
    %c64_194 = arith.constant 64 : index
    %192 = vector.load %arg19[%c0_193, %c64_194] : memref<2x256xf32, #tpu.memory_space<vmem>>, vector<1x16xf32>
    tpu.vector_store %arg19[%c0_193, %c64_194], %191 {strides = array<i32>} : memref<2x256xf32, #tpu.memory_space<vmem>>, vector<1x16xf32>,
    %c8_195 = arith.constant 8 : index
    %c0_196 = arith.constant 0 : index
    %193 = vector.load %arg18[%c8_195, %c0_196] : memref<98x16xf32, #tpu.memory_space<vmem>>, vector<1x16xf32>
    %c0_197 = arith.constant 0 : index
    %c80 = arith.constant 80 : index
    %194 = vector.load %arg19[%c0_197, %c80] : memref<2x256xf32, #tpu.memory_space<vmem>>, vector<1x16xf32>
    tpu.vector_store %arg19[%c0_197, %c80], %193 {strides = array<i32>} : memref<2x256xf32, #tpu.memory_space<vmem>>, vector<1x16xf32>,
    %c9_198 = arith.constant 9 : index
    %c0_199 = arith.constant 0 : index
    %195 = vector.load %arg18[%c9_198, %c0_199] : memref<98x16xf32, #tpu.memory_space<vmem>>, vector<1x16xf32>
    %c0_200 = arith.constant 0 : index
    %c96_201 = arith.constant 96 : index
    %196 = vector.load %arg19[%c0_200, %c96_201] : memref<2x256xf32, #tpu.memory_space<vmem>>, vector<1x16xf32>
    tpu.vector_store %arg19[%c0_200, %c96_201], %195 {strides = array<i32>} : memref<2x256xf32, #tpu.memory_space<vmem>>, vector<1x16xf32>,
    %c10 = arith.constant 10 : index
    %c0_202 = arith.constant 0 : index
    %197 = vector.load %arg18[%c10, %c0_202] : memref<98x16xf32, #tpu.memory_space<vmem>>, vector<1x16xf32>
    %c0_203 = arith.constant 0 : index
    %c112 = arith.constant 112 : index
    %198 = vector.load %arg19[%c0_203, %c112] : memref<2x256xf32, #tpu.memory_space<vmem>>, vector<1x16xf32>
    tpu.vector_store %arg19[%c0_203, %c112], %197 {strides = array<i32>} : memref<2x256xf32, #tpu.memory_space<vmem>>, vector<1x16xf32>,
    %c14_204 = arith.constant 14 : index
    %c0_205 = arith.constant 0 : index
    %199 = vector.load %arg18[%c14_204, %c0_205] : memref<98x16xf32, #tpu.memory_space<vmem>>, vector<1x16xf32>
    %c0_206 = arith.constant 0 : index
    %c128_207 = arith.constant 128 : index
    %200 = vector.load %arg19[%c0_206, %c128_207] : memref<2x256xf32, #tpu.memory_space<vmem>>, vector<1x16xf32>
    tpu.vector_store %arg19[%c0_206, %c128_207], %199 {strides = array<i32>} : memref<2x256xf32, #tpu.memory_space<vmem>>, vector<1x16xf32>,
    %c15_208 = arith.constant 15 : index
    %c0_209 = arith.constant 0 : index
    %201 = vector.load %arg18[%c15_208, %c0_209] : memref<98x16xf32, #tpu.memory_space<vmem>>, vector<1x16xf32>
    %c0_210 = arith.constant 0 : index
    %c144 = arith.constant 144 : index
    %202 = vector.load %arg19[%c0_210, %c144] : memref<2x256xf32, #tpu.memory_space<vmem>>, vector<1x16xf32>
    tpu.vector_store %arg19[%c0_210, %c144], %201 {strides = array<i32>} : memref<2x256xf32, #tpu.memory_space<vmem>>, vector<1x16xf32>,
    %c16_211 = arith.constant 16 : index
    %c0_212 = arith.constant 0 : index
    %203 = vector.load %arg18[%c16_211, %c0_212] : memref<98x16xf32, #tpu.memory_space<vmem>>, vector<1x16xf32>
    %c0_213 = arith.constant 0 : index
    %c160_214 = arith.constant 160 : index
    %204 = vector.load %arg19[%c0_213, %c160_214] : memref<2x256xf32, #tpu.memory_space<vmem>>, vector<1x16xf32>
    tpu.vector_store %arg19[%c0_213, %c160_214], %203 {strides = array<i32>} : memref<2x256xf32, #tpu.memory_space<vmem>>, vector<1x16xf32>,
    %c17 = arith.constant 17 : index
    %c0_215 = arith.constant 0 : index
    %205 = vector.load %arg18[%c17, %c0_215] : memref<98x16xf32, #tpu.memory_space<vmem>>, vector<1x16xf32>
    %c0_216 = arith.constant 0 : index
    %c176 = arith.constant 176 : index
    %206 = vector.load %arg19[%c0_216, %c176] : memref<2x256xf32, #tpu.memory_space<vmem>>, vector<1x16xf32>
    tpu.vector_store %arg19[%c0_216, %c176], %205 {strides = array<i32>} : memref<2x256xf32, #tpu.memory_space<vmem>>, vector<1x16xf32>,
    %c21 = arith.constant 21 : index
    %c0_217 = arith.constant 0 : index
    %207 = vector.load %arg18[%c21, %c0_217] : memref<98x16xf32, #tpu.memory_space<vmem>>, vector<1x16xf32>
    %c0_218 = arith.constant 0 : index
    %c192_219 = arith.constant 192 : index
    %208 = vector.load %arg19[%c0_218, %c192_219] : memref<2x256xf32, #tpu.memory_space<vmem>>, vector<1x16xf32>
    tpu.vector_store %arg19[%c0_218, %c192_219], %207 {strides = array<i32>} : memref<2x256xf32, #tpu.memory_space<vmem>>, vector<1x16xf32>,
    %c22 = arith.constant 22 : index
    %c0_220 = arith.constant 0 : index
    %209 = vector.load %arg18[%c22, %c0_220] : memref<98x16xf32, #tpu.memory_space<vmem>>, vector<1x16xf32>
    %c0_221 = arith.constant 0 : index
    %c208 = arith.constant 208 : index
    %210 = vector.load %arg19[%c0_221, %c208] : memref<2x256xf32, #tpu.memory_space<vmem>>, vector<1x16xf32>
    tpu.vector_store %arg19[%c0_221, %c208], %209 {strides = array<i32>} : memref<2x256xf32, #tpu.memory_space<vmem>>, vector<1x16xf32>,
    %c23 = arith.constant 23 : index
    %c0_222 = arith.constant 0 : index
    %211 = vector.load %arg18[%c23, %c0_222] : memref<98x16xf32, #tpu.memory_space<vmem>>, vector<1x16xf32>
    %c0_223 = arith.constant 0 : index
    %c224_224 = arith.constant 224 : index
    %212 = vector.load %arg19[%c0_223, %c224_224] : memref<2x256xf32, #tpu.memory_space<vmem>>, vector<1x16xf32>
    tpu.vector_store %arg19[%c0_223, %c224_224], %211 {strides = array<i32>} : memref<2x256xf32, #tpu.memory_space<vmem>>, vector<1x16xf32>,
    %c24 = arith.constant 24 : index
    %c0_225 = arith.constant 0 : index
    %213 = vector.load %arg18[%c24, %c0_225] : memref<98x16xf32, #tpu.memory_space<vmem>>, vector<1x16xf32>
    %c0_226 = arith.constant 0 : index
    %c240 = arith.constant 240 : index
    %214 = vector.load %arg19[%c0_226, %c240] : memref<2x256xf32, #tpu.memory_space<vmem>>, vector<1x16xf32>
    tpu.vector_store %arg19[%c0_226, %c240], %213 {strides = array<i32>} : memref<2x256xf32, #tpu.memory_space<vmem>>, vector<1x16xf32>,
    %c49_227 = arith.constant 49 : index
    %c0_228 = arith.constant 0 : index
    %215 = vector.load %arg18[%c49_227, %c0_228] : memref<98x16xf32, #tpu.memory_space<vmem>>, vector<1x16xf32>
    %c1_229 = arith.constant 1 : index
    %c0_230 = arith.constant 0 : index
    %216 = vector.load %arg19[%c1_229, %c0_230] : memref<2x256xf32, #tpu.memory_space<vmem>>, vector<1x16xf32>
    tpu.vector_store %arg19[%c1_229, %c0_230], %215 {strides = array<i32>} : memref<2x256xf32, #tpu.memory_space<vmem>>, vector<1x16xf32>,
    %c50_231 = arith.constant 50 : index
    %c0_232 = arith.constant 0 : index
    %217 = vector.load %arg18[%c50_231, %c0_232] : memref<98x16xf32, #tpu.memory_space<vmem>>, vector<1x16xf32>
    %c1_233 = arith.constant 1 : index
    %c16_234 = arith.constant 16 : index
    %218 = vector.load %arg19[%c1_233, %c16_234] : memref<2x256xf32, #tpu.memory_space<vmem>>, vector<1x16xf32>
    tpu.vector_store %arg19[%c1_233, %c16_234], %217 {strides = array<i32>} : memref<2x256xf32, #tpu.memory_space<vmem>>, vector<1x16xf32>,
    %c51_235 = arith.constant 51 : index
    %c0_236 = arith.constant 0 : index
    %219 = vector.load %arg18[%c51_235, %c0_236] : memref<98x16xf32, #tpu.memory_space<vmem>>, vector<1x16xf32>
    %c1_237 = arith.constant 1 : index
    %c32_238 = arith.constant 32 : index
    %220 = vector.load %arg19[%c1_237, %c32_238] : memref<2x256xf32, #tpu.memory_space<vmem>>, vector<1x16xf32>
    tpu.vector_store %arg19[%c1_237, %c32_238], %219 {strides = array<i32>} : memref<2x256xf32, #tpu.memory_space<vmem>>, vector<1x16xf32>,
    %c52 = arith.constant 52 : index
    %c0_239 = arith.constant 0 : index
    %221 = vector.load %arg18[%c52, %c0_239] : memref<98x16xf32, #tpu.memory_space<vmem>>, vector<1x16xf32>
    %c1_240 = arith.constant 1 : index
    %c48_241 = arith.constant 48 : index
    %222 = vector.load %arg19[%c1_240, %c48_241] : memref<2x256xf32, #tpu.memory_space<vmem>>, vector<1x16xf32>
    tpu.vector_store %arg19[%c1_240, %c48_241], %221 {strides = array<i32>} : memref<2x256xf32, #tpu.memory_space<vmem>>, vector<1x16xf32>,
    %c56_242 = arith.constant 56 : index
    %c0_243 = arith.constant 0 : index
    %223 = vector.load %arg18[%c56_242, %c0_243] : memref<98x16xf32, #tpu.memory_space<vmem>>, vector<1x16xf32>
    %c1_244 = arith.constant 1 : index
    %c64_245 = arith.constant 64 : index
    %224 = vector.load %arg19[%c1_244, %c64_245] : memref<2x256xf32, #tpu.memory_space<vmem>>, vector<1x16xf32>
    tpu.vector_store %arg19[%c1_244, %c64_245], %223 {strides = array<i32>} : memref<2x256xf32, #tpu.memory_space<vmem>>, vector<1x16xf32>,
    %c57_246 = arith.constant 57 : index
    %c0_247 = arith.constant 0 : index
    %225 = vector.load %arg18[%c57_246, %c0_247] : memref<98x16xf32, #tpu.memory_space<vmem>>, vector<1x16xf32>
    %c1_248 = arith.constant 1 : index
    %c80_249 = arith.constant 80 : index
    %226 = vector.load %arg19[%c1_248, %c80_249] : memref<2x256xf32, #tpu.memory_space<vmem>>, vector<1x16xf32>
    tpu.vector_store %arg19[%c1_248, %c80_249], %225 {strides = array<i32>} : memref<2x256xf32, #tpu.memory_space<vmem>>, vector<1x16xf32>,
    %c58_250 = arith.constant 58 : index
    %c0_251 = arith.constant 0 : index
    %227 = vector.load %arg18[%c58_250, %c0_251] : memref<98x16xf32, #tpu.memory_space<vmem>>, vector<1x16xf32>
    %c1_252 = arith.constant 1 : index
    %c96_253 = arith.constant 96 : index
    %228 = vector.load %arg19[%c1_252, %c96_253] : memref<2x256xf32, #tpu.memory_space<vmem>>, vector<1x16xf32>
    tpu.vector_store %arg19[%c1_252, %c96_253], %227 {strides = array<i32>} : memref<2x256xf32, #tpu.memory_space<vmem>>, vector<1x16xf32>,
    %c59 = arith.constant 59 : index
    %c0_254 = arith.constant 0 : index
    %229 = vector.load %arg18[%c59, %c0_254] : memref<98x16xf32, #tpu.memory_space<vmem>>, vector<1x16xf32>
    %c1_255 = arith.constant 1 : index
    %c112_256 = arith.constant 112 : index
    %230 = vector.load %arg19[%c1_255, %c112_256] : memref<2x256xf32, #tpu.memory_space<vmem>>, vector<1x16xf32>
    tpu.vector_store %arg19[%c1_255, %c112_256], %229 {strides = array<i32>} : memref<2x256xf32, #tpu.memory_space<vmem>>, vector<1x16xf32>,
    %c63_257 = arith.constant 63 : index
    %c0_258 = arith.constant 0 : index
    %231 = vector.load %arg18[%c63_257, %c0_258] : memref<98x16xf32, #tpu.memory_space<vmem>>, vector<1x16xf32>
    %c1_259 = arith.constant 1 : index
    %c128_260 = arith.constant 128 : index
    %232 = vector.load %arg19[%c1_259, %c128_260] : memref<2x256xf32, #tpu.memory_space<vmem>>, vector<1x16xf32>
    tpu.vector_store %arg19[%c1_259, %c128_260], %231 {strides = array<i32>} : memref<2x256xf32, #tpu.memory_space<vmem>>, vector<1x16xf32>,
    %c64_261 = arith.constant 64 : index
    %c0_262 = arith.constant 0 : index
    %233 = vector.load %arg18[%c64_261, %c0_262] : memref<98x16xf32, #tpu.memory_space<vmem>>, vector<1x16xf32>
    %c1_263 = arith.constant 1 : index
    %c144_264 = arith.constant 144 : index
    %234 = vector.load %arg19[%c1_263, %c144_264] : memref<2x256xf32, #tpu.memory_space<vmem>>, vector<1x16xf32>
    tpu.vector_store %arg19[%c1_263, %c144_264], %233 {strides = array<i32>} : memref<2x256xf32, #tpu.memory_space<vmem>>, vector<1x16xf32>,
    %c65_265 = arith.constant 65 : index
    %c0_266 = arith.constant 0 : index
    %235 = vector.load %arg18[%c65_265, %c0_266] : memref<98x16xf32, #tpu.memory_space<vmem>>, vector<1x16xf32>
    %c1_267 = arith.constant 1 : index
    %c160_268 = arith.constant 160 : index
    %236 = vector.load %arg19[%c1_267, %c160_268] : memref<2x256xf32, #tpu.memory_space<vmem>>, vector<1x16xf32>
    tpu.vector_store %arg19[%c1_267, %c160_268], %235 {strides = array<i32>} : memref<2x256xf32, #tpu.memory_space<vmem>>, vector<1x16xf32>,
    %c66 = arith.constant 66 : index
    %c0_269 = arith.constant 0 : index
    %237 = vector.load %arg18[%c66, %c0_269] : memref<98x16xf32, #tpu.memory_space<vmem>>, vector<1x16xf32>
    %c1_270 = arith.constant 1 : index
    %c176_271 = arith.constant 176 : index
    %238 = vector.load %arg19[%c1_270, %c176_271] : memref<2x256xf32, #tpu.memory_space<vmem>>, vector<1x16xf32>
    tpu.vector_store %arg19[%c1_270, %c176_271], %237 {strides = array<i32>} : memref<2x256xf32, #tpu.memory_space<vmem>>, vector<1x16xf32>,
    %c70 = arith.constant 70 : index
    %c0_272 = arith.constant 0 : index
    %239 = vector.load %arg18[%c70, %c0_272] : memref<98x16xf32, #tpu.memory_space<vmem>>, vector<1x16xf32>
    %c1_273 = arith.constant 1 : index
    %c192_274 = arith.constant 192 : index
    %240 = vector.load %arg19[%c1_273, %c192_274] : memref<2x256xf32, #tpu.memory_space<vmem>>, vector<1x16xf32>
    tpu.vector_store %arg19[%c1_273, %c192_274], %239 {strides = array<i32>} : memref<2x256xf32, #tpu.memory_space<vmem>>, vector<1x16xf32>,
    %c71 = arith.constant 71 : index
    %c0_275 = arith.constant 0 : index
    %241 = vector.load %arg18[%c71, %c0_275] : memref<98x16xf32, #tpu.memory_space<vmem>>, vector<1x16xf32>
    %c1_276 = arith.constant 1 : index
    %c208_277 = arith.constant 208 : index
    %242 = vector.load %arg19[%c1_276, %c208_277] : memref<2x256xf32, #tpu.memory_space<vmem>>, vector<1x16xf32>
    tpu.vector_store %arg19[%c1_276, %c208_277], %241 {strides = array<i32>} : memref<2x256xf32, #tpu.memory_space<vmem>>, vector<1x16xf32>,
    %c72 = arith.constant 72 : index
    %c0_278 = arith.constant 0 : index
    %243 = vector.load %arg18[%c72, %c0_278] : memref<98x16xf32, #tpu.memory_space<vmem>>, vector<1x16xf32>
    %c1_279 = arith.constant 1 : index
    %c224_280 = arith.constant 224 : index
    %244 = vector.load %arg19[%c1_279, %c224_280] : memref<2x256xf32, #tpu.memory_space<vmem>>, vector<1x16xf32>
    tpu.vector_store %arg19[%c1_279, %c224_280], %243 {strides = array<i32>} : memref<2x256xf32, #tpu.memory_space<vmem>>, vector<1x16xf32>,
    %c73 = arith.constant 73 : index
    %c0_281 = arith.constant 0 : index
    %245 = vector.load %arg18[%c73, %c0_281] : memref<98x16xf32, #tpu.memory_space<vmem>>, vector<1x16xf32>
    %c1_282 = arith.constant 1 : index
    %c240_283 = arith.constant 240 : index
    %246 = vector.load %arg19[%c1_282, %c240_283] : memref<2x256xf32, #tpu.memory_space<vmem>>, vector<1x16xf32>
    tpu.vector_store %arg19[%c1_282, %c240_283], %245 {strides = array<i32>} : memref<2x256xf32, #tpu.memory_space<vmem>>, vector<1x16xf32>,
    %c0_284 = arith.constant 0 : index
    %c0_285 = arith.constant 0 : index
    %247 = vector.load %arg19[%c0_284, %c0_285] : memref<2x256xf32, #tpu.memory_space<vmem>>, vector<2x256xf32>
    %c0_286 = arith.constant 0 : index
    %c0_287 = arith.constant 0 : index
    %248 = vector.load %arg7[%c0_286, %c0_287] : memref<256x64xf32, #tpu.memory_space<vmem>>, vector<256x64xf32>
    %cst_288 = arith.constant dense<0.000000e+00> : vector<2x64xf32>
    %249 = tpu.matmul %247, %248, %cst_288 {dimension_numbers = #tpu.dot_dimension_numbers<[1], [0], [0], [1], [0, 0, 1, 1], [], []>} : vector<2x256xf32>, vector<256x64xf32>, vector<2x64xf32> -> vector<2x64xf32>
    %c0_289 = arith.constant 0 : index
    %c0_290 = arith.constant 0 : index
    %250 = vector.load %arg8[%c0_289, %c0_290] : memref<1x64xf32, #tpu.memory_space<vmem>>, vector<1x64xf32>
    %251 = vector.broadcast %250 : vector<1x64xf32> to vector<2x64xf32>
    %252 = arith.addf %249, %251 : vector<2x64xf32>
    %cst_291 = arith.constant 0.000000e+00 : f32
    %253 = vector.broadcast %cst_291 : f32 to vector<2x64xf32>
    %254 = arith.maximumf %252, %253 : vector<2x64xf32>
    %c0_292 = arith.constant 0 : index
    %c0_293 = arith.constant 0 : index
    %255 = vector.load %arg9[%c0_292, %c0_293] : memref<64x32xf32, #tpu.memory_space<vmem>>, vector<64x32xf32>
    %cst_294 = arith.constant dense<0.000000e+00> : vector<2x32xf32>
    %256 = tpu.matmul %254, %255, %cst_294 {dimension_numbers = #tpu.dot_dimension_numbers<[1], [0], [0], [1], [0, 0, 1, 1], [], []>} : vector<2x64xf32>, vector<64x32xf32>, vector<2x32xf32> -> vector<2x32xf32>
    %c0_295 = arith.constant 0 : index
    %c0_296 = arith.constant 0 : index
    %257 = vector.load %arg10[%c0_295, %c0_296] : memref<1x32xf32, #tpu.memory_space<vmem>>, vector<1x32xf32>
    %258 = vector.broadcast %257 : vector<1x32xf32> to vector<2x32xf32>
    %259 = arith.addf %256, %258 : vector<2x32xf32>
    %cst_297 = arith.constant 0.000000e+00 : f32
    %260 = vector.broadcast %cst_297 : f32 to vector<2x32xf32>
    %261 = arith.maximumf %259, %260 : vector<2x32xf32>
    %c0_298 = arith.constant 0 : index
    %c0_299 = arith.constant 0 : index
    %262 = vector.load %arg11[%c0_298, %c0_299] : memref<32x4xf32, #tpu.memory_space<vmem>>, vector<32x4xf32>
    %cst_300 = arith.constant dense<0.000000e+00> : vector<2x4xf32>
    %263 = tpu.matmul %261, %262, %cst_300 {dimension_numbers = #tpu.dot_dimension_numbers<[1], [0], [0], [1], [0, 0, 1, 1], [], []>} : vector<2x32xf32>, vector<32x4xf32>, vector<2x4xf32> -> vector<2x4xf32>
    %c0_301 = arith.constant 0 : index
    %c0_302 = arith.constant 0 : index
    %264 = vector.load %arg12[%c0_301, %c0_302] : memref<1x4xf32, #tpu.memory_space<vmem>>, vector<1x4xf32>
    %265 = vector.broadcast %264 : vector<1x4xf32> to vector<2x4xf32>
    %266 = arith.addf %263, %265 : vector<2x4xf32>
    %c0_303 = arith.constant 0 : index
    %c0_304 = arith.constant 0 : index
    %267 = vector.load %arg13[%c0_303, %c0_304] : memref<2x4xf32, #tpu.memory_space<vmem>>, vector<2x4xf32>
    tpu.vector_store %arg13[%c0_303, %c0_304], %266 {strides = array<i32>} : memref<2x4xf32, #tpu.memory_space<vmem>>, vector<2x4xf32>,
    return
  }
}

</mosaic_0001>

<llo_original>
// kernel: conv_dqn_forward.1
$region0: #{conv_dqn_forward.1}
  #allocation0 [shape = 'u32[]', space=smem, size = 0x4, offset = 0x4, fixed_abs, tag = 'smem constant byte address 0x4 - core index']
  #allocation1 [shape = 'u32[72,128]{1,0:T(1,128)}', space=vmem, size = 0x9000, scoped, tag = 'internal scratch']
  #allocation2 [shape = 'f32[392,32]{1,0:T(8,128)}', space=vmem, size = 0x31000, scoped, tag = 'scratch operand']
  #allocation3 [shape = 'f32[98,512]{1,0:T(8,128)}', space=vmem, size = 0x34000, scoped, tag = 'scratch operand']
  #allocation4 [shape = 'f32[98,64]{1,0:T(8,128)}', space=vmem, size = 0xd000, scoped, tag = 'scratch operand']
  #allocation5 [shape = 'f32[98,576]{1,0:T(8,128)}', space=vmem, size = 0x41000, scoped, tag = 'scratch operand']
  #allocation6 [shape = 'f32[98,16]{1,0:T(8,128)}', space=vmem, size = 0xd000, scoped, tag = 'scratch operand']
  #allocation7 [shape = 'f32[2,256]{1,0:T(2,128)}', space=vmem, size = 0x800, scoped, tag = 'scratch operand']
  %s0 = inlined_call_operand.vmem [shape: f32[392,9], index: 0, kind: input, shape index: {}]
  %s1 = inlined_call_operand.vmem [shape: f32[9,32], index: 1, kind: input, shape index: {}]
  %s2 = inlined_call_operand.vmem [shape: f32[1,32], index: 2, kind: input, shape index: {}]
  %s3 = inlined_call_operand.vmem [shape: f32[512,64], index: 3, kind: input, shape index: {}]
  %s4 = inlined_call_operand.vmem [shape: f32[1,64], index: 4, kind: input, shape index: {}]
  %s5 = inlined_call_operand.vmem [shape: f32[576,16], index: 5, kind: input, shape index: {}]
  %s6 = inlined_call_operand.vmem [shape: f32[1,16], index: 6, kind: input, shape index: {}]
  %s7 = inlined_call_operand.vmem [shape: f32[256,64], index: 7, kind: input, shape index: {}]
  %s8 = inlined_call_operand.vmem [shape: f32[1,64], index: 8, kind: input, shape index: {}]
  %s9 = inlined_call_operand.vmem [shape: f32[64,32], index: 9, kind: input, shape index: {}]
  %s10 = inlined_call_operand.vmem [shape: f32[1,32], index: 10, kind: input, shape index: {}]
  %s11 = inlined_call_operand.vmem [shape: f32[32,4], index: 11, kind: input, shape index: {}]
  %s12 = inlined_call_operand.vmem [shape: f32[1,4], index: 12, kind: input, shape index: {}]
  %s13 = inlined_call_operand.hbm [shape: f32[2,4], index: 13, kind: output, shape index: {}]
  %s14 = sld [smem:[#allocation0]]
  $region62: #{conv_dqn_forward.1} parent=0
    _
  %s16 = ssub.s32 1, %s14
  %s17 = scalar_select 0, %s16, %s14
  $region1: #{conv_dqn_forward.1} parent=0
    #allocation8 [shape = 'u8[1024]{0}', space=vmem, size = 0x400, scoped, tag = 'output window, operand 0, single buffered']
    #allocation9 [shape = 's32[1]{0}', space=sflag, size = 0x4, scoped, tag = 'scoped memory for conv_dqn_forward.1']
    %18 = vsyncpa [#allocation9], 0
    // Predicated region
    $region2: #{conv_dqn_forward.1} parent=1 // pred_check
      _
    $region3: #{conv_dqn_forward.1} parent=1 // pred_check_branch
      %20 = sbr.rel (0) target = $region5
    $region4: #{conv_dqn_forward.1} parent=1 // pred_region
      _
    $region5: #{conv_dqn_forward.1} parent=1 // pred_fallthru
      _
    // Predicated region
    $region6: #{conv_dqn_forward.1} parent=1 // pred_check
      _
    $region7: #{conv_dqn_forward.1} parent=1 // pred_check_branch
      %22 = sbr.rel (0) target = $region9
    $region8: #{conv_dqn_forward.1} parent=1 // pred_region
      _
    $region9: #{conv_dqn_forward.1} parent=1 // pred_fallthru
      _
    // Predicated region
    $region10: #{conv_dqn_forward.1} parent=1 // pred_check
      _
    $region11: #{conv_dqn_forward.1} parent=1 // pred_check_branch
      %24 = sbr.rel (0) target = $region13
    $region12: #{conv_dqn_forward.1} parent=1 // pred_region
      _
    $region13: #{conv_dqn_forward.1} parent=1 // pred_fallthru
      _
    // Predicated region
    $region14: #{conv_dqn_forward.1} parent=1 // pred_check
      _
    $region15: #{conv_dqn_forward.1} parent=1 // pred_check_branch
      %26 = sbr.rel (0) target = $region17
    $region16: #{conv_dqn_forward.1} parent=1 // pred_region
      _
    $region17: #{conv_dqn_forward.1} parent=1 // pred_fallthru
      _
    // Predicated region
    $region18: #{conv_dqn_forward.1} parent=1 // pred_check
      _
    $region19: #{conv_dqn_forward.1} parent=1 // pred_check_branch
      %28 = sbr.rel (0) target = $region21
    $region20: #{conv_dqn_forward.1} parent=1 // pred_region
      _
    $region21: #{conv_dqn_forward.1} parent=1 // pred_fallthru
      _
    // Predicated region
    $region22: #{conv_dqn_forward.1} parent=1 // pred_check
      _
    $region23: #{conv_dqn_forward.1} parent=1 // pred_check_branch
      %30 = sbr.rel (0) target = $region25
    $region24: #{conv_dqn_forward.1} parent=1 // pred_region
      _
    $region25: #{conv_dqn_forward.1} parent=1 // pred_fallthru
      _
    // Predicated region
    $region26: #{conv_dqn_forward.1} parent=1 // pred_check
      _
    $region27: #{conv_dqn_forward.1} parent=1 // pred_check_branch
      %32 = sbr.rel (0) target = $region29
    $region28: #{conv_dqn_forward.1} parent=1 // pred_region
      _
    $region29: #{conv_dqn_forward.1} parent=1 // pred_fallthru
      _
    // Predicated region
    $region30: #{conv_dqn_forward.1} parent=1 // pred_check
      _
    $region31: #{conv_dqn_forward.1} parent=1 // pred_check_branch
      %34 = sbr.rel (0) target = $region33
    $region32: #{conv_dqn_forward.1} parent=1 // pred_region
      _
    $region33: #{conv_dqn_forward.1} parent=1 // pred_fallthru
      _
    // Predicated region
    $region34: #{conv_dqn_forward.1} parent=1 // pred_check
      _
    $region35: #{conv_dqn_forward.1} parent=1 // pred_check_branch
      %36 = sbr.rel (0) target = $region37
    $region36: #{conv_dqn_forward.1} parent=1 // pred_region
      _
    $region37: #{conv_dqn_forward.1} parent=1 // pred_fallthru
      _
    // Predicated region
    $region38: #{conv_dqn_forward.1} parent=1 // pred_check
      _
    $region39: #{conv_dqn_forward.1} parent=1 // pred_check_branch
      %38 = sbr.rel (0) target = $region41
    $region40: #{conv_dqn_forward.1} parent=1 // pred_region
      _
    $region41: #{conv_dqn_forward.1} parent=1 // pred_fallthru
      _
    // Predicated region
    $region42: #{conv_dqn_forward.1} parent=1 // pred_check
      _
    $region43: #{conv_dqn_forward.1} parent=1 // pred_check_branch
      %40 = sbr.rel (0) target = $region45
    $region44: #{conv_dqn_forward.1} parent=1 // pred_region
      _
    $region45: #{conv_dqn_forward.1} parent=1 // pred_fallthru
      _
    // Predicated region
    $region46: #{conv_dqn_forward.1} parent=1 // pred_check
      _
    $region47: #{conv_dqn_forward.1} parent=1 // pred_check_branch
      %42 = sbr.rel (0) target = $region49
    $region48: #{conv_dqn_forward.1} parent=1 // pred_region
      _
    $region49: #{conv_dqn_forward.1} parent=1 // pred_fallthru
      _
    // Predicated region
    $region50: #{conv_dqn_forward.1} parent=1 // pred_check
      _
    $region51: #{conv_dqn_forward.1} parent=1 // pred_check_branch
      %44 = sbr.rel (0) target = $region53
    $region52: #{conv_dqn_forward.1} parent=1 // pred_region
      _
    $region53: #{conv_dqn_forward.1} parent=1 // pred_fallthru
      _
    %45 = vst [vmem:[#allocation3] sm:$0xff] 0.0
    %46 = vst [vmem:[#allocation3 + $0x8] sm:$0xff] 0.0
    %47 = vst [vmem:[#allocation3 + $0x10] sm:$0xff] 0.0
    %48 = vst [vmem:[#allocation3 + $0x18] sm:$0xff] 0.0
    %49 = vst [vmem:[#allocation3 + $0x20] sm:$0xff] 0.0
    %50 = vst [vmem:[#allocation3 + $0x28] sm:$0xff] 0.0
    %51 = vst [vmem:[#allocation3 + $0x30] sm:$0xff] 0.0
    %52 = vst [vmem:[#allocation3 + $0x38] sm:$0xff] 0.0
    %53 = vst [vmem:[#allocation3 + $0x40] sm:$0xff] 0.0
    %54 = vst [vmem:[#allocation3 + $0x48] sm:$0xff] 0.0
    %55 = vst [vmem:[#allocation3 + $0x50] sm:$0xff] 0.0
    %56 = vst [vmem:[#allocation3 + $0x58] sm:$0xff] 0.0
    %57 = vst [vmem:[#allocation3 + $0x60] sm:$0xff] 0.0
    %58 = vst [vmem:[#allocation3 + $0x68] sm:$0xff] 0.0
    %59 = vst [vmem:[#allocation3 + $0x70] sm:$0xff] 0.0
    %60 = vst [vmem:[#allocation3 + $0x78] sm:$0xff] 0.0
    %61 = vst [vmem:[#allocation3 + $0x80] sm:$0xff] 0.0
    %62 = vst [vmem:[#allocation3 + $0x88] sm:$0xff] 0.0
    %63 = vst [vmem:[#allocation3 + $0x90] sm:$0xff] 0.0
    %64 = vst [vmem:[#allocation3 + $0x98] sm:$0xff] 0.0
    %65 = vst [vmem:[#allocation3 + $0xa0] sm:$0xff] 0.0
    %66 = vst [vmem:[#allocation3 + $0xa8] sm:$0xff] 0.0
    %67 = vst [vmem:[#allocation3 + $0xb0] sm:$0xff] 0.0
    %68 = vst [vmem:[#allocation3 + $0xb8] sm:$0xff] 0.0
    %69 = vst [vmem:[#allocation3 + $0xc0] sm:$0xff] 0.0
    %70 = vst [vmem:[#allocation3 + $0xc8] sm:$0xff] 0.0
    %71 = vst [vmem:[#allocation3 + $0xd0] sm:$0xff] 0.0
    %72 = vst [vmem:[#allocation3 + $0xd8] sm:$0xff] 0.0
    %73 = vst [vmem:[#allocation3 + $0xe0] sm:$0xff] 0.0
    %74 = vst [vmem:[#allocation3 + $0xe8] sm:$0xff] 0.0
    %75 = vst [vmem:[#allocation3 + $0xf0] sm:$0xff] 0.0
    %76 = vst [vmem:[#allocation3 + $0xf8] sm:$0xff] 0.0
    %77 = vst [vmem:[#allocation3 + $0x100] sm:$0xff] 0.0
    %78 = vst [vmem:[#allocation3 + $0x108] sm:$0xff] 0.0
    %79 = vst [vmem:[#allocation3 + $0x110] sm:$0xff] 0.0
    %80 = vst [vmem:[#allocation3 + $0x118] sm:$0xff] 0.0
    %81 = vst [vmem:[#allocation3 + $0x120] sm:$0xff] 0.0
    %82 = vst [vmem:[#allocation3 + $0x128] sm:$0xff] 0.0
    %83 = vst [vmem:[#allocation3 + $0x130] sm:$0xff] 0.0
    %84 = vst [vmem:[#allocation3 + $0x138] sm:$0xff] 0.0
    %85 = vst [vmem:[#allocation3 + $0x140] sm:$0xff] 0.0
    %86 = vst [vmem:[#allocation3 + $0x148] sm:$0xff] 0.0
    %87 = vst [vmem:[#allocation3 + $0x150] sm:$0xff] 0.0
    %88 = vst [vmem:[#allocation3 + $0x158] sm:$0xff] 0.0
    %89 = vst [vmem:[#allocation3 + $0x160] sm:$0xff] 0.0
    %90 = vst [vmem:[#allocation3 + $0x168] sm:$0xff] 0.0
    %91 = vst [vmem:[#allocation3 + $0x170] sm:$0xff] 0.0
    %92 = vst [vmem:[#allocation3 + $0x178] sm:$0xff] 0.0
    %93 = vst [vmem:[#allocation3 + $0x180] sm:$0x3] 0.0
    %94 = vst [vmem:[#allocation3 + $0x188] sm:$0x3] 0.0
    %95 = vst [vmem:[#allocation3 + $0x190] sm:$0x3] 0.0
    %96 = vst [vmem:[#allocation3 + $0x198] sm:$0x3] 0.0
    %97 = vst [vmem:[#allocation5] sm:$0xff] 0.0
    %98 = vst [vmem:[#allocation5 + $0x8] sm:$0xff] 0.0
    %99 = vst [vmem:[#allocation5 + $0x10] sm:$0xff] 0.0
    %100 = vst [vmem:[#allocation5 + $0x18] sm:$0xff] 0.0
    %vm101 = vcmask 523264
    %102 = vst.msk [vmem:[#allocation5 + $0x20] sm:$0xff] %vm101, 0.0
    %103 = vst [vmem:[#allocation5 + $0x28] sm:$0xff] 0.0
    %104 = vst [vmem:[#allocation5 + $0x30] sm:$0xff] 0.0
    %105 = vst [vmem:[#allocation5 + $0x38] sm:$0xff] 0.0
    %106 = vst [vmem:[#allocation5 + $0x40] sm:$0xff] 0.0
    %107 = vst.msk [vmem:[#allocation5 + $0x48] sm:$0xff] %vm101, 0.0
    %108 = vst [vmem:[#allocation5 + $0x50] sm:$0xff] 0.0
    %109 = vst [vmem:[#allocation5 + $0x58] sm:$0xff] 0.0
    %110 = vst [vmem:[#allocation5 + $0x60] sm:$0xff] 0.0
    %111 = vst [vmem:[#allocation5 + $0x68] sm:$0xff] 0.0
    %112 = vst.msk [vmem:[#allocation5 + $0x70] sm:$0xff] %vm101, 0.0
    %113 = vst [vmem:[#allocation5 + $0x78] sm:$0xff] 0.0
    %114 = vst [vmem:[#allocation5 + $0x80] sm:$0xff] 0.0
    %115 = vst [vmem:[#allocation5 + $0x88] sm:$0xff] 0.0
    %116 = vst [vmem:[#allocation5 + $0x90] sm:$0xff] 0.0
    %117 = vst.msk [vmem:[#allocation5 + $0x98] sm:$0xff] %vm101, 0.0
    %118 = vst [vmem:[#allocation5 + $0xa0] sm:$0xff] 0.0
    %119 = vst [vmem:[#allocation5 + $0xa8] sm:$0xff] 0.0
    %120 = vst [vmem:[#allocation5 + $0xb0] sm:$0xff] 0.0
    %121 = vst [vmem:[#allocation5 + $0xb8] sm:$0xff] 0.0
    %122 = vst.msk [vmem:[#allocation5 + $0xc0] sm:$0xff] %vm101, 0.0
    %123 = vst [vmem:[#allocation5 + $0xc8] sm:$0xff] 0.0
    %124 = vst [vmem:[#allocation5 + $0xd0] sm:$0xff] 0.0
    %125 = vst [vmem:[#allocation5 + $0xd8] sm:$0xff] 0.0
    %126 = vst [vmem:[#allocation5 + $0xe0] sm:$0xff] 0.0
    %127 = vst.msk [vmem:[#allocation5 + $0xe8] sm:$0xff] %vm101, 0.0
    %128 = vst [vmem:[#allocation5 + $0xf0] sm:$0xff] 0.0
    %129 = vst [vmem:[#allocation5 + $0xf8] sm:$0xff] 0.0
    %130 = vst [vmem:[#allocation5 + $0x100] sm:$0xff] 0.0
    %131 = vst [vmem:[#allocation5 + $0x108] sm:$0xff] 0.0
    %132 = vst.msk [vmem:[#allocation5 + $0x110] sm:$0xff] %vm101, 0.0
    %133 = vst [vmem:[#allocation5 + $0x118] sm:$0xff] 0.0
    %134 = vst [vmem:[#allocation5 + $0x120] sm:$0xff] 0.0
    %135 = vst [vmem:[#allocation5 + $0x128] sm:$0xff] 0.0
    %136 = vst [vmem:[#allocation5 + $0x130] sm:$0xff] 0.0
    %137 = vst.msk [vmem:[#allocation5 + $0x138] sm:$0xff] %vm101, 0.0
    %138 = vst [vmem:[#allocation5 + $0x140] sm:$0xff] 0.0
    %139 = vst [vmem:[#allocation5 + $0x148] sm:$0xff] 0.0
    %140 = vst [vmem:[#allocation5 + $0x150] sm:$0xff] 0.0
    %141 = vst [vmem:[#allocation5 + $0x158] sm:$0xff] 0.0
    %142 = vst.msk [vmem:[#allocation5 + $0x160] sm:$0xff] %vm101, 0.0
    %143 = vst [vmem:[#allocation5 + $0x168] sm:$0xff] 0.0
    %144 = vst [vmem:[#allocation5 + $0x170] sm:$0xff] 0.0
    %145 = vst [vmem:[#allocation5 + $0x178] sm:$0xff] 0.0
    %146 = vst [vmem:[#allocation5 + $0x180] sm:$0xff] 0.0
    %147 = vst.msk [vmem:[#allocation5 + $0x188] sm:$0xff] %vm101, 0.0
    %148 = vst [vmem:[#allocation5 + $0x190] sm:$0xff] 0.0
    %149 = vst [vmem:[#allocation5 + $0x198] sm:$0xff] 0.0
    %150 = vst [vmem:[#allocation5 + $0x1a0] sm:$0xff] 0.0
    %151 = vst [vmem:[#allocation5 + $0x1a8] sm:$0xff] 0.0
    %152 = vst.msk [vmem:[#allocation5 + $0x1b0] sm:$0xff] %vm101, 0.0
    %153 = vst [vmem:[#allocation5 + $0x1b8] sm:$0xff] 0.0
    %154 = vst [vmem:[#allocation5 + $0x1c0] sm:$0xff] 0.0
    %155 = vst [vmem:[#allocation5 + $0x1c8] sm:$0xff] 0.0
    %156 = vst [vmem:[#allocation5 + $0x1d0] sm:$0xff] 0.0
    %157 = vst.msk [vmem:[#allocation5 + $0x1d8] sm:$0xff] %vm101, 0.0
    %158 = vst [vmem:[#allocation5 + $0x1e0] sm:$0x3] 0.0
    %159 = vst [vmem:[#allocation5 + $0x1e8] sm:$0x3] 0.0
    %160 = vst [vmem:[#allocation5 + $0x1f0] sm:$0x3] 0.0
    %161 = vst [vmem:[#allocation5 + $0x1f8] sm:$0x3] 0.0
    %vm162 = vcmask 517120
    %163 = vst.msk [vmem:[#allocation5 + $0x200] sm:$0x3] %vm162, 0.0
    %v164 = vld [vmem:[%s0] sm:$0xff]
    %v165 = vld [vmem:[%s0 + $0x8] sm:$0xff]
    %v166 = vld [vmem:[%s0 + $0x10] sm:$0xff]
    %v167 = vld [vmem:[%s0 + $0x18] sm:$0xff]
    %v168 = vld [vmem:[%s0 + $0x20] sm:$0xff]
    %v169 = vld [vmem:[%s0 + $0x28] sm:$0xff]
    %v170 = vld [vmem:[%s0 + $0x30] sm:$0xff]
    %v171 = vld [vmem:[%s0 + $0x38] sm:$0xff]
    %v172 = vld [vmem:[%s0 + $0x40] sm:$0xff]
    %v173 = vld [vmem:[%s0 + $0x48] sm:$0xff]
    %v174 = vld [vmem:[%s0 + $0x50] sm:$0xff]
    %v175 = vld [vmem:[%s0 + $0x58] sm:$0xff]
    %v176 = vld [vmem:[%s0 + $0x60] sm:$0xff]
    %v177 = vld [vmem:[%s0 + $0x68] sm:$0xff]
    %v178 = vld [vmem:[%s0 + $0x70] sm:$0xff]
    %v179 = vld [vmem:[%s0 + $0x78] sm:$0xff]
    %v180 = vld [vmem:[%s0 + $0x80] sm:$0xff]
    %v181 = vld [vmem:[%s0 + $0x88] sm:$0xff]
    %v182 = vld [vmem:[%s0 + $0x90] sm:$0xff]
    %v183 = vld [vmem:[%s0 + $0x98] sm:$0xff]
    %v184 = vld [vmem:[%s0 + $0xa0] sm:$0xff]
    %v185 = vld [vmem:[%s0 + $0xa8] sm:$0xff]
    %v186 = vld [vmem:[%s0 + $0xb0] sm:$0xff]
    %v187 = vld [vmem:[%s0 + $0xb8] sm:$0xff]
    %v188 = vld [vmem:[%s0 + $0xc0] sm:$0xff]
    %v189 = vld [vmem:[%s0 + $0xc8] sm:$0xff]
    %v190 = vld [vmem:[%s0 + $0xd0] sm:$0xff]
    %v191 = vld [vmem:[%s0 + $0xd8] sm:$0xff]
    %v192 = vld [vmem:[%s0 + $0xe0] sm:$0xff]
    %v193 = vld [vmem:[%s0 + $0xe8] sm:$0xff]
    %v194 = vld [vmem:[%s0 + $0xf0] sm:$0xff]
    %v195 = vld [vmem:[%s0 + $0xf8] sm:$0xff]
    %v196 = vld [vmem:[%s0 + $0x100] sm:$0xff]
    %v197 = vld [vmem:[%s0 + $0x108] sm:$0xff]
    %v198 = vld [vmem:[%s0 + $0x110] sm:$0xff]
    %v199 = vld [vmem:[%s0 + $0x118] sm:$0xff]
    %v200 = vld [vmem:[%s0 + $0x120] sm:$0xff]
    %v201 = vld [vmem:[%s0 + $0x128] sm:$0xff]
    %v202 = vld [vmem:[%s0 + $0x130] sm:$0xff]
    %v203 = vld [vmem:[%s0 + $0x138] sm:$0xff]
    %v204 = vld [vmem:[%s0 + $0x140] sm:$0xff]
    %v205 = vld [vmem:[%s0 + $0x148] sm:$0xff]
    %v206 = vld [vmem:[%s0 + $0x150] sm:$0xff]
    %v207 = vld [vmem:[%s0 + $0x158] sm:$0xff]
    %v208 = vld [vmem:[%s0 + $0x160] sm:$0xff]
    %v209 = vld [vmem:[%s0 + $0x168] sm:$0xff]
    %v210 = vld [vmem:[%s0 + $0x170] sm:$0xff]
    %v211 = vld [vmem:[%s0 + $0x178] sm:$0xff]
    %v212 = vld [vmem:[%s0 + $0x180] sm:$0xff]
    %v213 = vld [vmem:[%s1] sm:$0xff]
    %v214 = vld [vmem:[%s1 + $0x8] sm:$0x1]
    %216 = vset.pattern.permute.xlu0 0
    %217 = vperm.xlu0 %216, %v164
    %v218 = vpop.permute.xlu0 %217
    %221 = vset.pattern.permute.xlu0 0
    %222 = vperm.xlu0 %221, %v165
    %v223 = vpop.permute.xlu0 %222
    %226 = vset.pattern.permute.xlu0 0
    %227 = vperm.xlu0 %226, %v166
    %v228 = vpop.permute.xlu0 %227
    %231 = vset.pattern.permute.xlu0 0
    %232 = vperm.xlu0 %231, %v167
    %v233 = vpop.permute.xlu0 %232
    %236 = vset.pattern.permute.xlu0 0
    %237 = vperm.xlu0 %236, %v168
    %v238 = vpop.permute.xlu0 %237
    %241 = vset.pattern.permute.xlu0 0
    %242 = vperm.xlu0 %241, %v169
    %v243 = vpop.permute.xlu0 %242
    %246 = vset.pattern.permute.xlu0 0
    %247 = vperm.xlu0 %246, %v170
    %v248 = vpop.permute.xlu0 %247
    %251 = vset.pattern.permute.xlu0 0
    %252 = vperm.xlu0 %251, %v171
    %v253 = vpop.permute.xlu0 %252
    %256 = vset.pattern.permute.xlu0 0
    %257 = vperm.xlu0 %256, %v172
    %v258 = vpop.permute.xlu0 %257
    %261 = vset.pattern.permute.xlu0 0
    %262 = vperm.xlu0 %261, %v173
    %v263 = vpop.permute.xlu0 %262
    %266 = vset.pattern.permute.xlu0 0
    %267 = vperm.xlu0 %266, %v174
    %v268 = vpop.permute.xlu0 %267
    %271 = vset.pattern.permute.xlu0 0
    %272 = vperm.xlu0 %271, %v175
    %v273 = vpop.permute.xlu0 %272
    %276 = vset.pattern.permute.xlu0 0
    %277 = vperm.xlu0 %276, %v176
    %v278 = vpop.permute.xlu0 %277
    %281 = vset.pattern.permute.xlu0 0
    %282 = vperm.xlu0 %281, %v177
    %v283 = vpop.permute.xlu0 %282
    %286 = vset.pattern.permute.xlu0 0
    %287 = vperm.xlu0 %286, %v178
    %v288 = vpop.permute.xlu0 %287
    %291 = vset.pattern.permute.xlu0 0
    %292 = vperm.xlu0 %291, %v179
    %v293 = vpop.permute.xlu0 %292
    %296 = vset.pattern.permute.xlu0 0
    %297 = vperm.xlu0 %296, %v180
    %v298 = vpop.permute.xlu0 %297
    %301 = vset.pattern.permute.xlu0 0
    %302 = vperm.xlu0 %301, %v181
    %v303 = vpop.permute.xlu0 %302
    %306 = vset.pattern.permute.xlu0 0
    %307 = vperm.xlu0 %306, %v182
    %v308 = vpop.permute.xlu0 %307
    %311 = vset.pattern.permute.xlu0 0
    %312 = vperm.xlu0 %311, %v183
    %v313 = vpop.permute.xlu0 %312
    %316 = vset.pattern.permute.xlu0 0
    %317 = vperm.xlu0 %316, %v184
    %v318 = vpop.permute.xlu0 %317
    %321 = vset.pattern.permute.xlu0 0
    %322 = vperm.xlu0 %321, %v185
    %v323 = vpop.permute.xlu0 %322
    %326 = vset.pattern.permute.xlu0 0
    %327 = vperm.xlu0 %326, %v186
    %v328 = vpop.permute.xlu0 %327
    %331 = vset.pattern.permute.xlu0 0
    %332 = vperm.xlu0 %331, %v187
    %v333 = vpop.permute.xlu0 %332
    %336 = vset.pattern.permute.xlu0 0
    %337 = vperm.xlu0 %336, %v188
    %v338 = vpop.permute.xlu0 %337
    %341 = vset.pattern.permute.xlu0 0
    %342 = vperm.xlu0 %341, %v189
    %v343 = vpop.permute.xlu0 %342
    %346 = vset.pattern.permute.xlu0 0
    %347 = vperm.xlu0 %346, %v190
    %v348 = vpop.permute.xlu0 %347
    %351 = vset.pattern.permute.xlu0 0
    %352 = vperm.xlu0 %351, %v191
    %v353 = vpop.permute.xlu0 %352
    %356 = vset.pattern.permute.xlu0 0
    %357 = vperm.xlu0 %356, %v192
    %v358 = vpop.permute.xlu0 %357
    %361 = vset.pattern.permute.xlu0 0
    %362 = vperm.xlu0 %361, %v193
    %v363 = vpop.permute.xlu0 %362
    %366 = vset.pattern.permute.xlu0 0
    %367 = vperm.xlu0 %366, %v194
    %v368 = vpop.permute.xlu0 %367
    %371 = vset.pattern.permute.xlu0 0
    %372 = vperm.xlu0 %371, %v195
    %v373 = vpop.permute.xlu0 %372
    %376 = vset.pattern.permute.xlu0 0
    %377 = vperm.xlu0 %376, %v196
    %v378 = vpop.permute.xlu0 %377
    %381 = vset.pattern.permute.xlu0 0
    %382 = vperm.xlu0 %381, %v197
    %v383 = vpop.permute.xlu0 %382
    %386 = vset.pattern.permute.xlu0 0
    %387 = vperm.xlu0 %386, %v198
    %v388 = vpop.permute.xlu0 %387
    %391 = vset.pattern.permute.xlu0 0
    %392 = vperm.xlu0 %391, %v199
    %v393 = vpop.permute.xlu0 %392
    %396 = vset.pattern.permute.xlu0 0
    %397 = vperm.xlu0 %396, %v200
    %v398 = vpop.permute.xlu0 %397
    %401 = vset.pattern.permute.xlu0 0
    %402 = vperm.xlu0 %401, %v201
    %v403 = vpop.permute.xlu0 %402
    %406 = vset.pattern.permute.xlu0 0
    %407 = vperm.xlu0 %406, %v202
    %v408 = vpop.permute.xlu0 %407
    %411 = vset.pattern.permute.xlu0 0
    %412 = vperm.xlu0 %411, %v203
    %v413 = vpop.permute.xlu0 %412
    %416 = vset.pattern.permute.xlu0 0
    %417 = vperm.xlu0 %416, %v204
    %v418 = vpop.permute.xlu0 %417
    %421 = vset.pattern.permute.xlu0 0
    %422 = vperm.xlu0 %421, %v205
    %v423 = vpop.permute.xlu0 %422
    %426 = vset.pattern.permute.xlu0 0
    %427 = vperm.xlu0 %426, %v206
    %v428 = vpop.permute.xlu0 %427
    %431 = vset.pattern.permute.xlu0 0
    %432 = vperm.xlu0 %431, %v207
    %v433 = vpop.permute.xlu0 %432
    %436 = vset.pattern.permute.xlu0 0
    %437 = vperm.xlu0 %436, %v208
    %v438 = vpop.permute.xlu0 %437
    %441 = vset.pattern.permute.xlu0 0
    %442 = vperm.xlu0 %441, %v209
    %v443 = vpop.permute.xlu0 %442
    %446 = vset.pattern.permute.xlu0 0
    %447 = vperm.xlu0 %446, %v210
    %v448 = vpop.permute.xlu0 %447
    %451 = vset.pattern.permute.xlu0 0
    %452 = vperm.xlu0 %451, %v211
    %v453 = vpop.permute.xlu0 %452
    %456 = vset.pattern.permute.xlu0 0
    %457 = vperm.xlu0 %456, %v212
    %v458 = vpop.permute.xlu0 %457
    %v460 = vperm.slane %v213, 0
    %v461 = vmul.f32 %v218, %v460
    %v462 = vmul.f32 %v223, %v460
    %v463 = vmul.f32 %v228, %v460
    %v464 = vmul.f32 %v233, %v460
    %v465 = vmul.f32 %v238, %v460
    %v466 = vmul.f32 %v243, %v460
    %v467 = vmul.f32 %v248, %v460
    %v468 = vmul.f32 %v253, %v460
    %v469 = vmul.f32 %v258, %v460
    %v470 = vmul.f32 %v263, %v460
    %v471 = vmul.f32 %v268, %v460
    %v472 = vmul.f32 %v273, %v460
    %v473 = vmul.f32 %v278, %v460
    %v474 = vmul.f32 %v283, %v460
    %v475 = vmul.f32 %v288, %v460
    %v476 = vmul.f32 %v293, %v460
    %v477 = vmul.f32 %v298, %v460
    %v478 = vmul.f32 %v303, %v460
    %v479 = vmul.f32 %v308, %v460
    %v480 = vmul.f32 %v313, %v460
    %v481 = vmul.f32 %v318, %v460
    %v482 = vmul.f32 %v323, %v460
    %v483 = vmul.f32 %v328, %v460
    %v484 = vmul.f32 %v333, %v460
    %v485 = vmul.f32 %v338, %v460
    %v486 = vmul.f32 %v343, %v460
    %v487 = vmul.f32 %v348, %v460
    %v488 = vmul.f32 %v353, %v460
    %v489 = vmul.f32 %v358, %v460
    %v490 = vmul.f32 %v363, %v460
    %v491 = vmul.f32 %v368, %v460
    %v492 = vmul.f32 %v373, %v460
    %v493 = vmul.f32 %v378, %v460
    %v494 = vmul.f32 %v383, %v460
    %v495 = vmul.f32 %v388, %v460
    %v496 = vmul.f32 %v393, %v460
    %v497 = vmul.f32 %v398, %v460
    %v498 = vmul.f32 %v403, %v460
    %v499 = vmul.f32 %v408, %v460
    %v500 = vmul.f32 %v413, %v460
    %v501 = vmul.f32 %v418, %v460
    %v502 = vmul.f32 %v423, %v460
    %v503 = vmul.f32 %v428, %v460
    %v504 = vmul.f32 %v433, %v460
    %v505 = vmul.f32 %v438, %v460
    %v506 = vmul.f32 %v443, %v460
    %v507 = vmul.f32 %v448, %v460
    %v508 = vmul.f32 %v453, %v460
    %v509 = vmul.f32 %v458, %v460
    %510 = vset.pattern.permute.xlu0 1
    %511 = vperm.xlu0 %510, %v164
    %v512 = vpop.permute.xlu0 %511
    %514 = vset.pattern.permute.xlu0 1
    %515 = vperm.xlu0 %514, %v165
    %v516 = vpop.permute.xlu0 %515
    %518 = vset.pattern.permute.xlu0 1
    %519 = vperm.xlu0 %518, %v166
    %v520 = vpop.permute.xlu0 %519
    %522 = vset.pattern.permute.xlu0 1
    %523 = vperm.xlu0 %522, %v167
    %v524 = vpop.permute.xlu0 %523
    %526 = vset.pattern.permute.xlu0 1
    %527 = vperm.xlu0 %526, %v168
    %v528 = vpop.permute.xlu0 %527
    %530 = vset.pattern.permute.xlu0 1
    %531 = vperm.xlu0 %530, %v169
    %v532 = vpop.permute.xlu0 %531
    %534 = vset.pattern.permute.xlu0 1
    %535 = vperm.xlu0 %534, %v170
    %v536 = vpop.permute.xlu0 %535
    %538 = vset.pattern.permute.xlu0 1
    %539 = vperm.xlu0 %538, %v171
    %v540 = vpop.permute.xlu0 %539
    %542 = vset.pattern.permute.xlu0 1
    %543 = vperm.xlu0 %542, %v172
    %v544 = vpop.permute.xlu0 %543
    %546 = vset.pattern.permute.xlu0 1
    %547 = vperm.xlu0 %546, %v173
    %v548 = vpop.permute.xlu0 %547
    %550 = vset.pattern.permute.xlu0 1
    %551 = vperm.xlu0 %550, %v174
    %v552 = vpop.permute.xlu0 %551
    %554 = vset.pattern.permute.xlu0 1
    %555 = vperm.xlu0 %554, %v175
    %v556 = vpop.permute.xlu0 %555
    %558 = vset.pattern.permute.xlu0 1
    %559 = vperm.xlu0 %558, %v176
    %v560 = vpop.permute.xlu0 %559
    %562 = vset.pattern.permute.xlu0 1
    %563 = vperm.xlu0 %562, %v177
    %v564 = vpop.permute.xlu0 %563
    %566 = vset.pattern.permute.xlu0 1
    %567 = vperm.xlu0 %566, %v178
    %v568 = vpop.permute.xlu0 %567
    %570 = vset.pattern.permute.xlu0 1
    %571 = vperm.xlu0 %570, %v179
    %v572 = vpop.permute.xlu0 %571
    %574 = vset.pattern.permute.xlu0 1
    %575 = vperm.xlu0 %574, %v180
    %v576 = vpop.permute.xlu0 %575
    %578 = vset.pattern.permute.xlu0 1
    %579 = vperm.xlu0 %578, %v181
    %v580 = vpop.permute.xlu0 %579
    %582 = vset.pattern.permute.xlu0 1
    %583 = vperm.xlu0 %582, %v182
    %v584 = vpop.permute.xlu0 %583
    %586 = vset.pattern.permute.xlu0 1
    %587 = vperm.xlu0 %586, %v183
    %v588 = vpop.permute.xlu0 %587
    %590 = vset.pattern.permute.xlu0 1
    %591 = vperm.xlu0 %590, %v184
    %v592 = vpop.permute.xlu0 %591
    %594 = vset.pattern.permute.xlu0 1
    %595 = vperm.xlu0 %594, %v185
    %v596 = vpop.permute.xlu0 %595
    %598 = vset.pattern.permute.xlu0 1
    %599 = vperm.xlu0 %598, %v186
    %v600 = vpop.permute.xlu0 %599
    %602 = vset.pattern.permute.xlu0 1
    %603 = vperm.xlu0 %602, %v187
    %v604 = vpop.permute.xlu0 %603
    %606 = vset.pattern.permute.xlu0 1
    %607 = vperm.xlu0 %606, %v188
    %v608 = vpop.permute.xlu0 %607
    %610 = vset.pattern.permute.xlu0 1
    %611 = vperm.xlu0 %610, %v189
    %v612 = vpop.permute.xlu0 %611
    %614 = vset.pattern.permute.xlu0 1
    %615 = vperm.xlu0 %614, %v190
    %v616 = vpop.permute.xlu0 %615
    %618 = vset.pattern.permute.xlu0 1
    %619 = vperm.xlu0 %618, %v191
    %v620 = vpop.permute.xlu0 %619
    %622 = vset.pattern.permute.xlu0 1
    %623 = vperm.xlu0 %622, %v192
    %v624 = vpop.permute.xlu0 %623
    %626 = vset.pattern.permute.xlu0 1
    %627 = vperm.xlu0 %626, %v193
    %v628 = vpop.permute.xlu0 %627
    %630 = vset.pattern.permute.xlu0 1
    %631 = vperm.xlu0 %630, %v194
    %v632 = vpop.permute.xlu0 %631
    %634 = vset.pattern.permute.xlu0 1
    %635 = vperm.xlu0 %634, %v195
    %v636 = vpop.permute.xlu0 %635
    %638 = vset.pattern.permute.xlu0 1
    %639 = vperm.xlu0 %638, %v196
    %v640 = vpop.permute.xlu0 %639
    %642 = vset.pattern.permute.xlu0 1
    %643 = vperm.xlu0 %642, %v197
    %v644 = vpop.permute.xlu0 %643
    %646 = vset.pattern.permute.xlu0 1
    %647 = vperm.xlu0 %646, %v198
    %v648 = vpop.permute.xlu0 %647
    %650 = vset.pattern.permute.xlu0 1
    %651 = vperm.xlu0 %650, %v199
    %v652 = vpop.permute.xlu0 %651
    %654 = vset.pattern.permute.xlu0 1
    %655 = vperm.xlu0 %654, %v200
    %v656 = vpop.permute.xlu0 %655
    %658 = vset.pattern.permute.xlu0 1
    %659 = vperm.xlu0 %658, %v201
    %v660 = vpop.permute.xlu0 %659
    %662 = vset.pattern.permute.xlu0 1
    %663 = vperm.xlu0 %662, %v202
    %v664 = vpop.permute.xlu0 %663
    %666 = vset.pattern.permute.xlu0 1
    %667 = vperm.xlu0 %666, %v203
    %v668 = vpop.permute.xlu0 %667
    %670 = vset.pattern.permute.xlu0 1
    %671 = vperm.xlu0 %670, %v204
    %v672 = vpop.permute.xlu0 %671
    %674 = vset.pattern.permute.xlu0 1
    %675 = vperm.xlu0 %674, %v205
    %v676 = vpop.permute.xlu0 %675
    %678 = vset.pattern.permute.xlu0 1
    %679 = vperm.xlu0 %678, %v206
    %v680 = vpop.permute.xlu0 %679
    %682 = vset.pattern.permute.xlu0 1
    %683 = vperm.xlu0 %682, %v207
    %v684 = vpop.permute.xlu0 %683
    %686 = vset.pattern.permute.xlu0 1
    %687 = vperm.xlu0 %686, %v208
    %v688 = vpop.permute.xlu0 %687
    %690 = vset.pattern.permute.xlu0 1
    %691 = vperm.xlu0 %690, %v209
    %v692 = vpop.permute.xlu0 %691
    %694 = vset.pattern.permute.xlu0 1
    %695 = vperm.xlu0 %694, %v210
    %v696 = vpop.permute.xlu0 %695
    %698 = vset.pattern.permute.xlu0 1
    %699 = vperm.xlu0 %698, %v211
    %v700 = vpop.permute.xlu0 %699
    %702 = vset.pattern.permute.xlu0 1
    %703 = vperm.xlu0 %702, %v212
    %v704 = vpop.permute.xlu0 %703
    %v706 = vperm.slane %v213, 1
    %v707 = vmul.f32 %v512, %v706
    %v708 = vmul.f32 %v516, %v706
    %v709 = vmul.f32 %v520, %v706
    %v710 = vmul.f32 %v524, %v706
    %v711 = vmul.f32 %v528, %v706
    %v712 = vmul.f32 %v532, %v706
    %v713 = vmul.f32 %v536, %v706
    %v714 = vmul.f32 %v540, %v706
    %v715 = vmul.f32 %v544, %v706
    %v716 = vmul.f32 %v548, %v706
    %v717 = vmul.f32 %v552, %v706
    %v718 = vmul.f32 %v556, %v706
    %v719 = vmul.f32 %v560, %v706
    %v720 = vmul.f32 %v564, %v706
    %v721 = vmul.f32 %v568, %v706
    %v722 = vmul.f32 %v572, %v706
    %v723 = vmul.f32 %v576, %v706
    %v724 = vmul.f32 %v580, %v706
    %v725 = vmul.f32 %v584, %v706
    %v726 = vmul.f32 %v588, %v706
    %v727 = vmul.f32 %v592, %v706
    %v728 = vmul.f32 %v596, %v706
    %v729 = vmul.f32 %v600, %v706
    %v730 = vmul.f32 %v604, %v706
    %v731 = vmul.f32 %v608, %v706
    %v732 = vmul.f32 %v612, %v706
    %v733 = vmul.f32 %v616, %v706
    %v734 = vmul.f32 %v620, %v706
    %v735 = vmul.f32 %v624, %v706
    %v736 = vmul.f32 %v628, %v706
    %v737 = vmul.f32 %v632, %v706
    %v738 = vmul.f32 %v636, %v706
    %v739 = vmul.f32 %v640, %v706
    %v740 = vmul.f32 %v644, %v706
    %v741 = vmul.f32 %v648, %v706
    %v742 = vmul.f32 %v652, %v706
    %v743 = vmul.f32 %v656, %v706
    %v744 = vmul.f32 %v660, %v706
    %v745 = vmul.f32 %v664, %v706
    %v746 = vmul.f32 %v668, %v706
    %v747 = vmul.f32 %v672, %v706
    %v748 = vmul.f32 %v676, %v706
    %v749 = vmul.f32 %v680, %v706
    %v750 = vmul.f32 %v684, %v706
    %v751 = vmul.f32 %v688, %v706
    %v752 = vmul.f32 %v692, %v706
    %v753 = vmul.f32 %v696, %v706
    %v754 = vmul.f32 %v700, %v706
    %v755 = vmul.f32 %v704, %v706
    %v756 = vadd.f32 %v461, %v707
    %v757 = vadd.f32 %v462, %v708
    %v758 = vadd.f32 %v463, %v709
    %v759 = vadd.f32 %v464, %v710
    %v760 = vadd.f32 %v465, %v711
    %v761 = vadd.f32 %v466, %v712
    %v762 = vadd.f32 %v467, %v713
    %v763 = vadd.f32 %v468, %v714
    %v764 = vadd.f32 %v469, %v715
    %v765 = vadd.f32 %v470, %v716
    %v766 = vadd.f32 %v471, %v717
    %v767 = vadd.f32 %v472, %v718
    %v768 = vadd.f32 %v473, %v719
    %v769 = vadd.f32 %v474, %v720
    %v770 = vadd.f32 %v475, %v721
    %v771 = vadd.f32 %v476, %v722
    %v772 = vadd.f32 %v477, %v723
    %v773 = vadd.f32 %v478, %v724
    %v774 = vadd.f32 %v479, %v725
    %v775 = vadd.f32 %v480, %v726
    %v776 = vadd.f32 %v481, %v727
    %v777 = vadd.f32 %v482, %v728
    %v778 = vadd.f32 %v483, %v729
    %v779 = vadd.f32 %v484, %v730
    %v780 = vadd.f32 %v485, %v731
    %v781 = vadd.f32 %v486, %v732
    %v782 = vadd.f32 %v487, %v733
    %v783 = vadd.f32 %v488, %v734
    %v784 = vadd.f32 %v489, %v735
    %v785 = vadd.f32 %v490, %v736
    %v786 = vadd.f32 %v491, %v737
    %v787 = vadd.f32 %v492, %v738
    %v788 = vadd.f32 %v493, %v739
    %v789 = vadd.f32 %v494, %v740
    %v790 = vadd.f32 %v495, %v741
    %v791 = vadd.f32 %v496, %v742
    %v792 = vadd.f32 %v497, %v743
    %v793 = vadd.f32 %v498, %v744
    %v794 = vadd.f32 %v499, %v745
    %v795 = vadd.f32 %v500, %v746
    %v796 = vadd.f32 %v501, %v747
    %v797 = vadd.f32 %v502, %v748
    %v798 = vadd.f32 %v503, %v749
    %v799 = vadd.f32 %v504, %v750
    %v800 = vadd.f32 %v505, %v751
    %v801 = vadd.f32 %v506, %v752
    %v802 = vadd.f32 %v507, %v753
    %v803 = vadd.f32 %v508, %v754
    %v804 = vadd.f32 %v509, %v755
    %805 = vset.pattern.permute.xlu0 2
    %806 = vperm.xlu0 %805, %v164
    %v807 = vpop.permute.xlu0 %806
    %809 = vset.pattern.permute.xlu0 2
    %810 = vperm.xlu0 %809, %v165
    %v811 = vpop.permute.xlu0 %810
    %813 = vset.pattern.permute.xlu0 2
    %814 = vperm.xlu0 %813, %v166
    %v815 = vpop.permute.xlu0 %814
    %817 = vset.pattern.permute.xlu0 2
    %818 = vperm.xlu0 %817, %v167
    %v819 = vpop.permute.xlu0 %818
    %821 = vset.pattern.permute.xlu0 2
    %822 = vperm.xlu0 %821, %v168
    %v823 = vpop.permute.xlu0 %822
    %825 = vset.pattern.permute.xlu0 2
    %826 = vperm.xlu0 %825, %v169
    %v827 = vpop.permute.xlu0 %826
    %829 = vset.pattern.permute.xlu0 2
    %830 = vperm.xlu0 %829, %v170
    %v831 = vpop.permute.xlu0 %830
    %833 = vset.pattern.permute.xlu0 2
    %834 = vperm.xlu0 %833, %v171
    %v835 = vpop.permute.xlu0 %834
    %837 = vset.pattern.permute.xlu0 2
    %838 = vperm.xlu0 %837, %v172
    %v839 = vpop.permute.xlu0 %838
    %841 = vset.pattern.permute.xlu0 2
    %842 = vperm.xlu0 %841, %v173
    %v843 = vpop.permute.xlu0 %842
    %845 = vset.pattern.permute.xlu0 2
    %846 = vperm.xlu0 %845, %v174
    %v847 = vpop.permute.xlu0 %846
    %849 = vset.pattern.permute.xlu0 2
    %850 = vperm.xlu0 %849, %v175
    %v851 = vpop.permute.xlu0 %850
    %853 = vset.pattern.permute.xlu0 2
    %854 = vperm.xlu0 %853, %v176
    %v855 = vpop.permute.xlu0 %854
    %857 = vset.pattern.permute.xlu0 2
    %858 = vperm.xlu0 %857, %v177
    %v859 = vpop.permute.xlu0 %858
    %861 = vset.pattern.permute.xlu0 2
    %862 = vperm.xlu0 %861, %v178
    %v863 = vpop.permute.xlu0 %862
    %865 = vset.pattern.permute.xlu0 2
    %866 = vperm.xlu0 %865, %v179
    %v867 = vpop.permute.xlu0 %866
    %869 = vset.pattern.permute.xlu0 2
    %870 = vperm.xlu0 %869, %v180
    %v871 = vpop.permute.xlu0 %870
    %873 = vset.pattern.permute.xlu0 2
    %874 = vperm.xlu0 %873, %v181
    %v875 = vpop.permute.xlu0 %874
    %877 = vset.pattern.permute.xlu0 2
    %878 = vperm.xlu0 %877, %v182
    %v879 = vpop.permute.xlu0 %878
    %881 = vset.pattern.permute.xlu0 2
    %882 = vperm.xlu0 %881, %v183
    %v883 = vpop.permute.xlu0 %882
    %885 = vset.pattern.permute.xlu0 2
    %886 = vperm.xlu0 %885, %v184
    %v887 = vpop.permute.xlu0 %886
    %889 = vset.pattern.permute.xlu0 2
    %890 = vperm.xlu0 %889, %v185
    %v891 = vpop.permute.xlu0 %890
    %893 = vset.pattern.permute.xlu0 2
    %894 = vperm.xlu0 %893, %v186
    %v895 = vpop.permute.xlu0 %894
    %897 = vset.pattern.permute.xlu0 2
    %898 = vperm.xlu0 %897, %v187
    %v899 = vpop.permute.xlu0 %898
    %901 = vset.pattern.permute.xlu0 2
    %902 = vperm.xlu0 %901, %v188
    %v903 = vpop.permute.xlu0 %902
    %905 = vset.pattern.permute.xlu0 2
    %906 = vperm.xlu0 %905, %v189
    %v907 = vpop.permute.xlu0 %906
    %909 = vset.pattern.permute.xlu0 2
    %910 = vperm.xlu0 %909, %v190
    %v911 = vpop.permute.xlu0 %910
    %913 = vset.pattern.permute.xlu0 2
    %914 = vperm.xlu0 %913, %v191
    %v915 = vpop.permute.xlu0 %914
    %917 = vset.pattern.permute.xlu0 2
    %918 = vperm.xlu0 %917, %v192
    %v919 = vpop.permute.xlu0 %918
    %921 = vset.pattern.permute.xlu0 2
    %922 = vperm.xlu0 %921, %v193
    %v923 = vpop.permute.xlu0 %922
    %925 = vset.pattern.permute.xlu0 2
    %926 = vperm.xlu0 %925, %v194
    %v927 = vpop.permute.xlu0 %926
    %929 = vset.pattern.permute.xlu0 2
    %930 = vperm.xlu0 %929, %v195
    %v931 = vpop.permute.xlu0 %930
    %933 = vset.pattern.permute.xlu0 2
    %934 = vperm.xlu0 %933, %v196
    %v935 = vpop.permute.xlu0 %934
    %937 = vset.pattern.permute.xlu0 2
    %938 = vperm.xlu0 %937, %v197
    %v939 = vpop.permute.xlu0 %938
    %941 = vset.pattern.permute.xlu0 2
    %942 = vperm.xlu0 %941, %v198
    %v943 = vpop.permute.xlu0 %942
    %945 = vset.pattern.permute.xlu0 2
    %946 = vperm.xlu0 %945, %v199
    %v947 = vpop.permute.xlu0 %946
    %949 = vset.pattern.permute.xlu0 2
    %950 = vperm.xlu0 %949, %v200
    %v951 = vpop.permute.xlu0 %950
    %953 = vset.pattern.permute.xlu0 2
    %954 = vperm.xlu0 %953, %v201
    %v955 = vpop.permute.xlu0 %954
    %957 = vset.pattern.permute.xlu0 2
    %958 = vperm.xlu0 %957, %v202
    %v959 = vpop.permute.xlu0 %958
    %961 = vset.pattern.permute.xlu0 2
    %962 = vperm.xlu0 %961, %v203
    %v963 = vpop.permute.xlu0 %962
    %965 = vset.pattern.permute.xlu0 2
    %966 = vperm.xlu0 %965, %v204
    %v967 = vpop.permute.xlu0 %966
    %969 = vset.pattern.permute.xlu0 2
    %970 = vperm.xlu0 %969, %v205
    %v971 = vpop.permute.xlu0 %970
    %973 = vset.pattern.permute.xlu0 2
    %974 = vperm.xlu0 %973, %v206
    %v975 = vpop.permute.xlu0 %974
    %977 = vset.pattern.permute.xlu0 2
    %978 = vperm.xlu0 %977, %v207
    %v979 = vpop.permute.xlu0 %978
    %981 = vset.pattern.permute.xlu0 2
    %982 = vperm.xlu0 %981, %v208
    %v983 = vpop.permute.xlu0 %982
    %985 = vset.pattern.permute.xlu0 2
    %986 = vperm.xlu0 %985, %v209
    %v987 = vpop.permute.xlu0 %986
    %989 = vset.pattern.permute.xlu0 2
    %990 = vperm.xlu0 %989, %v210
    %v991 = vpop.permute.xlu0 %990
    %993 = vset.pattern.permute.xlu0 2
    %994 = vperm.xlu0 %993, %v211
    %v995 = vpop.permute.xlu0 %994
    %997 = vset.pattern.permute.xlu0 2
    %998 = vperm.xlu0 %997, %v212
    %v999 = vpop.permute.xlu0 %998
    %v1001 = vperm.slane %v213, 2
    %v1002 = vmul.f32 %v807, %v1001
    %v1003 = vmul.f32 %v811, %v1001
    %v1004 = vmul.f32 %v815, %v1001
    %v1005 = vmul.f32 %v819, %v1001
    %v1006 = vmul.f32 %v823, %v1001
    %v1007 = vmul.f32 %v827, %v1001
    %v1008 = vmul.f32 %v831, %v1001
    %v1009 = vmul.f32 %v835, %v1001
    %v1010 = vmul.f32 %v839, %v1001
    %v1011 = vmul.f32 %v843, %v1001
    %v1012 = vmul.f32 %v847, %v1001
    %v1013 = vmul.f32 %v851, %v1001
    %v1014 = vmul.f32 %v855, %v1001
    %v1015 = vmul.f32 %v859, %v1001
    %v1016 = vmul.f32 %v863, %v1001
    %v1017 = vmul.f32 %v867, %v1001
    %v1018 = vmul.f32 %v871, %v1001
    %v1019 = vmul.f32 %v875, %v1001
    %v1020 = vmul.f32 %v879, %v1001
    %v1021 = vmul.f32 %v883, %v1001
    %v1022 = vmul.f32 %v887, %v1001
    %v1023 = vmul.f32 %v891, %v1001
    %v1024 = vmul.f32 %v895, %v1001
    %v1025 = vmul.f32 %v899, %v1001
    %v1026 = vmul.f32 %v903, %v1001
    %v1027 = vmul.f32 %v907, %v1001
    %v1028 = vmul.f32 %v911, %v1001
    %v1029 = vmul.f32 %v915, %v1001
    %v1030 = vmul.f32 %v919, %v1001
    %v1031 = vmul.f32 %v923, %v1001
    %v1032 = vmul.f32 %v927, %v1001
    %v1033 = vmul.f32 %v931, %v1001
    %v1034 = vmul.f32 %v935, %v1001
    %v1035 = vmul.f32 %v939, %v1001
    %v1036 = vmul.f32 %v943, %v1001
    %v1037 = vmul.f32 %v947, %v1001
    %v1038 = vmul.f32 %v951, %v1001
    %v1039 = vmul.f32 %v955, %v1001
    %v1040 = vmul.f32 %v959, %v1001
    %v1041 = vmul.f32 %v963, %v1001
    %v1042 = vmul.f32 %v967, %v1001
    %v1043 = vmul.f32 %v971, %v1001
    %v1044 = vmul.f32 %v975, %v1001
    %v1045 = vmul.f32 %v979, %v1001
    %v1046 = vmul.f32 %v983, %v1001
    %v1047 = vmul.f32 %v987, %v1001
    %v1048 = vmul.f32 %v991, %v1001
    %v1049 = vmul.f32 %v995, %v1001
    %v1050 = vmul.f32 %v999, %v1001
    %v1051 = vadd.f32 %v756, %v1002
    %v1052 = vadd.f32 %v757, %v1003
    %v1053 = vadd.f32 %v758, %v1004
    %v1054 = vadd.f32 %v759, %v1005
    %v1055 = vadd.f32 %v760, %v1006
    %v1056 = vadd.f32 %v761, %v1007
    %v1057 = vadd.f32 %v762, %v1008
    %v1058 = vadd.f32 %v763, %v1009
    %v1059 = vadd.f32 %v764, %v1010
    %v1060 = vadd.f32 %v765, %v1011
    %v1061 = vadd.f32 %v766, %v1012
    %v1062 = vadd.f32 %v767, %v1013
    %v1063 = vadd.f32 %v768, %v1014
    %v1064 = vadd.f32 %v769, %v1015
    %v1065 = vadd.f32 %v770, %v1016
    %v1066 = vadd.f32 %v771, %v1017
    %v1067 = vadd.f32 %v772, %v1018
    %v1068 = vadd.f32 %v773, %v1019
    %v1069 = vadd.f32 %v774, %v1020
    %v1070 = vadd.f32 %v775, %v1021
    %v1071 = vadd.f32 %v776, %v1022
    %v1072 = vadd.f32 %v777, %v1023
    %v1073 = vadd.f32 %v778, %v1024
    %v1074 = vadd.f32 %v779, %v1025
    %v1075 = vadd.f32 %v780, %v1026
    %v1076 = vadd.f32 %v781, %v1027
    %v1077 = vadd.f32 %v782, %v1028
    %v1078 = vadd.f32 %v783, %v1029
    %v1079 = vadd.f32 %v784, %v1030
    %v1080 = vadd.f32 %v785, %v1031
    %v1081 = vadd.f32 %v786, %v1032
    %v1082 = vadd.f32 %v787, %v1033
    %v1083 = vadd.f32 %v788, %v1034
    %v1084 = vadd.f32 %v789, %v1035
    %v1085 = vadd.f32 %v790, %v1036
    %v1086 = vadd.f32 %v791, %v1037
    %v1087 = vadd.f32 %v792, %v1038
    %v1088 = vadd.f32 %v793, %v1039
    %v1089 = vadd.f32 %v794, %v1040
    %v1090 = vadd.f32 %v795, %v1041
    %v1091 = vadd.f32 %v796, %v1042
    %v1092 = vadd.f32 %v797, %v1043
    %v1093 = vadd.f32 %v798, %v1044
    %v1094 = vadd.f32 %v799, %v1045
    %v1095 = vadd.f32 %v800, %v1046
    %v1096 = vadd.f32 %v801, %v1047
    %v1097 = vadd.f32 %v802, %v1048
    %v1098 = vadd.f32 %v803, %v1049
    %v1099 = vadd.f32 %v804, %v1050
    %1100 = vset.pattern.permute.xlu0 3
    %1101 = vperm.xlu0 %1100, %v164
    %v1102 = vpop.permute.xlu0 %1101
    %1104 = vset.pattern.permute.xlu0 3
    %1105 = vperm.xlu0 %1104, %v165
    %v1106 = vpop.permute.xlu0 %1105
    %1108 = vset.pattern.permute.xlu0 3
    %1109 = vperm.xlu0 %1108, %v166
    %v1110 = vpop.permute.xlu0 %1109
    %1112 = vset.pattern.permute.xlu0 3
    %1113 = vperm.xlu0 %1112, %v167
    %v1114 = vpop.permute.xlu0 %1113
    %1116 = vset.pattern.permute.xlu0 3
    %1117 = vperm.xlu0 %1116, %v168
    %v1118 = vpop.permute.xlu0 %1117
    %1120 = vset.pattern.permute.xlu0 3
    %1121 = vperm.xlu0 %1120, %v169
    %v1122 = vpop.permute.xlu0 %1121
    %1124 = vset.pattern.permute.xlu0 3
    %1125 = vperm.xlu0 %1124, %v170
    %v1126 = vpop.permute.xlu0 %1125
    %1128 = vset.pattern.permute.xlu0 3
    %1129 = vperm.xlu0 %1128, %v171
    %v1130 = vpop.permute.xlu0 %1129
    %1132 = vset.pattern.permute.xlu0 3
    %1133 = vperm.xlu0 %1132, %v172
    %v1134 = vpop.permute.xlu0 %1133
    %1136 = vset.pattern.permute.xlu0 3
    %1137 = vperm.xlu0 %1136, %v173
    %v1138 = vpop.permute.xlu0 %1137
    %1140 = vset.pattern.permute.xlu0 3
    %1141 = vperm.xlu0 %1140, %v174
    %v1142 = vpop.permute.xlu0 %1141
    %1144 = vset.pattern.permute.xlu0 3
    %1145 = vperm.xlu0 %1144, %v175
    %v1146 = vpop.permute.xlu0 %1145
    %1148 = vset.pattern.permute.xlu0 3
    %1149 = vperm.xlu0 %1148, %v176
    %v1150 = vpop.permute.xlu0 %1149
    %1152 = vset.pattern.permute.xlu0 3
    %1153 = vperm.xlu0 %1152, %v177
    %v1154 = vpop.permute.xlu0 %1153
    %1156 = vset.pattern.permute.xlu0 3
    %1157 = vperm.xlu0 %1156, %v178
    %v1158 = vpop.permute.xlu0 %1157
    %1160 = vset.pattern.permute.xlu0 3
    %1161 = vperm.xlu0 %1160, %v179
    %v1162 = vpop.permute.xlu0 %1161
    %1164 = vset.pattern.permute.xlu0 3
    %1165 = vperm.xlu0 %1164, %v180
    %v1166 = vpop.permute.xlu0 %1165
    %1168 = vset.pattern.permute.xlu0 3
    %1169 = vperm.xlu0 %1168, %v181
    %v1170 = vpop.permute.xlu0 %1169
    %1172 = vset.pattern.permute.xlu0 3
    %1173 = vperm.xlu0 %1172, %v182
    %v1174 = vpop.permute.xlu0 %1173
    %1176 = vset.pattern.permute.xlu0 3
    %1177 = vperm.xlu0 %1176, %v183
    %v1178 = vpop.permute.xlu0 %1177
    %1180 = vset.pattern.permute.xlu0 3
    %1181 = vperm.xlu0 %1180, %v184
    %v1182 = vpop.permute.xlu0 %1181
    %1184 = vset.pattern.permute.xlu0 3
    %1185 = vperm.xlu0 %1184, %v185
    %v1186 = vpop.permute.xlu0 %1185
    %1188 = vset.pattern.permute.xlu0 3
    %1189 = vperm.xlu0 %1188, %v186
    %v1190 = vpop.permute.xlu0 %1189
    %1192 = vset.pattern.permute.xlu0 3
    %1193 = vperm.xlu0 %1192, %v187
    %v1194 = vpop.permute.xlu0 %1193
    %1196 = vset.pattern.permute.xlu0 3
    %1197 = vperm.xlu0 %1196, %v188
    %v1198 = vpop.permute.xlu0 %1197
    %1200 = vset.pattern.permute.xlu0 3
    %1201 = vperm.xlu0 %1200, %v189
    %v1202 = vpop.permute.xlu0 %1201
    %1204 = vset.pattern.permute.xlu0 3
    %1205 = vperm.xlu0 %1204, %v190
    %v1206 = vpop.permute.xlu0 %1205
    %1208 = vset.pattern.permute.xlu0 3
    %1209 = vperm.xlu0 %1208, %v191
    %v1210 = vpop.permute.xlu0 %1209
    %1212 = vset.pattern.permute.xlu0 3
    %1213 = vperm.xlu0 %1212, %v192
    %v1214 = vpop.permute.xlu0 %1213
    %1216 = vset.pattern.permute.xlu0 3
    %1217 = vperm.xlu0 %1216, %v193
    %v1218 = vpop.permute.xlu0 %1217
    %1220 = vset.pattern.permute.xlu0 3
    %1221 = vperm.xlu0 %1220, %v194
    %v1222 = vpop.permute.xlu0 %1221
    %1224 = vset.pattern.permute.xlu0 3
    %1225 = vperm.xlu0 %1224, %v195
    %v1226 = vpop.permute.xlu0 %1225
    %1228 = vset.pattern.permute.xlu0 3
    %1229 = vperm.xlu0 %1228, %v196
    %v1230 = vpop.permute.xlu0 %1229
    %1232 = vset.pattern.permute.xlu0 3
    %1233 = vperm.xlu0 %1232, %v197
    %v1234 = vpop.permute.xlu0 %1233
    %1236 = vset.pattern.permute.xlu0 3
    %1237 = vperm.xlu0 %1236, %v198
    %v1238 = vpop.permute.xlu0 %1237
    %1240 = vset.pattern.permute.xlu0 3
    %1241 = vperm.xlu0 %1240, %v199
    %v1242 = vpop.permute.xlu0 %1241
    %1244 = vset.pattern.permute.xlu0 3
    %1245 = vperm.xlu0 %1244, %v200
    %v1246 = vpop.permute.xlu0 %1245
    %1248 = vset.pattern.permute.xlu0 3
    %1249 = vperm.xlu0 %1248, %v201
    %v1250 = vpop.permute.xlu0 %1249
    %1252 = vset.pattern.permute.xlu0 3
    %1253 = vperm.xlu0 %1252, %v202
    %v1254 = vpop.permute.xlu0 %1253
    %1256 = vset.pattern.permute.xlu0 3
    %1257 = vperm.xlu0 %1256, %v203
    %v1258 = vpop.permute.xlu0 %1257
    %1260 = vset.pattern.permute.xlu0 3
    %1261 = vperm.xlu0 %1260, %v204
    %v1262 = vpop.permute.xlu0 %1261
    %1264 = vset.pattern.permute.xlu0 3
    %1265 = vperm.xlu0 %1264, %v205
    %v1266 = vpop.permute.xlu0 %1265
    %1268 = vset.pattern.permute.xlu0 3
    %1269 = vperm.xlu0 %1268, %v206
    %v1270 = vpop.permute.xlu0 %1269
    %1272 = vset.pattern.permute.xlu0 3
    %1273 = vperm.xlu0 %1272, %v207
    %v1274 = vpop.permute.xlu0 %1273
    %1276 = vset.pattern.permute.xlu0 3
    %1277 = vperm.xlu0 %1276, %v208
    %v1278 = vpop.permute.xlu0 %1277
    %1280 = vset.pattern.permute.xlu0 3
    %1281 = vperm.xlu0 %1280, %v209
    %v1282 = vpop.permute.xlu0 %1281
    %1284 = vset.pattern.permute.xlu0 3
    %1285 = vperm.xlu0 %1284, %v210
    %v1286 = vpop.permute.xlu0 %1285
    %1288 = vset.pattern.permute.xlu0 3
    %1289 = vperm.xlu0 %1288, %v211
    %v1290 = vpop.permute.xlu0 %1289
    %1292 = vset.pattern.permute.xlu0 3
    %1293 = vperm.xlu0 %1292, %v212
    %v1294 = vpop.permute.xlu0 %1293
    %v1296 = vperm.slane %v213, 3
    %v1297 = vmul.f32 %v1102, %v1296
    %v1298 = vmul.f32 %v1106, %v1296
    %v1299 = vmul.f32 %v1110, %v1296
    %v1300 = vmul.f32 %v1114, %v1296
    %v1301 = vmul.f32 %v1118, %v1296
    %v1302 = vmul.f32 %v1122, %v1296
    %v1303 = vmul.f32 %v1126, %v1296
    %v1304 = vmul.f32 %v1130, %v1296
    %v1305 = vmul.f32 %v1134, %v1296
    %v1306 = vmul.f32 %v1138, %v1296
    %v1307 = vmul.f32 %v1142, %v1296
    %v1308 = vmul.f32 %v1146, %v1296
    %v1309 = vmul.f32 %v1150, %v1296
    %v1310 = vmul.f32 %v1154, %v1296
    %v1311 = vmul.f32 %v1158, %v1296
    %v1312 = vmul.f32 %v1162, %v1296
    %v1313 = vmul.f32 %v1166, %v1296
    %v1314 = vmul.f32 %v1170, %v1296
    %v1315 = vmul.f32 %v1174, %v1296
    %v1316 = vmul.f32 %v1178, %v1296
    %v1317 = vmul.f32 %v1182, %v1296
    %v1318 = vmul.f32 %v1186, %v1296
    %v1319 = vmul.f32 %v1190, %v1296
    %v1320 = vmul.f32 %v1194, %v1296
    %v1321 = vmul.f32 %v1198, %v1296
    %v1322 = vmul.f32 %v1202, %v1296
    %v1323 = vmul.f32 %v1206, %v1296
    %v1324 = vmul.f32 %v1210, %v1296
    %v1325 = vmul.f32 %v1214, %v1296
    %v1326 = vmul.f32 %v1218, %v1296
    %v1327 = vmul.f32 %v1222, %v1296
    %v1328 = vmul.f32 %v1226, %v1296
    %v1329 = vmul.f32 %v1230, %v1296
    %v1330 = vmul.f32 %v1234, %v1296
    %v1331 = vmul.f32 %v1238, %v1296
    %v1332 = vmul.f32 %v1242, %v1296
    %v1333 = vmul.f32 %v1246, %v1296
    %v1334 = vmul.f32 %v1250, %v1296
    %v1335 = vmul.f32 %v1254, %v1296
    %v1336 = vmul.f32 %v1258, %v1296
    %v1337 = vmul.f32 %v1262, %v1296
    %v1338 = vmul.f32 %v1266, %v1296
    %v1339 = vmul.f32 %v1270, %v1296
    %v1340 = vmul.f32 %v1274, %v1296
    %v1341 = vmul.f32 %v1278, %v1296
    %v1342 = vmul.f32 %v1282, %v1296
    %v1343 = vmul.f32 %v1286, %v1296
    %v1344 = vmul.f32 %v1290, %v1296
    %v1345 = vmul.f32 %v1294, %v1296
    %v1346 = vadd.f32 %v1051, %v1297
    %v1347 = vadd.f32 %v1052, %v1298
    %v1348 = vadd.f32 %v1053, %v1299
    %v1349 = vadd.f32 %v1054, %v1300
    %v1350 = vadd.f32 %v1055, %v1301
    %v1351 = vadd.f32 %v1056, %v1302
    %v1352 = vadd.f32 %v1057, %v1303
    %v1353 = vadd.f32 %v1058, %v1304
    %v1354 = vadd.f32 %v1059, %v1305
    %v1355 = vadd.f32 %v1060, %v1306
    %v1356 = vadd.f32 %v1061, %v1307
    %v1357 = vadd.f32 %v1062, %v1308
    %v1358 = vadd.f32 %v1063, %v1309
    %v1359 = vadd.f32 %v1064, %v1310
    %v1360 = vadd.f32 %v1065, %v1311
    %v1361 = vadd.f32 %v1066, %v1312
    %v1362 = vadd.f32 %v1067, %v1313
    %v1363 = vadd.f32 %v1068, %v1314
    %v1364 = vadd.f32 %v1069, %v1315
    %v1365 = vadd.f32 %v1070, %v1316
    %v1366 = vadd.f32 %v1071, %v1317
    %v1367 = vadd.f32 %v1072, %v1318
    %v1368 = vadd.f32 %v1073, %v1319
    %v1369 = vadd.f32 %v1074, %v1320
    %v1370 = vadd.f32 %v1075, %v1321
    %v1371 = vadd.f32 %v1076, %v1322
    %v1372 = vadd.f32 %v1077, %v1323
    %v1373 = vadd.f32 %v1078, %v1324
    %v1374 = vadd.f32 %v1079, %v1325
    %v1375 = vadd.f32 %v1080, %v1326
    %v1376 = vadd.f32 %v1081, %v1327
    %v1377 = vadd.f32 %v1082, %v1328
    %v1378 = vadd.f32 %v1083, %v1329
    %v1379 = vadd.f32 %v1084, %v1330
    %v1380 = vadd.f32 %v1085, %v1331
    %v1381 = vadd.f32 %v1086, %v1332
    %v1382 = vadd.f32 %v1087, %v1333
    %v1383 = vadd.f32 %v1088, %v1334
    %v1384 = vadd.f32 %v1089, %v1335
    %v1385 = vadd.f32 %v1090, %v1336
    %v1386 = vadd.f32 %v1091, %v1337
    %v1387 = vadd.f32 %v1092, %v1338
    %v1388 = vadd.f32 %v1093, %v1339
    %v1389 = vadd.f32 %v1094, %v1340
    %v1390 = vadd.f32 %v1095, %v1341
    %v1391 = vadd.f32 %v1096, %v1342
    %v1392 = vadd.f32 %v1097, %v1343
    %v1393 = vadd.f32 %v1098, %v1344
    %v1394 = vadd.f32 %v1099, %v1345
    %1395 = vset.pattern.permute.xlu0 4
    %1396 = vperm.xlu0 %1395, %v164
    %v1397 = vpop.permute.xlu0 %1396
    %1399 = vset.pattern.permute.xlu0 4
    %1400 = vperm.xlu0 %1399, %v165
    %v1401 = vpop.permute.xlu0 %1400
    %1403 = vset.pattern.permute.xlu0 4
    %1404 = vperm.xlu0 %1403, %v166
    %v1405 = vpop.permute.xlu0 %1404
    %1407 = vset.pattern.permute.xlu0 4
    %1408 = vperm.xlu0 %1407, %v167
    %v1409 = vpop.permute.xlu0 %1408
    %1411 = vset.pattern.permute.xlu0 4
    %1412 = vperm.xlu0 %1411, %v168
    %v1413 = vpop.permute.xlu0 %1412
    %1415 = vset.pattern.permute.xlu0 4
    %1416 = vperm.xlu0 %1415, %v169
    %v1417 = vpop.permute.xlu0 %1416
    %1419 = vset.pattern.permute.xlu0 4
    %1420 = vperm.xlu0 %1419, %v170
    %v1421 = vpop.permute.xlu0 %1420
    %1423 = vset.pattern.permute.xlu0 4
    %1424 = vperm.xlu0 %1423, %v171
    %v1425 = vpop.permute.xlu0 %1424
    %1427 = vset.pattern.permute.xlu0 4
    %1428 = vperm.xlu0 %1427, %v172
    %v1429 = vpop.permute.xlu0 %1428
    %1431 = vset.pattern.permute.xlu0 4
    %1432 = vperm.xlu0 %1431, %v173
    %v1433 = vpop.permute.xlu0 %1432
    %1435 = vset.pattern.permute.xlu0 4
    %1436 = vperm.xlu0 %1435, %v174
    %v1437 = vpop.permute.xlu0 %1436
    %1439 = vset.pattern.permute.xlu0 4
    %1440 = vperm.xlu0 %1439, %v175
    %v1441 = vpop.permute.xlu0 %1440
    %1443 = vset.pattern.permute.xlu0 4
    %1444 = vperm.xlu0 %1443, %v176
    %v1445 = vpop.permute.xlu0 %1444
    %1447 = vset.pattern.permute.xlu0 4
    %1448 = vperm.xlu0 %1447, %v177
    %v1449 = vpop.permute.xlu0 %1448
    %1451 = vset.pattern.permute.xlu0 4
    %1452 = vperm.xlu0 %1451, %v178
    %v1453 = vpop.permute.xlu0 %1452
    %1455 = vset.pattern.permute.xlu0 4
    %1456 = vperm.xlu0 %1455, %v179
    %v1457 = vpop.permute.xlu0 %1456
    %1459 = vset.pattern.permute.xlu0 4
    %1460 = vperm.xlu0 %1459, %v180
    %v1461 = vpop.permute.xlu0 %1460
    %1463 = vset.pattern.permute.xlu0 4
    %1464 = vperm.xlu0 %1463, %v181
    %v1465 = vpop.permute.xlu0 %1464
    %1467 = vset.pattern.permute.xlu0 4
    %1468 = vperm.xlu0 %1467, %v182
    %v1469 = vpop.permute.xlu0 %1468
    %1471 = vset.pattern.permute.xlu0 4
    %1472 = vperm.xlu0 %1471, %v183
    %v1473 = vpop.permute.xlu0 %1472
    %1475 = vset.pattern.permute.xlu0 4
    %1476 = vperm.xlu0 %1475, %v184
    %v1477 = vpop.permute.xlu0 %1476
    %1479 = vset.pattern.permute.xlu0 4
    %1480 = vperm.xlu0 %1479, %v185
    %v1481 = vpop.permute.xlu0 %1480
    %1483 = vset.pattern.permute.xlu0 4
    %1484 = vperm.xlu0 %1483, %v186
    %v1485 = vpop.permute.xlu0 %1484
    %1487 = vset.pattern.permute.xlu0 4
    %1488 = vperm.xlu0 %1487, %v187
    %v1489 = vpop.permute.xlu0 %1488
    %1491 = vset.pattern.permute.xlu0 4
    %1492 = vperm.xlu0 %1491, %v188
    %v1493 = vpop.permute.xlu0 %1492
    %1495 = vset.pattern.permute.xlu0 4
    %1496 = vperm.xlu0 %1495, %v189
    %v1497 = vpop.permute.xlu0 %1496
    %1499 = vset.pattern.permute.xlu0 4
    %1500 = vperm.xlu0 %1499, %v190
    %v1501 = vpop.permute.xlu0 %1500
    %1503 = vset.pattern.permute.xlu0 4
    %1504 = vperm.xlu0 %1503, %v191
    %v1505 = vpop.permute.xlu0 %1504
    %1507 = vset.pattern.permute.xlu0 4
    %1508 = vperm.xlu0 %1507, %v192
    %v1509 = vpop.permute.xlu0 %1508
    %1511 = vset.pattern.permute.xlu0 4
    %1512 = vperm.xlu0 %1511, %v193
    %v1513 = vpop.permute.xlu0 %1512
    %1515 = vset.pattern.permute.xlu0 4
    %1516 = vperm.xlu0 %1515, %v194
    %v1517 = vpop.permute.xlu0 %1516
    %1519 = vset.pattern.permute.xlu0 4
    %1520 = vperm.xlu0 %1519, %v195
    %v1521 = vpop.permute.xlu0 %1520
    %1523 = vset.pattern.permute.xlu0 4
    %1524 = vperm.xlu0 %1523, %v196
    %v1525 = vpop.permute.xlu0 %1524
    %1527 = vset.pattern.permute.xlu0 4
    %1528 = vperm.xlu0 %1527, %v197
    %v1529 = vpop.permute.xlu0 %1528
    %1531 = vset.pattern.permute.xlu0 4
    %1532 = vperm.xlu0 %1531, %v198
    %v1533 = vpop.permute.xlu0 %1532
    %1535 = vset.pattern.permute.xlu0 4
    %1536 = vperm.xlu0 %1535, %v199
    %v1537 = vpop.permute.xlu0 %1536
    %1539 = vset.pattern.permute.xlu0 4
    %1540 = vperm.xlu0 %1539, %v200
    %v1541 = vpop.permute.xlu0 %1540
    %1543 = vset.pattern.permute.xlu0 4
    %1544 = vperm.xlu0 %1543, %v201
    %v1545 = vpop.permute.xlu0 %1544
    %1547 = vset.pattern.permute.xlu0 4
    %1548 = vperm.xlu0 %1547, %v202
    %v1549 = vpop.permute.xlu0 %1548
    %1551 = vset.pattern.permute.xlu0 4
    %1552 = vperm.xlu0 %1551, %v203
    %v1553 = vpop.permute.xlu0 %1552
    %1555 = vset.pattern.permute.xlu0 4
    %1556 = vperm.xlu0 %1555, %v204
    %v1557 = vpop.permute.xlu0 %1556
    %1559 = vset.pattern.permute.xlu0 4
    %1560 = vperm.xlu0 %1559, %v205
    %v1561 = vpop.permute.xlu0 %1560
    %1563 = vset.pattern.permute.xlu0 4
    %1564 = vperm.xlu0 %1563, %v206
    %v1565 = vpop.permute.xlu0 %1564
    %1567 = vset.pattern.permute.xlu0 4
    %1568 = vperm.xlu0 %1567, %v207
    %v1569 = vpop.permute.xlu0 %1568
    %1571 = vset.pattern.permute.xlu0 4
    %1572 = vperm.xlu0 %1571, %v208
    %v1573 = vpop.permute.xlu0 %1572
    %1575 = vset.pattern.permute.xlu0 4
    %1576 = vperm.xlu0 %1575, %v209
    %v1577 = vpop.permute.xlu0 %1576
    %1579 = vset.pattern.permute.xlu0 4
    %1580 = vperm.xlu0 %1579, %v210
    %v1581 = vpop.permute.xlu0 %1580
    %1583 = vset.pattern.permute.xlu0 4
    %1584 = vperm.xlu0 %1583, %v211
    %v1585 = vpop.permute.xlu0 %1584
    %1587 = vset.pattern.permute.xlu0 4
    %1588 = vperm.xlu0 %1587, %v212
    %v1589 = vpop.permute.xlu0 %1588
    %v1591 = vperm.slane %v213, 4
    %v1592 = vmul.f32 %v1397, %v1591
    %v1593 = vmul.f32 %v1401, %v1591
    %v1594 = vmul.f32 %v1405, %v1591
    %v1595 = vmul.f32 %v1409, %v1591
    %v1596 = vmul.f32 %v1413, %v1591
    %v1597 = vmul.f32 %v1417, %v1591
    %v1598 = vmul.f32 %v1421, %v1591
    %v1599 = vmul.f32 %v1425, %v1591
    %v1600 = vmul.f32 %v1429, %v1591
    %v1601 = vmul.f32 %v1433, %v1591
    %v1602 = vmul.f32 %v1437, %v1591
    %v1603 = vmul.f32 %v1441, %v1591
    %v1604 = vmul.f32 %v1445, %v1591
    %v1605 = vmul.f32 %v1449, %v1591
    %v1606 = vmul.f32 %v1453, %v1591
    %v1607 = vmul.f32 %v1457, %v1591
    %v1608 = vmul.f32 %v1461, %v1591
    %v1609 = vmul.f32 %v1465, %v1591
    %v1610 = vmul.f32 %v1469, %v1591
    %v1611 = vmul.f32 %v1473, %v1591
    %v1612 = vmul.f32 %v1477, %v1591
    %v1613 = vmul.f32 %v1481, %v1591
    %v1614 = vmul.f32 %v1485, %v1591
    %v1615 = vmul.f32 %v1489, %v1591
    %v1616 = vmul.f32 %v1493, %v1591
    %v1617 = vmul.f32 %v1497, %v1591
    %v1618 = vmul.f32 %v1501, %v1591
    %v1619 = vmul.f32 %v1505, %v1591
    %v1620 = vmul.f32 %v1509, %v1591
    %v1621 = vmul.f32 %v1513, %v1591
    %v1622 = vmul.f32 %v1517, %v1591
    %v1623 = vmul.f32 %v1521, %v1591
    %v1624 = vmul.f32 %v1525, %v1591
    %v1625 = vmul.f32 %v1529, %v1591
    %v1626 = vmul.f32 %v1533, %v1591
    %v1627 = vmul.f32 %v1537, %v1591
    %v1628 = vmul.f32 %v1541, %v1591
    %v1629 = vmul.f32 %v1545, %v1591
    %v1630 = vmul.f32 %v1549, %v1591
    %v1631 = vmul.f32 %v1553, %v1591
    %v1632 = vmul.f32 %v1557, %v1591
    %v1633 = vmul.f32 %v1561, %v1591
    %v1634 = vmul.f32 %v1565, %v1591
    %v1635 = vmul.f32 %v1569, %v1591
    %v1636 = vmul.f32 %v1573, %v1591
    %v1637 = vmul.f32 %v1577, %v1591
    %v1638 = vmul.f32 %v1581, %v1591
    %v1639 = vmul.f32 %v1585, %v1591
    %v1640 = vmul.f32 %v1589, %v1591
    %v1641 = vadd.f32 %v1346, %v1592
    %v1642 = vadd.f32 %v1347, %v1593
    %v1643 = vadd.f32 %v1348, %v1594
    %v1644 = vadd.f32 %v1349, %v1595
    %v1645 = vadd.f32 %v1350, %v1596
    %v1646 = vadd.f32 %v1351, %v1597
    %v1647 = vadd.f32 %v1352, %v1598
    %v1648 = vadd.f32 %v1353, %v1599
    %v1649 = vadd.f32 %v1354, %v1600
    %v1650 = vadd.f32 %v1355, %v1601
    %v1651 = vadd.f32 %v1356, %v1602
    %v1652 = vadd.f32 %v1357, %v1603
    %v1653 = vadd.f32 %v1358, %v1604
    %v1654 = vadd.f32 %v1359, %v1605
    %v1655 = vadd.f32 %v1360, %v1606
    %v1656 = vadd.f32 %v1361, %v1607
    %v1657 = vadd.f32 %v1362, %v1608
    %v1658 = vadd.f32 %v1363, %v1609
    %v1659 = vadd.f32 %v1364, %v1610
    %v1660 = vadd.f32 %v1365, %v1611
    %v1661 = vadd.f32 %v1366, %v1612
    %v1662 = vadd.f32 %v1367, %v1613
    %v1663 = vadd.f32 %v1368, %v1614
    %v1664 = vadd.f32 %v1369, %v1615
    %v1665 = vadd.f32 %v1370, %v1616
    %v1666 = vadd.f32 %v1371, %v1617
    %v1667 = vadd.f32 %v1372, %v1618
    %v1668 = vadd.f32 %v1373, %v1619
    %v1669 = vadd.f32 %v1374, %v1620
    %v1670 = vadd.f32 %v1375, %v1621
    %v1671 = vadd.f32 %v1376, %v1622
    %v1672 = vadd.f32 %v1377, %v1623
    %v1673 = vadd.f32 %v1378, %v1624
    %v1674 = vadd.f32 %v1379, %v1625
    %v1675 = vadd.f32 %v1380, %v1626
    %v1676 = vadd.f32 %v1381, %v1627
    %v1677 = vadd.f32 %v1382, %v1628
    %v1678 = vadd.f32 %v1383, %v1629
    %v1679 = vadd.f32 %v1384, %v1630
    %v1680 = vadd.f32 %v1385, %v1631
    %v1681 = vadd.f32 %v1386, %v1632
    %v1682 = vadd.f32 %v1387, %v1633
    %v1683 = vadd.f32 %v1388, %v1634
    %v1684 = vadd.f32 %v1389, %v1635
    %v1685 = vadd.f32 %v1390, %v1636
    %v1686 = vadd.f32 %v1391, %v1637
    %v1687 = vadd.f32 %v1392, %v1638
    %v1688 = vadd.f32 %v1393, %v1639
    %v1689 = vadd.f32 %v1394, %v1640
    %1690 = vset.pattern.permute.xlu0 5
    %1691 = vperm.xlu0 %1690, %v164
    %v1692 = vpop.permute.xlu0 %1691
    %1694 = vset.pattern.permute.xlu0 5
    %1695 = vperm.xlu0 %1694, %v165
    %v1696 = vpop.permute.xlu0 %1695
    %1698 = vset.pattern.permute.xlu0 5
    %1699 = vperm.xlu0 %1698, %v166
    %v1700 = vpop.permute.xlu0 %1699
    %1702 = vset.pattern.permute.xlu0 5
    %1703 = vperm.xlu0 %1702, %v167
    %v1704 = vpop.permute.xlu0 %1703
    %1706 = vset.pattern.permute.xlu0 5
    %1707 = vperm.xlu0 %1706, %v168
    %v1708 = vpop.permute.xlu0 %1707
    %1710 = vset.pattern.permute.xlu0 5
    %1711 = vperm.xlu0 %1710, %v169
    %v1712 = vpop.permute.xlu0 %1711
    %1714 = vset.pattern.permute.xlu0 5
    %1715 = vperm.xlu0 %1714, %v170
    %v1716 = vpop.permute.xlu0 %1715
    %1718 = vset.pattern.permute.xlu0 5
    %1719 = vperm.xlu0 %1718, %v171
    %v1720 = vpop.permute.xlu0 %1719
    %1722 = vset.pattern.permute.xlu0 5
    %1723 = vperm.xlu0 %1722, %v172
    %v1724 = vpop.permute.xlu0 %1723
    %1726 = vset.pattern.permute.xlu0 5
    %1727 = vperm.xlu0 %1726, %v173
    %v1728 = vpop.permute.xlu0 %1727
    %1730 = vset.pattern.permute.xlu0 5
    %1731 = vperm.xlu0 %1730, %v174
    %v1732 = vpop.permute.xlu0 %1731
    %1734 = vset.pattern.permute.xlu0 5
    %1735 = vperm.xlu0 %1734, %v175
    %v1736 = vpop.permute.xlu0 %1735
    %1738 = vset.pattern.permute.xlu0 5
    %1739 = vperm.xlu0 %1738, %v176
    %v1740 = vpop.permute.xlu0 %1739
    %1742 = vset.pattern.permute.xlu0 5
    %1743 = vperm.xlu0 %1742, %v177
    %v1744 = vpop.permute.xlu0 %1743
    %1746 = vset.pattern.permute.xlu0 5
    %1747 = vperm.xlu0 %1746, %v178
    %v1748 = vpop.permute.xlu0 %1747
    %1750 = vset.pattern.permute.xlu0 5
    %1751 = vperm.xlu0 %1750, %v179
    %v1752 = vpop.permute.xlu0 %1751
    %1754 = vset.pattern.permute.xlu0 5
    %1755 = vperm.xlu0 %1754, %v180
    %v1756 = vpop.permute.xlu0 %1755
    %1758 = vset.pattern.permute.xlu0 5
    %1759 = vperm.xlu0 %1758, %v181
    %v1760 = vpop.permute.xlu0 %1759
    %1762 = vset.pattern.permute.xlu0 5
    %1763 = vperm.xlu0 %1762, %v182
    %v1764 = vpop.permute.xlu0 %1763
    %1766 = vset.pattern.permute.xlu0 5
    %1767 = vperm.xlu0 %1766, %v183
    %v1768 = vpop.permute.xlu0 %1767
    %1770 = vset.pattern.permute.xlu0 5
    %1771 = vperm.xlu0 %1770, %v184
    %v1772 = vpop.permute.xlu0 %1771
    %1774 = vset.pattern.permute.xlu0 5
    %1775 = vperm.xlu0 %1774, %v185
    %v1776 = vpop.permute.xlu0 %1775
    %1778 = vset.pattern.permute.xlu0 5
    %1779 = vperm.xlu0 %1778, %v186
    %v1780 = vpop.permute.xlu0 %1779
    %1782 = vset.pattern.permute.xlu0 5
    %1783 = vperm.xlu0 %1782, %v187
    %v1784 = vpop.permute.xlu0 %1783
    %1786 = vset.pattern.permute.xlu0 5
    %1787 = vperm.xlu0 %1786, %v188
    %v1788 = vpop.permute.xlu0 %1787
    %1790 = vset.pattern.permute.xlu0 5
    %1791 = vperm.xlu0 %1790, %v189
    %v1792 = vpop.permute.xlu0 %1791
    %1794 = vset.pattern.permute.xlu0 5
    %1795 = vperm.xlu0 %1794, %v190
    %v1796 = vpop.permute.xlu0 %1795
    %1798 = vset.pattern.permute.xlu0 5
    %1799 = vperm.xlu0 %1798, %v191
    %v1800 = vpop.permute.xlu0 %1799
    %1802 = vset.pattern.permute.xlu0 5
    %1803 = vperm.xlu0 %1802, %v192
    %v1804 = vpop.permute.xlu0 %1803
    %1806 = vset.pattern.permute.xlu0 5
    %1807 = vperm.xlu0 %1806, %v193
    %v1808 = vpop.permute.xlu0 %1807
    %1810 = vset.pattern.permute.xlu0 5
    %1811 = vperm.xlu0 %1810, %v194
    %v1812 = vpop.permute.xlu0 %1811
    %1814 = vset.pattern.permute.xlu0 5
    %1815 = vperm.xlu0 %1814, %v195
    %v1816 = vpop.permute.xlu0 %1815
    %1818 = vset.pattern.permute.xlu0 5
    %1819 = vperm.xlu0 %1818, %v196
    %v1820 = vpop.permute.xlu0 %1819
    %1822 = vset.pattern.permute.xlu0 5
    %1823 = vperm.xlu0 %1822, %v197
    %v1824 = vpop.permute.xlu0 %1823
    %1826 = vset.pattern.permute.xlu0 5
    %1827 = vperm.xlu0 %1826, %v198
    %v1828 = vpop.permute.xlu0 %1827
    %1830 = vset.pattern.permute.xlu0 5
    %1831 = vperm.xlu0 %1830, %v199
    %v1832 = vpop.permute.xlu0 %1831
    %1834 = vset.pattern.permute.xlu0 5
    %1835 = vperm.xlu0 %1834, %v200
    %v1836 = vpop.permute.xlu0 %1835
    %1838 = vset.pattern.permute.xlu0 5
    %1839 = vperm.xlu0 %1838, %v201
    %v1840 = vpop.permute.xlu0 %1839
    %1842 = vset.pattern.permute.xlu0 5
    %1843 = vperm.xlu0 %1842, %v202
    %v1844 = vpop.permute.xlu0 %1843
    %1846 = vset.pattern.permute.xlu0 5
    %1847 = vperm.xlu0 %1846, %v203
    %v1848 = vpop.permute.xlu0 %1847
    %1850 = vset.pattern.permute.xlu0 5
    %1851 = vperm.xlu0 %1850, %v204
    %v1852 = vpop.permute.xlu0 %1851
    %1854 = vset.pattern.permute.xlu0 5
    %1855 = vperm.xlu0 %1854, %v205
    %v1856 = vpop.permute.xlu0 %1855
    %1858 = vset.pattern.permute.xlu0 5
    %1859 = vperm.xlu0 %1858, %v206
    %v1860 = vpop.permute.xlu0 %1859
    %1862 = vset.pattern.permute.xlu0 5
    %1863 = vperm.xlu0 %1862, %v207
    %v1864 = vpop.permute.xlu0 %1863
    %1866 = vset.pattern.permute.xlu0 5
    %1867 = vperm.xlu0 %1866, %v208
    %v1868 = vpop.permute.xlu0 %1867
    %1870 = vset.pattern.permute.xlu0 5
    %1871 = vperm.xlu0 %1870, %v209
    %v1872 = vpop.permute.xlu0 %1871
    %1874 = vset.pattern.permute.xlu0 5
    %1875 = vperm.xlu0 %1874, %v210
    %v1876 = vpop.permute.xlu0 %1875
    %1878 = vset.pattern.permute.xlu0 5
    %1879 = vperm.xlu0 %1878, %v211
    %v1880 = vpop.permute.xlu0 %1879
    %1882 = vset.pattern.permute.xlu0 5
    %1883 = vperm.xlu0 %1882, %v212
    %v1884 = vpop.permute.xlu0 %1883
    %v1886 = vperm.slane %v213, 5
    %v1887 = vmul.f32 %v1692, %v1886
    %v1888 = vmul.f32 %v1696, %v1886
    %v1889 = vmul.f32 %v1700, %v1886
    %v1890 = vmul.f32 %v1704, %v1886
    %v1891 = vmul.f32 %v1708, %v1886
    %v1892 = vmul.f32 %v1712, %v1886
    %v1893 = vmul.f32 %v1716, %v1886
    %v1894 = vmul.f32 %v1720, %v1886
    %v1895 = vmul.f32 %v1724, %v1886
    %v1896 = vmul.f32 %v1728, %v1886
    %v1897 = vmul.f32 %v1732, %v1886
    %v1898 = vmul.f32 %v1736, %v1886
    %v1899 = vmul.f32 %v1740, %v1886
    %v1900 = vmul.f32 %v1744, %v1886
    %v1901 = vmul.f32 %v1748, %v1886
    %v1902 = vmul.f32 %v1752, %v1886
    %v1903 = vmul.f32 %v1756, %v1886
    %v1904 = vmul.f32 %v1760, %v1886
    %v1905 = vmul.f32 %v1764, %v1886
    %v1906 = vmul.f32 %v1768, %v1886
    %v1907 = vmul.f32 %v1772, %v1886
    %v1908 = vmul.f32 %v1776, %v1886
    %v1909 = vmul.f32 %v1780, %v1886
    %v1910 = vmul.f32 %v1784, %v1886
    %v1911 = vmul.f32 %v1788, %v1886
    %v1912 = vmul.f32 %v1792, %v1886
    %v1913 = vmul.f32 %v1796, %v1886
    %v1914 = vmul.f32 %v1800, %v1886
    %v1915 = vmul.f32 %v1804, %v1886
    %v1916 = vmul.f32 %v1808, %v1886
    %v1917 = vmul.f32 %v1812, %v1886
    %v1918 = vmul.f32 %v1816, %v1886
    %v1919 = vmul.f32 %v1820, %v1886
    %v1920 = vmul.f32 %v1824, %v1886
    %v1921 = vmul.f32 %v1828, %v1886
    %v1922 = vmul.f32 %v1832, %v1886
    %v1923 = vmul.f32 %v1836, %v1886
    %v1924 = vmul.f32 %v1840, %v1886
    %v1925 = vmul.f32 %v1844, %v1886
    %v1926 = vmul.f32 %v1848, %v1886
    %v1927 = vmul.f32 %v1852, %v1886
    %v1928 = vmul.f32 %v1856, %v1886
    %v1929 = vmul.f32 %v1860, %v1886
    %v1930 = vmul.f32 %v1864, %v1886
    %v1931 = vmul.f32 %v1868, %v1886
    %v1932 = vmul.f32 %v1872, %v1886
    %v1933 = vmul.f32 %v1876, %v1886
    %v1934 = vmul.f32 %v1880, %v1886
    %v1935 = vmul.f32 %v1884, %v1886
    %v1936 = vadd.f32 %v1641, %v1887
    %v1937 = vadd.f32 %v1642, %v1888
    %v1938 = vadd.f32 %v1643, %v1889
    %v1939 = vadd.f32 %v1644, %v1890
    %v1940 = vadd.f32 %v1645, %v1891
    %v1941 = vadd.f32 %v1646, %v1892
    %v1942 = vadd.f32 %v1647, %v1893
    %v1943 = vadd.f32 %v1648, %v1894
    %v1944 = vadd.f32 %v1649, %v1895
    %v1945 = vadd.f32 %v1650, %v1896
    %v1946 = vadd.f32 %v1651, %v1897
    %v1947 = vadd.f32 %v1652, %v1898
    %v1948 = vadd.f32 %v1653, %v1899
    %v1949 = vadd.f32 %v1654, %v1900
    %v1950 = vadd.f32 %v1655, %v1901
    %v1951 = vadd.f32 %v1656, %v1902
    %v1952 = vadd.f32 %v1657, %v1903
    %v1953 = vadd.f32 %v1658, %v1904
    %v1954 = vadd.f32 %v1659, %v1905
    %v1955 = vadd.f32 %v1660, %v1906
    %v1956 = vadd.f32 %v1661, %v1907
    %v1957 = vadd.f32 %v1662, %v1908
    %v1958 = vadd.f32 %v1663, %v1909
    %v1959 = vadd.f32 %v1664, %v1910
    %v1960 = vadd.f32 %v1665, %v1911
    %v1961 = vadd.f32 %v1666, %v1912
    %v1962 = vadd.f32 %v1667, %v1913
    %v1963 = vadd.f32 %v1668, %v1914
    %v1964 = vadd.f32 %v1669, %v1915
    %v1965 = vadd.f32 %v1670, %v1916
    %v1966 = vadd.f32 %v1671, %v1917
    %v1967 = vadd.f32 %v1672, %v1918
    %v1968 = vadd.f32 %v1673, %v1919
    %v1969 = vadd.f32 %v1674, %v1920
    %v1970 = vadd.f32 %v1675, %v1921
    %v1971 = vadd.f32 %v1676, %v1922
    %v1972 = vadd.f32 %v1677, %v1923
    %v1973 = vadd.f32 %v1678, %v1924
    %v1974 = vadd.f32 %v1679, %v1925
    %v1975 = vadd.f32 %v1680, %v1926
    %v1976 = vadd.f32 %v1681, %v1927
    %v1977 = vadd.f32 %v1682, %v1928
    %v1978 = vadd.f32 %v1683, %v1929
    %v1979 = vadd.f32 %v1684, %v1930
    %v1980 = vadd.f32 %v1685, %v1931
    %v1981 = vadd.f32 %v1686, %v1932
    %v1982 = vadd.f32 %v1687, %v1933
    %v1983 = vadd.f32 %v1688, %v1934
    %v1984 = vadd.f32 %v1689, %v1935
    %1985 = vset.pattern.permute.xlu0 6
    %1986 = vperm.xlu0 %1985, %v164
    %v1987 = vpop.permute.xlu0 %1986
    %1989 = vset.pattern.permute.xlu0 6
    %1990 = vperm.xlu0 %1989, %v165
    %v1991 = vpop.permute.xlu0 %1990
    %1993 = vset.pattern.permute.xlu0 6
    %1994 = vperm.xlu0 %1993, %v166
    %v1995 = vpop.permute.xlu0 %1994
    %1997 = vset.pattern.permute.xlu0 6
    %1998 = vperm.xlu0 %1997, %v167
    %v1999 = vpop.permute.xlu0 %1998
    %2001 = vset.pattern.permute.xlu0 6
    %2002 = vperm.xlu0 %2001, %v168
    %v2003 = vpop.permute.xlu0 %2002
    %2005 = vset.pattern.permute.xlu0 6
    %2006 = vperm.xlu0 %2005, %v169
    %v2007 = vpop.permute.xlu0 %2006
    %2009 = vset.pattern.permute.xlu0 6
    %2010 = vperm.xlu0 %2009, %v170
    %v2011 = vpop.permute.xlu0 %2010
    %2013 = vset.pattern.permute.xlu0 6
    %2014 = vperm.xlu0 %2013, %v171
    %v2015 = vpop.permute.xlu0 %2014
    %2017 = vset.pattern.permute.xlu0 6
    %2018 = vperm.xlu0 %2017, %v172
    %v2019 = vpop.permute.xlu0 %2018
    %2021 = vset.pattern.permute.xlu0 6
    %2022 = vperm.xlu0 %2021, %v173
    %v2023 = vpop.permute.xlu0 %2022
    %2025 = vset.pattern.permute.xlu0 6
    %2026 = vperm.xlu0 %2025, %v174
    %v2027 = vpop.permute.xlu0 %2026
    %2029 = vset.pattern.permute.xlu0 6
    %2030 = vperm.xlu0 %2029, %v175
    %v2031 = vpop.permute.xlu0 %2030
    %2033 = vset.pattern.permute.xlu0 6
    %2034 = vperm.xlu0 %2033, %v176
    %v2035 = vpop.permute.xlu0 %2034
    %2037 = vset.pattern.permute.xlu0 6
    %2038 = vperm.xlu0 %2037, %v177
    %v2039 = vpop.permute.xlu0 %2038
    %2041 = vset.pattern.permute.xlu0 6
    %2042 = vperm.xlu0 %2041, %v178
    %v2043 = vpop.permute.xlu0 %2042
    %2045 = vset.pattern.permute.xlu0 6
    %2046 = vperm.xlu0 %2045, %v179
    %v2047 = vpop.permute.xlu0 %2046
    %2049 = vset.pattern.permute.xlu0 6
    %2050 = vperm.xlu0 %2049, %v180
    %v2051 = vpop.permute.xlu0 %2050
    %2053 = vset.pattern.permute.xlu0 6
    %2054 = vperm.xlu0 %2053, %v181
    %v2055 = vpop.permute.xlu0 %2054
    %2057 = vset.pattern.permute.xlu0 6
    %2058 = vperm.xlu0 %2057, %v182
    %v2059 = vpop.permute.xlu0 %2058
    %2061 = vset.pattern.permute.xlu0 6
    %2062 = vperm.xlu0 %2061, %v183
    %v2063 = vpop.permute.xlu0 %2062
    %2065 = vset.pattern.permute.xlu0 6
    %2066 = vperm.xlu0 %2065, %v184
    %v2067 = vpop.permute.xlu0 %2066
    %2069 = vset.pattern.permute.xlu0 6
    %2070 = vperm.xlu0 %2069, %v185
    %v2071 = vpop.permute.xlu0 %2070
    %2073 = vset.pattern.permute.xlu0 6
    %2074 = vperm.xlu0 %2073, %v186
    %v2075 = vpop.permute.xlu0 %2074
    %2077 = vset.pattern.permute.xlu0 6
    %2078 = vperm.xlu0 %2077, %v187
    %v2079 = vpop.permute.xlu0 %2078
    %2081 = vset.pattern.permute.xlu0 6
    %2082 = vperm.xlu0 %2081, %v188
    %v2083 = vpop.permute.xlu0 %2082
    %2085 = vset.pattern.permute.xlu0 6
    %2086 = vperm.xlu0 %2085, %v189
    %v2087 = vpop.permute.xlu0 %2086
    %2089 = vset.pattern.permute.xlu0 6
    %2090 = vperm.xlu0 %2089, %v190
    %v2091 = vpop.permute.xlu0 %2090
    %2093 = vset.pattern.permute.xlu0 6
    %2094 = vperm.xlu0 %2093, %v191
    %v2095 = vpop.permute.xlu0 %2094
    %2097 = vset.pattern.permute.xlu0 6
    %2098 = vperm.xlu0 %2097, %v192
    %v2099 = vpop.permute.xlu0 %2098
    %2101 = vset.pattern.permute.xlu0 6
    %2102 = vperm.xlu0 %2101, %v193
    %v2103 = vpop.permute.xlu0 %2102
    %2105 = vset.pattern.permute.xlu0 6
    %2106 = vperm.xlu0 %2105, %v194
    %v2107 = vpop.permute.xlu0 %2106
    %2109 = vset.pattern.permute.xlu0 6
    %2110 = vperm.xlu0 %2109, %v195
    %v2111 = vpop.permute.xlu0 %2110
    %2113 = vset.pattern.permute.xlu0 6
    %2114 = vperm.xlu0 %2113, %v196
    %v2115 = vpop.permute.xlu0 %2114
    %2117 = vset.pattern.permute.xlu0 6
    %2118 = vperm.xlu0 %2117, %v197
    %v2119 = vpop.permute.xlu0 %2118
    %2121 = vset.pattern.permute.xlu0 6
    %2122 = vperm.xlu0 %2121, %v198
    %v2123 = vpop.permute.xlu0 %2122
    %2125 = vset.pattern.permute.xlu0 6
    %2126 = vperm.xlu0 %2125, %v199
    %v2127 = vpop.permute.xlu0 %2126
    %2129 = vset.pattern.permute.xlu0 6
    %2130 = vperm.xlu0 %2129, %v200
    %v2131 = vpop.permute.xlu0 %2130
    %2133 = vset.pattern.permute.xlu0 6
    %2134 = vperm.xlu0 %2133, %v201
    %v2135 = vpop.permute.xlu0 %2134
    %2137 = vset.pattern.permute.xlu0 6
    %2138 = vperm.xlu0 %2137, %v202
    %v2139 = vpop.permute.xlu0 %2138
    %2141 = vset.pattern.permute.xlu0 6
    %2142 = vperm.xlu0 %2141, %v203
    %v2143 = vpop.permute.xlu0 %2142
    %2145 = vset.pattern.permute.xlu0 6
    %2146 = vperm.xlu0 %2145, %v204
    %v2147 = vpop.permute.xlu0 %2146
    %2149 = vset.pattern.permute.xlu0 6
    %2150 = vperm.xlu0 %2149, %v205
    %v2151 = vpop.permute.xlu0 %2150
    %2153 = vset.pattern.permute.xlu0 6
    %2154 = vperm.xlu0 %2153, %v206
    %v2155 = vpop.permute.xlu0 %2154
    %2157 = vset.pattern.permute.xlu0 6
    %2158 = vperm.xlu0 %2157, %v207
    %v2159 = vpop.permute.xlu0 %2158
    %2161 = vset.pattern.permute.xlu0 6
    %2162 = vperm.xlu0 %2161, %v208
    %v2163 = vpop.permute.xlu0 %2162
    %2165 = vset.pattern.permute.xlu0 6
    %2166 = vperm.xlu0 %2165, %v209
    %v2167 = vpop.permute.xlu0 %2166
    %2169 = vset.pattern.permute.xlu0 6
    %2170 = vperm.xlu0 %2169, %v210
    %v2171 = vpop.permute.xlu0 %2170
    %2173 = vset.pattern.permute.xlu0 6
    %2174 = vperm.xlu0 %2173, %v211
    %v2175 = vpop.permute.xlu0 %2174
    %2177 = vset.pattern.permute.xlu0 6
    %2178 = vperm.xlu0 %2177, %v212
    %v2179 = vpop.permute.xlu0 %2178
    %v2181 = vperm.slane %v213, 6
    %v2182 = vmul.f32 %v1987, %v2181
    %v2183 = vmul.f32 %v1991, %v2181
    %v2184 = vmul.f32 %v1995, %v2181
    %v2185 = vmul.f32 %v1999, %v2181
    %v2186 = vmul.f32 %v2003, %v2181
    %v2187 = vmul.f32 %v2007, %v2181
    %v2188 = vmul.f32 %v2011, %v2181
    %v2189 = vmul.f32 %v2015, %v2181
    %v2190 = vmul.f32 %v2019, %v2181
    %v2191 = vmul.f32 %v2023, %v2181
    %v2192 = vmul.f32 %v2027, %v2181
    %v2193 = vmul.f32 %v2031, %v2181
    %v2194 = vmul.f32 %v2035, %v2181
    %v2195 = vmul.f32 %v2039, %v2181
    %v2196 = vmul.f32 %v2043, %v2181
    %v2197 = vmul.f32 %v2047, %v2181
    %v2198 = vmul.f32 %v2051, %v2181
    %v2199 = vmul.f32 %v2055, %v2181
    %v2200 = vmul.f32 %v2059, %v2181
    %v2201 = vmul.f32 %v2063, %v2181
    %v2202 = vmul.f32 %v2067, %v2181
    %v2203 = vmul.f32 %v2071, %v2181
    %v2204 = vmul.f32 %v2075, %v2181
    %v2205 = vmul.f32 %v2079, %v2181
    %v2206 = vmul.f32 %v2083, %v2181
    %v2207 = vmul.f32 %v2087, %v2181
    %v2208 = vmul.f32 %v2091, %v2181
    %v2209 = vmul.f32 %v2095, %v2181
    %v2210 = vmul.f32 %v2099, %v2181
    %v2211 = vmul.f32 %v2103, %v2181
    %v2212 = vmul.f32 %v2107, %v2181
    %v2213 = vmul.f32 %v2111, %v2181
    %v2214 = vmul.f32 %v2115, %v2181
    %v2215 = vmul.f32 %v2119, %v2181
    %v2216 = vmul.f32 %v2123, %v2181
    %v2217 = vmul.f32 %v2127, %v2181
    %v2218 = vmul.f32 %v2131, %v2181
    %v2219 = vmul.f32 %v2135, %v2181
    %v2220 = vmul.f32 %v2139, %v2181
    %v2221 = vmul.f32 %v2143, %v2181
    %v2222 = vmul.f32 %v2147, %v2181
    %v2223 = vmul.f32 %v2151, %v2181
    %v2224 = vmul.f32 %v2155, %v2181
    %v2225 = vmul.f32 %v2159, %v2181
    %v2226 = vmul.f32 %v2163, %v2181
    %v2227 = vmul.f32 %v2167, %v2181
    %v2228 = vmul.f32 %v2171, %v2181
    %v2229 = vmul.f32 %v2175, %v2181
    %v2230 = vmul.f32 %v2179, %v2181
    %v2231 = vadd.f32 %v1936, %v2182
    %v2232 = vadd.f32 %v1937, %v2183
    %v2233 = vadd.f32 %v1938, %v2184
    %v2234 = vadd.f32 %v1939, %v2185
    %v2235 = vadd.f32 %v1940, %v2186
    %v2236 = vadd.f32 %v1941, %v2187
    %v2237 = vadd.f32 %v1942, %v2188
    %v2238 = vadd.f32 %v1943, %v2189
    %v2239 = vadd.f32 %v1944, %v2190
    %v2240 = vadd.f32 %v1945, %v2191
    %v2241 = vadd.f32 %v1946, %v2192
    %v2242 = vadd.f32 %v1947, %v2193
    %v2243 = vadd.f32 %v1948, %v2194
    %v2244 = vadd.f32 %v1949, %v2195
    %v2245 = vadd.f32 %v1950, %v2196
    %v2246 = vadd.f32 %v1951, %v2197
    %v2247 = vadd.f32 %v1952, %v2198
    %v2248 = vadd.f32 %v1953, %v2199
    %v2249 = vadd.f32 %v1954, %v2200
    %v2250 = vadd.f32 %v1955, %v2201
    %v2251 = vadd.f32 %v1956, %v2202
    %v2252 = vadd.f32 %v1957, %v2203
    %v2253 = vadd.f32 %v1958, %v2204
    %v2254 = vadd.f32 %v1959, %v2205
    %v2255 = vadd.f32 %v1960, %v2206
    %v2256 = vadd.f32 %v1961, %v2207
    %v2257 = vadd.f32 %v1962, %v2208
    %v2258 = vadd.f32 %v1963, %v2209
    %v2259 = vadd.f32 %v1964, %v2210
    %v2260 = vadd.f32 %v1965, %v2211
    %v2261 = vadd.f32 %v1966, %v2212
    %v2262 = vadd.f32 %v1967, %v2213
    %v2263 = vadd.f32 %v1968, %v2214
    %v2264 = vadd.f32 %v1969, %v2215
    %v2265 = vadd.f32 %v1970, %v2216
    %v2266 = vadd.f32 %v1971, %v2217
    %v2267 = vadd.f32 %v1972, %v2218
    %v2268 = vadd.f32 %v1973, %v2219
    %v2269 = vadd.f32 %v1974, %v2220
    %v2270 = vadd.f32 %v1975, %v2221
    %v2271 = vadd.f32 %v1976, %v2222
    %v2272 = vadd.f32 %v1977, %v2223
    %v2273 = vadd.f32 %v1978, %v2224
    %v2274 = vadd.f32 %v1979, %v2225
    %v2275 = vadd.f32 %v1980, %v2226
    %v2276 = vadd.f32 %v1981, %v2227
    %v2277 = vadd.f32 %v1982, %v2228
    %v2278 = vadd.f32 %v1983, %v2229
    %v2279 = vadd.f32 %v1984, %v2230
    %2280 = vset.pattern.permute.xlu0 7
    %2281 = vperm.xlu0 %2280, %v164
    %v2282 = vpop.permute.xlu0 %2281
    %2284 = vset.pattern.permute.xlu0 7
    %2285 = vperm.xlu0 %2284, %v165
    %v2286 = vpop.permute.xlu0 %2285
    %2288 = vset.pattern.permute.xlu0 7
    %2289 = vperm.xlu0 %2288, %v166
    %v2290 = vpop.permute.xlu0 %2289
    %2292 = vset.pattern.permute.xlu0 7
    %2293 = vperm.xlu0 %2292, %v167
    %v2294 = vpop.permute.xlu0 %2293
    %2296 = vset.pattern.permute.xlu0 7
    %2297 = vperm.xlu0 %2296, %v168
    %v2298 = vpop.permute.xlu0 %2297
    %2300 = vset.pattern.permute.xlu0 7
    %2301 = vperm.xlu0 %2300, %v169
    %v2302 = vpop.permute.xlu0 %2301
    %2304 = vset.pattern.permute.xlu0 7
    %2305 = vperm.xlu0 %2304, %v170
    %v2306 = vpop.permute.xlu0 %2305
    %2308 = vset.pattern.permute.xlu0 7
    %2309 = vperm.xlu0 %2308, %v171
    %v2310 = vpop.permute.xlu0 %2309
    %2312 = vset.pattern.permute.xlu0 7
    %2313 = vperm.xlu0 %2312, %v172
    %v2314 = vpop.permute.xlu0 %2313
    %2316 = vset.pattern.permute.xlu0 7
    %2317 = vperm.xlu0 %2316, %v173
    %v2318 = vpop.permute.xlu0 %2317
    %2320 = vset.pattern.permute.xlu0 7
    %2321 = vperm.xlu0 %2320, %v174
    %v2322 = vpop.permute.xlu0 %2321
    %2324 = vset.pattern.permute.xlu0 7
    %2325 = vperm.xlu0 %2324, %v175
    %v2326 = vpop.permute.xlu0 %2325
    %2328 = vset.pattern.permute.xlu0 7
    %2329 = vperm.xlu0 %2328, %v176
    %v2330 = vpop.permute.xlu0 %2329
    %2332 = vset.pattern.permute.xlu0 7
    %2333 = vperm.xlu0 %2332, %v177
    %v2334 = vpop.permute.xlu0 %2333
    %2336 = vset.pattern.permute.xlu0 7
    %2337 = vperm.xlu0 %2336, %v178
    %v2338 = vpop.permute.xlu0 %2337
    %2340 = vset.pattern.permute.xlu0 7
    %2341 = vperm.xlu0 %2340, %v179
    %v2342 = vpop.permute.xlu0 %2341
    %2344 = vset.pattern.permute.xlu0 7
    %2345 = vperm.xlu0 %2344, %v180
    %v2346 = vpop.permute.xlu0 %2345
    %2348 = vset.pattern.permute.xlu0 7
    %2349 = vperm.xlu0 %2348, %v181
    %v2350 = vpop.permute.xlu0 %2349
    %2352 = vset.pattern.permute.xlu0 7
    %2353 = vperm.xlu0 %2352, %v182
    %v2354 = vpop.permute.xlu0 %2353
    %2356 = vset.pattern.permute.xlu0 7
    %2357 = vperm.xlu0 %2356, %v183
    %v2358 = vpop.permute.xlu0 %2357
    %2360 = vset.pattern.permute.xlu0 7
    %2361 = vperm.xlu0 %2360, %v184
    %v2362 = vpop.permute.xlu0 %2361
    %2364 = vset.pattern.permute.xlu0 7
    %2365 = vperm.xlu0 %2364, %v185
    %v2366 = vpop.permute.xlu0 %2365
    %2368 = vset.pattern.permute.xlu0 7
    %2369 = vperm.xlu0 %2368, %v186
    %v2370 = vpop.permute.xlu0 %2369
    %2372 = vset.pattern.permute.xlu0 7
    %2373 = vperm.xlu0 %2372, %v187
    %v2374 = vpop.permute.xlu0 %2373
    %2376 = vset.pattern.permute.xlu0 7
    %2377 = vperm.xlu0 %2376, %v188
    %v2378 = vpop.permute.xlu0 %2377
    %2380 = vset.pattern.permute.xlu0 7
    %2381 = vperm.xlu0 %2380, %v189
    %v2382 = vpop.permute.xlu0 %2381
    %2384 = vset.pattern.permute.xlu0 7
    %2385 = vperm.xlu0 %2384, %v190
    %v2386 = vpop.permute.xlu0 %2385
    %2388 = vset.pattern.permute.xlu0 7
    %2389 = vperm.xlu0 %2388, %v191
    %v2390 = vpop.permute.xlu0 %2389
    %2392 = vset.pattern.permute.xlu0 7
    %2393 = vperm.xlu0 %2392, %v192
    %v2394 = vpop.permute.xlu0 %2393
    %2396 = vset.pattern.permute.xlu0 7
    %2397 = vperm.xlu0 %2396, %v193
    %v2398 = vpop.permute.xlu0 %2397
    %2400 = vset.pattern.permute.xlu0 7
    %2401 = vperm.xlu0 %2400, %v194
    %v2402 = vpop.permute.xlu0 %2401
    %2404 = vset.pattern.permute.xlu0 7
    %2405 = vperm.xlu0 %2404, %v195
    %v2406 = vpop.permute.xlu0 %2405
    %2408 = vset.pattern.permute.xlu0 7
    %2409 = vperm.xlu0 %2408, %v196
    %v2410 = vpop.permute.xlu0 %2409
    %2412 = vset.pattern.permute.xlu0 7
    %2413 = vperm.xlu0 %2412, %v197
    %v2414 = vpop.permute.xlu0 %2413
    %2416 = vset.pattern.permute.xlu0 7
    %2417 = vperm.xlu0 %2416, %v198
    %v2418 = vpop.permute.xlu0 %2417
    %2420 = vset.pattern.permute.xlu0 7
    %2421 = vperm.xlu0 %2420, %v199
    %v2422 = vpop.permute.xlu0 %2421
    %2424 = vset.pattern.permute.xlu0 7
    %2425 = vperm.xlu0 %2424, %v200
    %v2426 = vpop.permute.xlu0 %2425
    %2428 = vset.pattern.permute.xlu0 7
    %2429 = vperm.xlu0 %2428, %v201
    %v2430 = vpop.permute.xlu0 %2429
    %2432 = vset.pattern.permute.xlu0 7
    %2433 = vperm.xlu0 %2432, %v202
    %v2434 = vpop.permute.xlu0 %2433
    %2436 = vset.pattern.permute.xlu0 7
    %2437 = vperm.xlu0 %2436, %v203
    %v2438 = vpop.permute.xlu0 %2437
    %2440 = vset.pattern.permute.xlu0 7
    %2441 = vperm.xlu0 %2440, %v204
    %v2442 = vpop.permute.xlu0 %2441
    %2444 = vset.pattern.permute.xlu0 7
    %2445 = vperm.xlu0 %2444, %v205
    %v2446 = vpop.permute.xlu0 %2445
    %2448 = vset.pattern.permute.xlu0 7
    %2449 = vperm.xlu0 %2448, %v206
    %v2450 = vpop.permute.xlu0 %2449
    %2452 = vset.pattern.permute.xlu0 7
    %2453 = vperm.xlu0 %2452, %v207
    %v2454 = vpop.permute.xlu0 %2453
    %2456 = vset.pattern.permute.xlu0 7
    %2457 = vperm.xlu0 %2456, %v208
    %v2458 = vpop.permute.xlu0 %2457
    %2460 = vset.pattern.permute.xlu0 7
    %2461 = vperm.xlu0 %2460, %v209
    %v2462 = vpop.permute.xlu0 %2461
    %2464 = vset.pattern.permute.xlu0 7
    %2465 = vperm.xlu0 %2464, %v210
    %v2466 = vpop.permute.xlu0 %2465
    %2468 = vset.pattern.permute.xlu0 7
    %2469 = vperm.xlu0 %2468, %v211
    %v2470 = vpop.permute.xlu0 %2469
    %2472 = vset.pattern.permute.xlu0 7
    %2473 = vperm.xlu0 %2472, %v212
    %v2474 = vpop.permute.xlu0 %2473
    %v2476 = vperm.slane %v213, 7
    %v2477 = vmul.f32 %v2282, %v2476
    %v2478 = vmul.f32 %v2286, %v2476
    %v2479 = vmul.f32 %v2290, %v2476
    %v2480 = vmul.f32 %v2294, %v2476
    %v2481 = vmul.f32 %v2298, %v2476
    %v2482 = vmul.f32 %v2302, %v2476
    %v2483 = vmul.f32 %v2306, %v2476
    %v2484 = vmul.f32 %v2310, %v2476
    %v2485 = vmul.f32 %v2314, %v2476
    %v2486 = vmul.f32 %v2318, %v2476
    %v2487 = vmul.f32 %v2322, %v2476
    %v2488 = vmul.f32 %v2326, %v2476
    %v2489 = vmul.f32 %v2330, %v2476
    %v2490 = vmul.f32 %v2334, %v2476
    %v2491 = vmul.f32 %v2338, %v2476
    %v2492 = vmul.f32 %v2342, %v2476
    %v2493 = vmul.f32 %v2346, %v2476
    %v2494 = vmul.f32 %v2350, %v2476
    %v2495 = vmul.f32 %v2354, %v2476
    %v2496 = vmul.f32 %v2358, %v2476
    %v2497 = vmul.f32 %v2362, %v2476
    %v2498 = vmul.f32 %v2366, %v2476
    %v2499 = vmul.f32 %v2370, %v2476
    %v2500 = vmul.f32 %v2374, %v2476
    %v2501 = vmul.f32 %v2378, %v2476
    %v2502 = vmul.f32 %v2382, %v2476
    %v2503 = vmul.f32 %v2386, %v2476
    %v2504 = vmul.f32 %v2390, %v2476
    %v2505 = vmul.f32 %v2394, %v2476
    %v2506 = vmul.f32 %v2398, %v2476
    %v2507 = vmul.f32 %v2402, %v2476
    %v2508 = vmul.f32 %v2406, %v2476
    %v2509 = vmul.f32 %v2410, %v2476
    %v2510 = vmul.f32 %v2414, %v2476
    %v2511 = vmul.f32 %v2418, %v2476
    %v2512 = vmul.f32 %v2422, %v2476
    %v2513 = vmul.f32 %v2426, %v2476
    %v2514 = vmul.f32 %v2430, %v2476
    %v2515 = vmul.f32 %v2434, %v2476
    %v2516 = vmul.f32 %v2438, %v2476
    %v2517 = vmul.f32 %v2442, %v2476
    %v2518 = vmul.f32 %v2446, %v2476
    %v2519 = vmul.f32 %v2450, %v2476
    %v2520 = vmul.f32 %v2454, %v2476
    %v2521 = vmul.f32 %v2458, %v2476
    %v2522 = vmul.f32 %v2462, %v2476
    %v2523 = vmul.f32 %v2466, %v2476
    %v2524 = vmul.f32 %v2470, %v2476
    %v2525 = vmul.f32 %v2474, %v2476
    %v2526 = vadd.f32 %v2231, %v2477
    %v2527 = vadd.f32 %v2232, %v2478
    %v2528 = vadd.f32 %v2233, %v2479
    %v2529 = vadd.f32 %v2234, %v2480
    %v2530 = vadd.f32 %v2235, %v2481
    %v2531 = vadd.f32 %v2236, %v2482
    %v2532 = vadd.f32 %v2237, %v2483
    %v2533 = vadd.f32 %v2238, %v2484
    %v2534 = vadd.f32 %v2239, %v2485
    %v2535 = vadd.f32 %v2240, %v2486
    %v2536 = vadd.f32 %v2241, %v2487
    %v2537 = vadd.f32 %v2242, %v2488
    %v2538 = vadd.f32 %v2243, %v2489
    %v2539 = vadd.f32 %v2244, %v2490
    %v2540 = vadd.f32 %v2245, %v2491
    %v2541 = vadd.f32 %v2246, %v2492
    %v2542 = vadd.f32 %v2247, %v2493
    %v2543 = vadd.f32 %v2248, %v2494
    %v2544 = vadd.f32 %v2249, %v2495
    %v2545 = vadd.f32 %v2250, %v2496
    %v2546 = vadd.f32 %v2251, %v2497
    %v2547 = vadd.f32 %v2252, %v2498
    %v2548 = vadd.f32 %v2253, %v2499
    %v2549 = vadd.f32 %v2254, %v2500
    %v2550 = vadd.f32 %v2255, %v2501
    %v2551 = vadd.f32 %v2256, %v2502
    %v2552 = vadd.f32 %v2257, %v2503
    %v2553 = vadd.f32 %v2258, %v2504
    %v2554 = vadd.f32 %v2259, %v2505
    %v2555 = vadd.f32 %v2260, %v2506
    %v2556 = vadd.f32 %v2261, %v2507
    %v2557 = vadd.f32 %v2262, %v2508
    %v2558 = vadd.f32 %v2263, %v2509
    %v2559 = vadd.f32 %v2264, %v2510
    %v2560 = vadd.f32 %v2265, %v2511
    %v2561 = vadd.f32 %v2266, %v2512
    %v2562 = vadd.f32 %v2267, %v2513
    %v2563 = vadd.f32 %v2268, %v2514
    %v2564 = vadd.f32 %v2269, %v2515
    %v2565 = vadd.f32 %v2270, %v2516
    %v2566 = vadd.f32 %v2271, %v2517
    %v2567 = vadd.f32 %v2272, %v2518
    %v2568 = vadd.f32 %v2273, %v2519
    %v2569 = vadd.f32 %v2274, %v2520
    %v2570 = vadd.f32 %v2275, %v2521
    %v2571 = vadd.f32 %v2276, %v2522
    %v2572 = vadd.f32 %v2277, %v2523
    %v2573 = vadd.f32 %v2278, %v2524
    %v2574 = vadd.f32 %v2279, %v2525
    %2575 = vset.pattern.permute.xlu0 8
    %2576 = vperm.xlu0 %2575, %v164
    %v2577 = vpop.permute.xlu0 %2576
    %2579 = vset.pattern.permute.xlu0 8
    %2580 = vperm.xlu0 %2579, %v165
    %v2581 = vpop.permute.xlu0 %2580
    %2583 = vset.pattern.permute.xlu0 8
    %2584 = vperm.xlu0 %2583, %v166
    %v2585 = vpop.permute.xlu0 %2584
    %2587 = vset.pattern.permute.xlu0 8
    %2588 = vperm.xlu0 %2587, %v167
    %v2589 = vpop.permute.xlu0 %2588
    %2591 = vset.pattern.permute.xlu0 8
    %2592 = vperm.xlu0 %2591, %v168
    %v2593 = vpop.permute.xlu0 %2592
    %2595 = vset.pattern.permute.xlu0 8
    %2596 = vperm.xlu0 %2595, %v169
    %v2597 = vpop.permute.xlu0 %2596
    %2599 = vset.pattern.permute.xlu0 8
    %2600 = vperm.xlu0 %2599, %v170
    %v2601 = vpop.permute.xlu0 %2600
    %2603 = vset.pattern.permute.xlu0 8
    %2604 = vperm.xlu0 %2603, %v171
    %v2605 = vpop.permute.xlu0 %2604
    %2607 = vset.pattern.permute.xlu0 8
    %2608 = vperm.xlu0 %2607, %v172
    %v2609 = vpop.permute.xlu0 %2608
    %2611 = vset.pattern.permute.xlu0 8
    %2612 = vperm.xlu0 %2611, %v173
    %v2613 = vpop.permute.xlu0 %2612
    %2615 = vset.pattern.permute.xlu0 8
    %2616 = vperm.xlu0 %2615, %v174
    %v2617 = vpop.permute.xlu0 %2616
    %2619 = vset.pattern.permute.xlu0 8
    %2620 = vperm.xlu0 %2619, %v175
    %v2621 = vpop.permute.xlu0 %2620
    %2623 = vset.pattern.permute.xlu0 8
    %2624 = vperm.xlu0 %2623, %v176
    %v2625 = vpop.permute.xlu0 %2624
    %2627 = vset.pattern.permute.xlu0 8
    %2628 = vperm.xlu0 %2627, %v177
    %v2629 = vpop.permute.xlu0 %2628
    %2631 = vset.pattern.permute.xlu0 8
    %2632 = vperm.xlu0 %2631, %v178
    %v2633 = vpop.permute.xlu0 %2632
    %2635 = vset.pattern.permute.xlu0 8
    %2636 = vperm.xlu0 %2635, %v179
    %v2637 = vpop.permute.xlu0 %2636
    %2639 = vset.pattern.permute.xlu0 8
    %2640 = vperm.xlu0 %2639, %v180
    %v2641 = vpop.permute.xlu0 %2640
    %2643 = vset.pattern.permute.xlu0 8
    %2644 = vperm.xlu0 %2643, %v181
    %v2645 = vpop.permute.xlu0 %2644
    %2647 = vset.pattern.permute.xlu0 8
    %2648 = vperm.xlu0 %2647, %v182
    %v2649 = vpop.permute.xlu0 %2648
    %2651 = vset.pattern.permute.xlu0 8
    %2652 = vperm.xlu0 %2651, %v183
    %v2653 = vpop.permute.xlu0 %2652
    %2655 = vset.pattern.permute.xlu0 8
    %2656 = vperm.xlu0 %2655, %v184
    %v2657 = vpop.permute.xlu0 %2656
    %2659 = vset.pattern.permute.xlu0 8
    %2660 = vperm.xlu0 %2659, %v185
    %v2661 = vpop.permute.xlu0 %2660
    %2663 = vset.pattern.permute.xlu0 8
    %2664 = vperm.xlu0 %2663, %v186
    %v2665 = vpop.permute.xlu0 %2664
    %2667 = vset.pattern.permute.xlu0 8
    %2668 = vperm.xlu0 %2667, %v187
    %v2669 = vpop.permute.xlu0 %2668
    %2671 = vset.pattern.permute.xlu0 8
    %2672 = vperm.xlu0 %2671, %v188
    %v2673 = vpop.permute.xlu0 %2672
    %2675 = vset.pattern.permute.xlu0 8
    %2676 = vperm.xlu0 %2675, %v189
    %v2677 = vpop.permute.xlu0 %2676
    %2679 = vset.pattern.permute.xlu0 8
    %2680 = vperm.xlu0 %2679, %v190
    %v2681 = vpop.permute.xlu0 %2680
    %2683 = vset.pattern.permute.xlu0 8
    %2684 = vperm.xlu0 %2683, %v191
    %v2685 = vpop.permute.xlu0 %2684
    %2687 = vset.pattern.permute.xlu0 8
    %2688 = vperm.xlu0 %2687, %v192
    %v2689 = vpop.permute.xlu0 %2688
    %2691 = vset.pattern.permute.xlu0 8
    %2692 = vperm.xlu0 %2691, %v193
    %v2693 = vpop.permute.xlu0 %2692
    %2695 = vset.pattern.permute.xlu0 8
    %2696 = vperm.xlu0 %2695, %v194
    %v2697 = vpop.permute.xlu0 %2696
    %2699 = vset.pattern.permute.xlu0 8
    %2700 = vperm.xlu0 %2699, %v195
    %v2701 = vpop.permute.xlu0 %2700
    %2703 = vset.pattern.permute.xlu0 8
    %2704 = vperm.xlu0 %2703, %v196
    %v2705 = vpop.permute.xlu0 %2704
    %2707 = vset.pattern.permute.xlu0 8
    %2708 = vperm.xlu0 %2707, %v197
    %v2709 = vpop.permute.xlu0 %2708
    %2711 = vset.pattern.permute.xlu0 8
    %2712 = vperm.xlu0 %2711, %v198
    %v2713 = vpop.permute.xlu0 %2712
    %2715 = vset.pattern.permute.xlu0 8
    %2716 = vperm.xlu0 %2715, %v199
    %v2717 = vpop.permute.xlu0 %2716
    %2719 = vset.pattern.permute.xlu0 8
    %2720 = vperm.xlu0 %2719, %v200
    %v2721 = vpop.permute.xlu0 %2720
    %2723 = vset.pattern.permute.xlu0 8
    %2724 = vperm.xlu0 %2723, %v201
    %v2725 = vpop.permute.xlu0 %2724
    %2727 = vset.pattern.permute.xlu0 8
    %2728 = vperm.xlu0 %2727, %v202
    %v2729 = vpop.permute.xlu0 %2728
    %2731 = vset.pattern.permute.xlu0 8
    %2732 = vperm.xlu0 %2731, %v203
    %v2733 = vpop.permute.xlu0 %2732
    %2735 = vset.pattern.permute.xlu0 8
    %2736 = vperm.xlu0 %2735, %v204
    %v2737 = vpop.permute.xlu0 %2736
    %2739 = vset.pattern.permute.xlu0 8
    %2740 = vperm.xlu0 %2739, %v205
    %v2741 = vpop.permute.xlu0 %2740
    %2743 = vset.pattern.permute.xlu0 8
    %2744 = vperm.xlu0 %2743, %v206
    %v2745 = vpop.permute.xlu0 %2744
    %2747 = vset.pattern.permute.xlu0 8
    %2748 = vperm.xlu0 %2747, %v207
    %v2749 = vpop.permute.xlu0 %2748
    %2751 = vset.pattern.permute.xlu0 8
    %2752 = vperm.xlu0 %2751, %v208
    %v2753 = vpop.permute.xlu0 %2752
    %2755 = vset.pattern.permute.xlu0 8
    %2756 = vperm.xlu0 %2755, %v209
    %v2757 = vpop.permute.xlu0 %2756
    %2759 = vset.pattern.permute.xlu0 8
    %2760 = vperm.xlu0 %2759, %v210
    %v2761 = vpop.permute.xlu0 %2760
    %2763 = vset.pattern.permute.xlu0 8
    %2764 = vperm.xlu0 %2763, %v211
    %v2765 = vpop.permute.xlu0 %2764
    %2767 = vset.pattern.permute.xlu0 8
    %2768 = vperm.xlu0 %2767, %v212
    %v2769 = vpop.permute.xlu0 %2768
    %v2771 = vperm.slane %v214, 0
    %v2772 = vmul.f32 %v2577, %v2771
    %v2773 = vmul.f32 %v2581, %v2771
    %v2774 = vmul.f32 %v2585, %v2771
    %v2775 = vmul.f32 %v2589, %v2771
    %v2776 = vmul.f32 %v2593, %v2771
    %v2777 = vmul.f32 %v2597, %v2771
    %v2778 = vmul.f32 %v2601, %v2771
    %v2779 = vmul.f32 %v2605, %v2771
    %v2780 = vmul.f32 %v2609, %v2771
    %v2781 = vmul.f32 %v2613, %v2771
    %v2782 = vmul.f32 %v2617, %v2771
    %v2783 = vmul.f32 %v2621, %v2771
    %v2784 = vmul.f32 %v2625, %v2771
    %v2785 = vmul.f32 %v2629, %v2771
    %v2786 = vmul.f32 %v2633, %v2771
    %v2787 = vmul.f32 %v2637, %v2771
    %v2788 = vmul.f32 %v2641, %v2771
    %v2789 = vmul.f32 %v2645, %v2771
    %v2790 = vmul.f32 %v2649, %v2771
    %v2791 = vmul.f32 %v2653, %v2771
    %v2792 = vmul.f32 %v2657, %v2771
    %v2793 = vmul.f32 %v2661, %v2771
    %v2794 = vmul.f32 %v2665, %v2771
    %v2795 = vmul.f32 %v2669, %v2771
    %v2796 = vmul.f32 %v2673, %v2771
    %v2797 = vmul.f32 %v2677, %v2771
    %v2798 = vmul.f32 %v2681, %v2771
    %v2799 = vmul.f32 %v2685, %v2771
    %v2800 = vmul.f32 %v2689, %v2771
    %v2801 = vmul.f32 %v2693, %v2771
    %v2802 = vmul.f32 %v2697, %v2771
    %v2803 = vmul.f32 %v2701, %v2771
    %v2804 = vmul.f32 %v2705, %v2771
    %v2805 = vmul.f32 %v2709, %v2771
    %v2806 = vmul.f32 %v2713, %v2771
    %v2807 = vmul.f32 %v2717, %v2771
    %v2808 = vmul.f32 %v2721, %v2771
    %v2809 = vmul.f32 %v2725, %v2771
    %v2810 = vmul.f32 %v2729, %v2771
    %v2811 = vmul.f32 %v2733, %v2771
    %v2812 = vmul.f32 %v2737, %v2771
    %v2813 = vmul.f32 %v2741, %v2771
    %v2814 = vmul.f32 %v2745, %v2771
    %v2815 = vmul.f32 %v2749, %v2771
    %v2816 = vmul.f32 %v2753, %v2771
    %v2817 = vmul.f32 %v2757, %v2771
    %v2818 = vmul.f32 %v2761, %v2771
    %v2819 = vmul.f32 %v2765, %v2771
    %v2820 = vmul.f32 %v2769, %v2771
    %v2821 = vadd.f32 %v2526, %v2772
    %v2822 = vadd.f32 %v2527, %v2773
    %v2823 = vadd.f32 %v2528, %v2774
    %v2824 = vadd.f32 %v2529, %v2775
    %v2825 = vadd.f32 %v2530, %v2776
    %v2826 = vadd.f32 %v2531, %v2777
    %v2827 = vadd.f32 %v2532, %v2778
    %v2828 = vadd.f32 %v2533, %v2779
    %v2829 = vadd.f32 %v2534, %v2780
    %v2830 = vadd.f32 %v2535, %v2781
    %v2831 = vadd.f32 %v2536, %v2782
    %v2832 = vadd.f32 %v2537, %v2783
    %v2833 = vadd.f32 %v2538, %v2784
    %v2834 = vadd.f32 %v2539, %v2785
    %v2835 = vadd.f32 %v2540, %v2786
    %v2836 = vadd.f32 %v2541, %v2787
    %v2837 = vadd.f32 %v2542, %v2788
    %v2838 = vadd.f32 %v2543, %v2789
    %v2839 = vadd.f32 %v2544, %v2790
    %v2840 = vadd.f32 %v2545, %v2791
    %v2841 = vadd.f32 %v2546, %v2792
    %v2842 = vadd.f32 %v2547, %v2793
    %v2843 = vadd.f32 %v2548, %v2794
    %v2844 = vadd.f32 %v2549, %v2795
    %v2845 = vadd.f32 %v2550, %v2796
    %v2846 = vadd.f32 %v2551, %v2797
    %v2847 = vadd.f32 %v2552, %v2798
    %v2848 = vadd.f32 %v2553, %v2799
    %v2849 = vadd.f32 %v2554, %v2800
    %v2850 = vadd.f32 %v2555, %v2801
    %v2851 = vadd.f32 %v2556, %v2802
    %v2852 = vadd.f32 %v2557, %v2803
    %v2853 = vadd.f32 %v2558, %v2804
    %v2854 = vadd.f32 %v2559, %v2805
    %v2855 = vadd.f32 %v2560, %v2806
    %v2856 = vadd.f32 %v2561, %v2807
    %v2857 = vadd.f32 %v2562, %v2808
    %v2858 = vadd.f32 %v2563, %v2809
    %v2859 = vadd.f32 %v2564, %v2810
    %v2860 = vadd.f32 %v2565, %v2811
    %v2861 = vadd.f32 %v2566, %v2812
    %v2862 = vadd.f32 %v2567, %v2813
    %v2863 = vadd.f32 %v2568, %v2814
    %v2864 = vadd.f32 %v2569, %v2815
    %v2865 = vadd.f32 %v2570, %v2816
    %v2866 = vadd.f32 %v2571, %v2817
    %v2867 = vadd.f32 %v2572, %v2818
    %v2868 = vadd.f32 %v2573, %v2819
    %v2869 = vadd.f32 %v2574, %v2820
    %v2870 = vld [vmem:[%s2] sm:$0x1]
    %v2872 = vperm.slane %v2870, 0
    %v2874 = vadd.f32 %v2821, %v2872
    %v2875 = vadd.f32 %v2822, %v2872
    %v2876 = vadd.f32 %v2823, %v2872
    %v2877 = vadd.f32 %v2824, %v2872
    %v2878 = vadd.f32 %v2825, %v2872
    %v2879 = vadd.f32 %v2826, %v2872
    %v2880 = vadd.f32 %v2827, %v2872
    %v2881 = vadd.f32 %v2828, %v2872
    %v2882 = vadd.f32 %v2829, %v2872
    %v2883 = vadd.f32 %v2830, %v2872
    %v2884 = vadd.f32 %v2831, %v2872
    %v2885 = vadd.f32 %v2832, %v2872
    %v2886 = vadd.f32 %v2833, %v2872
    %v2887 = vadd.f32 %v2834, %v2872
    %v2888 = vadd.f32 %v2835, %v2872
    %v2889 = vadd.f32 %v2836, %v2872
    %v2890 = vadd.f32 %v2837, %v2872
    %v2891 = vadd.f32 %v2838, %v2872
    %v2892 = vadd.f32 %v2839, %v2872
    %v2893 = vadd.f32 %v2840, %v2872
    %v2894 = vadd.f32 %v2841, %v2872
    %v2895 = vadd.f32 %v2842, %v2872
    %v2896 = vadd.f32 %v2843, %v2872
    %v2897 = vadd.f32 %v2844, %v2872
    %v2898 = vadd.f32 %v2845, %v2872
    %v2899 = vadd.f32 %v2846, %v2872
    %v2900 = vadd.f32 %v2847, %v2872
    %v2901 = vadd.f32 %v2848, %v2872
    %v2902 = vadd.f32 %v2849, %v2872
    %v2903 = vadd.f32 %v2850, %v2872
    %v2904 = vadd.f32 %v2851, %v2872
    %v2905 = vadd.f32 %v2852, %v2872
    %v2906 = vadd.f32 %v2853, %v2872
    %v2907 = vadd.f32 %v2854, %v2872
    %v2908 = vadd.f32 %v2855, %v2872
    %v2909 = vadd.f32 %v2856, %v2872
    %v2910 = vadd.f32 %v2857, %v2872
    %v2911 = vadd.f32 %v2858, %v2872
    %v2912 = vadd.f32 %v2859, %v2872
    %v2913 = vadd.f32 %v2860, %v2872
    %v2914 = vadd.f32 %v2861, %v2872
    %v2915 = vadd.f32 %v2862, %v2872
    %v2916 = vadd.f32 %v2863, %v2872
    %v2917 = vadd.f32 %v2864, %v2872
    %v2918 = vadd.f32 %v2865, %v2872
    %v2919 = vadd.f32 %v2866, %v2872
    %v2920 = vadd.f32 %v2867, %v2872
    %v2921 = vadd.f32 %v2868, %v2872
    %v2922 = vadd.f32 %v2869, %v2872
    %v2923 = vmax.f32 %v2874, 0.0
    %v2924 = vmax.f32 %v2875, 0.0
    %v2925 = vmax.f32 %v2876, 0.0
    %v2926 = vmax.f32 %v2877, 0.0
    %v2927 = vmax.f32 %v2878, 0.0
    %v2928 = vmax.f32 %v2879, 0.0
    %v2929 = vmax.f32 %v2880, 0.0
    %v2930 = vmax.f32 %v2881, 0.0
    %v2931 = vmax.f32 %v2882, 0.0
    %v2932 = vmax.f32 %v2883, 0.0
    %v2933 = vmax.f32 %v2884, 0.0
    %v2934 = vmax.f32 %v2885, 0.0
    %v2935 = vmax.f32 %v2886, 0.0
    %v2936 = vmax.f32 %v2887, 0.0
    %v2937 = vmax.f32 %v2888, 0.0
    %v2938 = vmax.f32 %v2889, 0.0
    %v2939 = vmax.f32 %v2890, 0.0
    %v2940 = vmax.f32 %v2891, 0.0
    %v2941 = vmax.f32 %v2892, 0.0
    %v2942 = vmax.f32 %v2893, 0.0
    %v2943 = vmax.f32 %v2894, 0.0
    %v2944 = vmax.f32 %v2895, 0.0
    %v2945 = vmax.f32 %v2896, 0.0
    %v2946 = vmax.f32 %v2897, 0.0
    %v2947 = vmax.f32 %v2898, 0.0
    %v2948 = vmax.f32 %v2899, 0.0
    %v2949 = vmax.f32 %v2900, 0.0
    %v2950 = vmax.f32 %v2901, 0.0
    %v2951 = vmax.f32 %v2902, 0.0
    %v2952 = vmax.f32 %v2903, 0.0
    %v2953 = vmax.f32 %v2904, 0.0
    %v2954 = vmax.f32 %v2905, 0.0
    %v2955 = vmax.f32 %v2906, 0.0
    %v2956 = vmax.f32 %v2907, 0.0
    %v2957 = vmax.f32 %v2908, 0.0
    %v2958 = vmax.f32 %v2909, 0.0
    %v2959 = vmax.f32 %v2910, 0.0
    %v2960 = vmax.f32 %v2911, 0.0
    %v2961 = vmax.f32 %v2912, 0.0
    %v2962 = vmax.f32 %v2913, 0.0
    %v2963 = vmax.f32 %v2914, 0.0
    %v2964 = vmax.f32 %v2915, 0.0
    %v2965 = vmax.f32 %v2916, 0.0
    %v2966 = vmax.f32 %v2917, 0.0
    %v2967 = vmax.f32 %v2918, 0.0
    %v2968 = vmax.f32 %v2919, 0.0
    %v2969 = vmax.f32 %v2920, 0.0
    %v2970 = vmax.f32 %v2921, 0.0
    %v2971 = vmax.f32 %v2922, 0.0
    %vm2972 = vcmask 261120
    %2973 = vst.msk [vmem:[#allocation2] sm:$0xff] %vm2972, %v2923
    %2974 = vst.msk [vmem:[#allocation2 + $0x8] sm:$0xff] %vm2972, %v2924
    %2975 = vst.msk [vmem:[#allocation2 + $0x10] sm:$0xff] %vm2972, %v2925
    %2976 = vst.msk [vmem:[#allocation2 + $0x18] sm:$0xff] %vm2972, %v2926
    %2977 = vst.msk [vmem:[#allocation2 + $0x20] sm:$0xff] %vm2972, %v2927
    %2978 = vst.msk [vmem:[#allocation2 + $0x28] sm:$0xff] %vm2972, %v2928
    %2979 = vst.msk [vmem:[#allocation2 + $0x30] sm:$0xff] %vm2972, %v2929
    %2980 = vst.msk [vmem:[#allocation2 + $0x38] sm:$0xff] %vm2972, %v2930
    %2981 = vst.msk [vmem:[#allocation2 + $0x40] sm:$0xff] %vm2972, %v2931
    %2982 = vst.msk [vmem:[#allocation2 + $0x48] sm:$0xff] %vm2972, %v2932
    %2983 = vst.msk [vmem:[#allocation2 + $0x50] sm:$0xff] %vm2972, %v2933
    %2984 = vst.msk [vmem:[#allocation2 + $0x58] sm:$0xff] %vm2972, %v2934
    %2985 = vst.msk [vmem:[#allocation2 + $0x60] sm:$0xff] %vm2972, %v2935
    %2986 = vst.msk [vmem:[#allocation2 + $0x68] sm:$0xff] %vm2972, %v2936
    %2987 = vst.msk [vmem:[#allocation2 + $0x70] sm:$0xff] %vm2972, %v2937
    %2988 = vst.msk [vmem:[#allocation2 + $0x78] sm:$0xff] %vm2972, %v2938
    %2989 = vst.msk [vmem:[#allocation2 + $0x80] sm:$0xff] %vm2972, %v2939
    %2990 = vst.msk [vmem:[#allocation2 + $0x88] sm:$0xff] %vm2972, %v2940
    %2991 = vst.msk [vmem:[#allocation2 + $0x90] sm:$0xff] %vm2972, %v2941
    %2992 = vst.msk [vmem:[#allocation2 + $0x98] sm:$0xff] %vm2972, %v2942
    %2993 = vst.msk [vmem:[#allocation2 + $0xa0] sm:$0xff] %vm2972, %v2943
    %2994 = vst.msk [vmem:[#allocation2 + $0xa8] sm:$0xff] %vm2972, %v2944
    %2995 = vst.msk [vmem:[#allocation2 + $0xb0] sm:$0xff] %vm2972, %v2945
    %2996 = vst.msk [vmem:[#allocation2 + $0xb8] sm:$0xff] %vm2972, %v2946
    %2997 = vst.msk [vmem:[#allocation2 + $0xc0] sm:$0xff] %vm2972, %v2947
    %2998 = vst.msk [vmem:[#allocation2 + $0xc8] sm:$0xff] %vm2972, %v2948
    %2999 = vst.msk [vmem:[#allocation2 + $0xd0] sm:$0xff] %vm2972, %v2949
    %3000 = vst.msk [vmem:[#allocation2 + $0xd8] sm:$0xff] %vm2972, %v2950
    %3001 = vst.msk [vmem:[#allocation2 + $0xe0] sm:$0xff] %vm2972, %v2951
    %3002 = vst.msk [vmem:[#allocation2 + $0xe8] sm:$0xff] %vm2972, %v2952
    %3003 = vst.msk [vmem:[#allocation2 + $0xf0] sm:$0xff] %vm2972, %v2953
    %3004 = vst.msk [vmem:[#allocation2 + $0xf8] sm:$0xff] %vm2972, %v2954
    %3005 = vst.msk [vmem:[#allocation2 + $0x100] sm:$0xff] %vm2972, %v2955
    %3006 = vst.msk [vmem:[#allocation2 + $0x108] sm:$0xff] %vm2972, %v2956
    %3007 = vst.msk [vmem:[#allocation2 + $0x110] sm:$0xff] %vm2972, %v2957
    %3008 = vst.msk [vmem:[#allocation2 + $0x118] sm:$0xff] %vm2972, %v2958
    %3009 = vst.msk [vmem:[#allocation2 + $0x120] sm:$0xff] %vm2972, %v2959
    %3010 = vst.msk [vmem:[#allocation2 + $0x128] sm:$0xff] %vm2972, %v2960
    %3011 = vst.msk [vmem:[#allocation2 + $0x130] sm:$0xff] %vm2972, %v2961
    %3012 = vst.msk [vmem:[#allocation2 + $0x138] sm:$0xff] %vm2972, %v2962
    %3013 = vst.msk [vmem:[#allocation2 + $0x140] sm:$0xff] %vm2972, %v2963
    %3014 = vst.msk [vmem:[#allocation2 + $0x148] sm:$0xff] %vm2972, %v2964
    %3015 = vst.msk [vmem:[#allocation2 + $0x150] sm:$0xff] %vm2972, %v2965
    %3016 = vst.msk [vmem:[#allocation2 + $0x158] sm:$0xff] %vm2972, %v2966
    %3017 = vst.msk [vmem:[#allocation2 + $0x160] sm:$0xff] %vm2972, %v2967
    %3018 = vst.msk [vmem:[#allocation2 + $0x168] sm:$0xff] %vm2972, %v2968
    %3019 = vst.msk [vmem:[#allocation2 + $0x170] sm:$0xff] %vm2972, %v2969
    %3020 = vst.msk [vmem:[#allocation2 + $0x178] sm:$0xff] %vm2972, %v2970
    %3021 = vst.msk [vmem:[#allocation2 + $0x180] sm:$0xff] %vm2972, %v2971
    %v3022 = vld [vmem:[#allocation2] sm:$0xff]
    %v3023 = vld [vmem:[#allocation2 + $0x8] sm:$0xff]
    %v3024 = vld [vmem:[#allocation2 + $0x10] sm:$0xff]
    %v3025 = vld [vmem:[#allocation2 + $0x18] sm:$0xff]
    %v3026 = vld [vmem:[#allocation2 + $0x20] sm:$0xff]
    %v3027 = vld [vmem:[#allocation2 + $0x28] sm:$0x1]
    %3028 = vst.msk [vmem:[#allocation3] sm:$0xff] %vm2972, %v3022
    %3029 = vst.msk [vmem:[#allocation3 + $0x20] sm:$0xff] %vm2972, %v3023
    %3030 = vst.msk [vmem:[#allocation3 + $0x40] sm:$0xff] %vm2972, %v3024
    %3031 = vst.msk [vmem:[#allocation3 + $0x60] sm:$0xff] %vm2972, %v3025
    %3032 = vst.msk [vmem:[#allocation3 + $0x80] sm:$0xff] %vm2972, %v3026
    %vm3033 = vcmask 253952
    %3034 = vst.msk [vmem:[#allocation3 + $0xa0] sm:$0x1] %vm3033, %v3027
    %v3035 = vld [vmem:[#allocation2 + $0x62] sm:$0xff]
    %v3036 = vld [vmem:[#allocation2 + $0x6a] sm:$0xff]
    %v3037 = vld [vmem:[#allocation2 + $0x72] sm:$0xff]
    %v3038 = vld [vmem:[#allocation2 + $0x7a] sm:$0xff]
    %v3039 = vld [vmem:[#allocation2 + $0x82] sm:$0xff]
    %v3040 = vld [vmem:[#allocation2 + $0x8a] sm:$0x1]
    %3047 = vrot.lane.b32.xlu0 %v3035, 32
    %v3048 = vpop.permute.xlu0 %3047
    %3049 = vrot.lane.b32.xlu0 %v3036, 32
    %v3050 = vpop.permute.xlu0 %3049
    %3051 = vrot.lane.b32.xlu0 %v3037, 32
    %v3052 = vpop.permute.xlu0 %3051
    %3053 = vrot.lane.b32.xlu0 %v3038, 32
    %v3054 = vpop.permute.xlu0 %3053
    %3055 = vrot.lane.b32.xlu0 %v3039, 32
    %v3056 = vpop.permute.xlu0 %3055
    %3057 = vrot.lane.b32.xlu0 %v3040, 32
    %v3058 = vpop.permute.xlu0 %3057
    %vm3065 = vcmask 523520
    %3066 = vst.msk [vmem:[#allocation3] sm:$0xff] %vm3065, %v3048
    %3067 = vst.msk [vmem:[#allocation3 + $0x20] sm:$0xff] %vm3065, %v3050
    %3068 = vst.msk [vmem:[#allocation3 + $0x40] sm:$0xff] %vm3065, %v3052
    %3069 = vst.msk [vmem:[#allocation3 + $0x60] sm:$0xff] %vm3065, %v3054
    %3070 = vst.msk [vmem:[#allocation3 + $0x80] sm:$0xff] %vm3065, %v3056
    %vm3071 = vcmask 516352
    %3072 = vst.msk [vmem:[#allocation3 + $0xa0] sm:$0x1] %vm3071, %v3058
    %v3073 = vld [vmem:[#allocation2 + $0x1] sm:$0xff]
    %v3074 = vld [vmem:[#allocation2 + $0x9] sm:$0xff]
    %v3075 = vld [vmem:[#allocation2 + $0x11] sm:$0xff]
    %v3076 = vld [vmem:[#allocation2 + $0x19] sm:$0xff]
    %v3077 = vld [vmem:[#allocation2 + $0x21] sm:$0xff]
    %v3078 = vld [vmem:[#allocation2 + $0x29] sm:$0x1]
    %3085 = vrot.lane.b32.xlu0 %v3073, 64
    %v3086 = vpop.permute.xlu0 %3085
    %3087 = vrot.lane.b32.xlu0 %v3074, 64
    %v3088 = vpop.permute.xlu0 %3087
    %3089 = vrot.lane.b32.xlu0 %v3075, 64
    %v3090 = vpop.permute.xlu0 %3089
    %3091 = vrot.lane.b32.xlu0 %v3076, 64
    %v3092 = vpop.permute.xlu0 %3091
    %3093 = vrot.lane.b32.xlu0 %v3077, 64
    %v3094 = vpop.permute.xlu0 %3093
    %3095 = vrot.lane.b32.xlu0 %v3078, 64
    %v3096 = vpop.permute.xlu0 %3095
    %vm3103 = vcmask 785920
    %3104 = vst.msk [vmem:[#allocation3] sm:$0xff] %vm3103, %v3086
    %3105 = vst.msk [vmem:[#allocation3 + $0x20] sm:$0xff] %vm3103, %v3088
    %3106 = vst.msk [vmem:[#allocation3 + $0x40] sm:$0xff] %vm3103, %v3090
    %3107 = vst.msk [vmem:[#allocation3 + $0x60] sm:$0xff] %vm3103, %v3092
    %3108 = vst.msk [vmem:[#allocation3 + $0x80] sm:$0xff] %vm3103, %v3094
    %vm3109 = vcmask 778752
    %3110 = vst.msk [vmem:[#allocation3 + $0xa0] sm:$0x1] %vm3109, %v3096
    %v3111 = vld [vmem:[#allocation2 + $0x63] sm:$0xff]
    %v3112 = vld [vmem:[#allocation2 + $0x6b] sm:$0xff]
    %v3113 = vld [vmem:[#allocation2 + $0x73] sm:$0xff]
    %v3114 = vld [vmem:[#allocation2 + $0x7b] sm:$0xff]
    %v3115 = vld [vmem:[#allocation2 + $0x83] sm:$0xff]
    %v3116 = vld [vmem:[#allocation2 + $0x8b] sm:$0x1]
    %3123 = vrot.lane.b32.xlu0 %v3111, 96
    %v3124 = vpop.permute.xlu0 %3123
    %3125 = vrot.lane.b32.xlu0 %v3112, 96
    %v3126 = vpop.permute.xlu0 %3125
    %3127 = vrot.lane.b32.xlu0 %v3113, 96
    %v3128 = vpop.permute.xlu0 %3127
    %3129 = vrot.lane.b32.xlu0 %v3114, 96
    %v3130 = vpop.permute.xlu0 %3129
    %3131 = vrot.lane.b32.xlu0 %v3115, 96
    %v3132 = vpop.permute.xlu0 %3131
    %3133 = vrot.lane.b32.xlu0 %v3116, 96
    %v3134 = vpop.permute.xlu0 %3133
    %vm3141 = vcmask 1048320
    %3142 = vst.msk [vmem:[#allocation3] sm:$0xff] %vm3141, %v3124
    %3143 = vst.msk [vmem:[#allocation3 + $0x20] sm:$0xff] %vm3141, %v3126
    %3144 = vst.msk [vmem:[#allocation3 + $0x40] sm:$0xff] %vm3141, %v3128
    %3145 = vst.msk [vmem:[#allocation3 + $0x60] sm:$0xff] %vm3141, %v3130
    %3146 = vst.msk [vmem:[#allocation3 + $0x80] sm:$0xff] %vm3141, %v3132
    %vm3147 = vcmask 1041152
    %3148 = vst.msk [vmem:[#allocation3 + $0xa0] sm:$0x1] %vm3147, %v3134
    %v3149 = vld [vmem:[#allocation2 + $0xc4] sm:$0xff]
    %v3150 = vld [vmem:[#allocation2 + $0xcc] sm:$0xff]
    %v3151 = vld [vmem:[#allocation2 + $0xd4] sm:$0xff]
    %v3152 = vld [vmem:[#allocation2 + $0xdc] sm:$0xff]
    %v3153 = vld [vmem:[#allocation2 + $0xe4] sm:$0xff]
    %v3154 = vld [vmem:[#allocation2 + $0xec] sm:$0x1]
    %3155 = vst.msk [vmem:[#allocation3 + $0x8] sm:$0xff] %vm2972, %v3149
    %3156 = vst.msk [vmem:[#allocation3 + $0x28] sm:$0xff] %vm2972, %v3150
    %3157 = vst.msk [vmem:[#allocation3 + $0x48] sm:$0xff] %vm2972, %v3151
    %3158 = vst.msk [vmem:[#allocation3 + $0x68] sm:$0xff] %vm2972, %v3152
    %3159 = vst.msk [vmem:[#allocation3 + $0x88] sm:$0xff] %vm2972, %v3153
    %3160 = vst.msk [vmem:[#allocation3 + $0xa8] sm:$0x1] %vm3033, %v3154
    %v3161 = vld [vmem:[#allocation2 + $0x126] sm:$0xff]
    %v3162 = vld [vmem:[#allocation2 + $0x12e] sm:$0xff]
    %v3163 = vld [vmem:[#allocation2 + $0x136] sm:$0xff]
    %v3164 = vld [vmem:[#allocation2 + $0x13e] sm:$0xff]
    %v3165 = vld [vmem:[#allocation2 + $0x146] sm:$0xff]
    %v3166 = vld [vmem:[#allocation2 + $0x14e] sm:$0x1]
    %3173 = vrot.lane.b32.xlu0 %v3161, 32
    %v3174 = vpop.permute.xlu0 %3173
    %3175 = vrot.lane.b32.xlu0 %v3162, 32
    %v3176 = vpop.permute.xlu0 %3175
    %3177 = vrot.lane.b32.xlu0 %v3163, 32
    %v3178 = vpop.permute.xlu0 %3177
    %3179 = vrot.lane.b32.xlu0 %v3164, 32
    %v3180 = vpop.permute.xlu0 %3179
    %3181 = vrot.lane.b32.xlu0 %v3165, 32
    %v3182 = vpop.permute.xlu0 %3181
    %3183 = vrot.lane.b32.xlu0 %v3166, 32
    %v3184 = vpop.permute.xlu0 %3183
    %3191 = vst.msk [vmem:[#allocation3 + $0x8] sm:$0xff] %vm3065, %v3174
    %3192 = vst.msk [vmem:[#allocation3 + $0x28] sm:$0xff] %vm3065, %v3176
    %3193 = vst.msk [vmem:[#allocation3 + $0x48] sm:$0xff] %vm3065, %v3178
    %3194 = vst.msk [vmem:[#allocation3 + $0x68] sm:$0xff] %vm3065, %v3180
    %3195 = vst.msk [vmem:[#allocation3 + $0x88] sm:$0xff] %vm3065, %v3182
    %3196 = vst.msk [vmem:[#allocation3 + $0xa8] sm:$0x1] %vm3071, %v3184
    %v3197 = vld [vmem:[#allocation2 + $0xc5] sm:$0xff]
    %v3198 = vld [vmem:[#allocation2 + $0xcd] sm:$0xff]
    %v3199 = vld [vmem:[#allocation2 + $0xd5] sm:$0xff]
    %v3200 = vld [vmem:[#allocation2 + $0xdd] sm:$0xff]
    %v3201 = vld [vmem:[#allocation2 + $0xe5] sm:$0xff]
    %v3202 = vld [vmem:[#allocation2 + $0xed] sm:$0x1]
    %3209 = vrot.lane.b32.xlu0 %v3197, 64
    %v3210 = vpop.permute.xlu0 %3209
    %3211 = vrot.lane.b32.xlu0 %v3198, 64
    %v3212 = vpop.permute.xlu0 %3211
    %3213 = vrot.lane.b32.xlu0 %v3199, 64
    %v3214 = vpop.permute.xlu0 %3213
    %3215 = vrot.lane.b32.xlu0 %v3200, 64
    %v3216 = vpop.permute.xlu0 %3215
    %3217 = vrot.lane.b32.xlu0 %v3201, 64
    %v3218 = vpop.permute.xlu0 %3217
    %3219 = vrot.lane.b32.xlu0 %v3202, 64
    %v3220 = vpop.permute.xlu0 %3219
    %3227 = vst.msk [vmem:[#allocation3 + $0x8] sm:$0xff] %vm3103, %v3210
    %3228 = vst.msk [vmem:[#allocation3 + $0x28] sm:$0xff] %vm3103, %v3212
    %3229 = vst.msk [vmem:[#allocation3 + $0x48] sm:$0xff] %vm3103, %v3214
    %3230 = vst.msk [vmem:[#allocation3 + $0x68] sm:$0xff] %vm3103, %v3216
    %3231 = vst.msk [vmem:[#allocation3 + $0x88] sm:$0xff] %vm3103, %v3218
    %3232 = vst.msk [vmem:[#allocation3 + $0xa8] sm:$0x1] %vm3109, %v3220
    %v3233 = vld [vmem:[#allocation2 + $0x127] sm:$0xff]
    %v3234 = vld [vmem:[#allocation2 + $0x12f] sm:$0xff]
    %v3235 = vld [vmem:[#allocation2 + $0x137] sm:$0xff]
    %v3236 = vld [vmem:[#allocation2 + $0x13f] sm:$0xff]
    %v3237 = vld [vmem:[#allocation2 + $0x147] sm:$0xff]
    %v3238 = vld [vmem:[#allocation2 + $0x14f] sm:$0x1]
    %3245 = vrot.lane.b32.xlu0 %v3233, 96
    %v3246 = vpop.permute.xlu0 %3245
    %3247 = vrot.lane.b32.xlu0 %v3234, 96
    %v3248 = vpop.permute.xlu0 %3247
    %3249 = vrot.lane.b32.xlu0 %v3235, 96
    %v3250 = vpop.permute.xlu0 %3249
    %3251 = vrot.lane.b32.xlu0 %v3236, 96
    %v3252 = vpop.permute.xlu0 %3251
    %3253 = vrot.lane.b32.xlu0 %v3237, 96
    %v3254 = vpop.permute.xlu0 %3253
    %3255 = vrot.lane.b32.xlu0 %v3238, 96
    %v3256 = vpop.permute.xlu0 %3255
    %3263 = vst.msk [vmem:[#allocation3 + $0x8] sm:$0xff] %vm3141, %v3246
    %3264 = vst.msk [vmem:[#allocation3 + $0x28] sm:$0xff] %vm3141, %v3248
    %3265 = vst.msk [vmem:[#allocation3 + $0x48] sm:$0xff] %vm3141, %v3250
    %3266 = vst.msk [vmem:[#allocation3 + $0x68] sm:$0xff] %vm3141, %v3252
    %3267 = vst.msk [vmem:[#allocation3 + $0x88] sm:$0xff] %vm3141, %v3254
    %3268 = vst.msk [vmem:[#allocation3 + $0xa8] sm:$0x1] %vm3147, %v3256
    %v3269 = vld [vmem:[#allocation2 + $0x7] sm:$0xff]
    %v3270 = vld [vmem:[#allocation2 + $0xf] sm:$0xff]
    %v3271 = vld [vmem:[#allocation2 + $0x17] sm:$0xff]
    %v3272 = vld [vmem:[#allocation2 + $0x1f] sm:$0xff]
    %v3273 = vld [vmem:[#allocation2 + $0x27] sm:$0xff]
    %v3274 = vld [vmem:[#allocation2 + $0x2f] sm:$0x1]
    %3275 = vst.msk [vmem:[#allocation3 + $0x10] sm:$0xff] %vm2972, %v3269
    %3276 = vst.msk [vmem:[#allocation3 + $0x30] sm:$0xff] %vm2972, %v3270
    %3277 = vst.msk [vmem:[#allocation3 + $0x50] sm:$0xff] %vm2972, %v3271
    %3278 = vst.msk [vmem:[#allocation3 + $0x70] sm:$0xff] %vm2972, %v3272
    %3279 = vst.msk [vmem:[#allocation3 + $0x90] sm:$0xff] %vm2972, %v3273
    %3280 = vst.msk [vmem:[#allocation3 + $0xb0] sm:$0x1] %vm3033, %v3274
    %v3281 = vld [vmem:[#allocation2 + $0x69] sm:$0xff]
    %v3282 = vld [vmem:[#allocation2 + $0x71] sm:$0xff]
    %v3283 = vld [vmem:[#allocation2 + $0x79] sm:$0xff]
    %v3284 = vld [vmem:[#allocation2 + $0x81] sm:$0xff]
    %v3285 = vld [vmem:[#allocation2 + $0x89] sm:$0xff]
    %v3286 = vld [vmem:[#allocation2 + $0x91] sm:$0x1]
    %3293 = vrot.lane.b32.xlu0 %v3281, 32
    %v3294 = vpop.permute.xlu0 %3293
    %3295 = vrot.lane.b32.xlu0 %v3282, 32
    %v3296 = vpop.permute.xlu0 %3295
    %3297 = vrot.lane.b32.xlu0 %v3283, 32
    %v3298 = vpop.permute.xlu0 %3297
    %3299 = vrot.lane.b32.xlu0 %v3284, 32
    %v3300 = vpop.permute.xlu0 %3299
    %3301 = vrot.lane.b32.xlu0 %v3285, 32
    %v3302 = vpop.permute.xlu0 %3301
    %3303 = vrot.lane.b32.xlu0 %v3286, 32
    %v3304 = vpop.permute.xlu0 %3303
    %3311 = vst.msk [vmem:[#allocation3 + $0x10] sm:$0xff] %vm3065, %v3294
    %3312 = vst.msk [vmem:[#allocation3 + $0x30] sm:$0xff] %vm3065, %v3296
    %3313 = vst.msk [vmem:[#allocation3 + $0x50] sm:$0xff] %vm3065, %v3298
    %3314 = vst.msk [vmem:[#allocation3 + $0x70] sm:$0xff] %vm3065, %v3300
    %3315 = vst.msk [vmem:[#allocation3 + $0x90] sm:$0xff] %vm3065, %v3302
    %3316 = vst.msk [vmem:[#allocation3 + $0xb0] sm:$0x1] %vm3071, %v3304
    %v3317 = vld [vmem:[#allocation2 + $0x8] sm:$0xff]
    %v3318 = vld [vmem:[#allocation2 + $0x10] sm:$0xff]
    %v3319 = vld [vmem:[#allocation2 + $0x18] sm:$0xff]
    %v3320 = vld [vmem:[#allocation2 + $0x20] sm:$0xff]
    %v3321 = vld [vmem:[#allocation2 + $0x28] sm:$0xff]
    %v3322 = vld [vmem:[#allocation2 + $0x30] sm:$0x1]
    %3329 = vrot.lane.b32.xlu0 %v3317, 64
    %v3330 = vpop.permute.xlu0 %3329
    %3331 = vrot.lane.b32.xlu0 %v3318, 64
    %v3332 = vpop.permute.xlu0 %3331
    %3333 = vrot.lane.b32.xlu0 %v3319, 64
    %v3334 = vpop.permute.xlu0 %3333
    %3335 = vrot.lane.b32.xlu0 %v3320, 64
    %v3336 = vpop.permute.xlu0 %3335
    %3337 = vrot.lane.b32.xlu0 %v3321, 64
    %v3338 = vpop.permute.xlu0 %3337
    %3339 = vrot.lane.b32.xlu0 %v3322, 64
    %v3340 = vpop.permute.xlu0 %3339
    %3347 = vst.msk [vmem:[#allocation3 + $0x10] sm:$0xff] %vm3103, %v3330
    %3348 = vst.msk [vmem:[#allocation3 + $0x30] sm:$0xff] %vm3103, %v3332
    %3349 = vst.msk [vmem:[#allocation3 + $0x50] sm:$0xff] %vm3103, %v3334
    %3350 = vst.msk [vmem:[#allocation3 + $0x70] sm:$0xff] %vm3103, %v3336
    %3351 = vst.msk [vmem:[#allocation3 + $0x90] sm:$0xff] %vm3103, %v3338
    %3352 = vst.msk [vmem:[#allocation3 + $0xb0] sm:$0x1] %vm3109, %v3340
    %v3353 = vld [vmem:[#allocation2 + $0x6a] sm:$0xff]
    %v3354 = vld [vmem:[#allocation2 + $0x72] sm:$0xff]
    %v3355 = vld [vmem:[#allocation2 + $0x7a] sm:$0xff]
    %v3356 = vld [vmem:[#allocation2 + $0x82] sm:$0xff]
    %v3357 = vld [vmem:[#allocation2 + $0x8a] sm:$0xff]
    %v3358 = vld [vmem:[#allocation2 + $0x92] sm:$0x1]
    %3365 = vrot.lane.b32.xlu0 %v3353, 96
    %v3366 = vpop.permute.xlu0 %3365
    %3367 = vrot.lane.b32.xlu0 %v3354, 96
    %v3368 = vpop.permute.xlu0 %3367
    %3369 = vrot.lane.b32.xlu0 %v3355, 96
    %v3370 = vpop.permute.xlu0 %3369
    %3371 = vrot.lane.b32.xlu0 %v3356, 96
    %v3372 = vpop.permute.xlu0 %3371
    %3373 = vrot.lane.b32.xlu0 %v3357, 96
    %v3374 = vpop.permute.xlu0 %3373
    %3375 = vrot.lane.b32.xlu0 %v3358, 96
    %v3376 = vpop.permute.xlu0 %3375
    %3383 = vst.msk [vmem:[#allocation3 + $0x10] sm:$0xff] %vm3141, %v3366
    %3384 = vst.msk [vmem:[#allocation3 + $0x30] sm:$0xff] %vm3141, %v3368
    %3385 = vst.msk [vmem:[#allocation3 + $0x50] sm:$0xff] %vm3141, %v3370
    %3386 = vst.msk [vmem:[#allocation3 + $0x70] sm:$0xff] %vm3141, %v3372
    %3387 = vst.msk [vmem:[#allocation3 + $0x90] sm:$0xff] %vm3141, %v3374
    %3388 = vst.msk [vmem:[#allocation3 + $0xb0] sm:$0x1] %vm3147, %v3376
    %v3389 = vld [vmem:[#allocation2 + $0xcb] sm:$0xff]
    %v3390 = vld [vmem:[#allocation2 + $0xd3] sm:$0xff]
    %v3391 = vld [vmem:[#allocation2 + $0xdb] sm:$0xff]
    %v3392 = vld [vmem:[#allocation2 + $0xe3] sm:$0xff]
    %v3393 = vld [vmem:[#allocation2 + $0xeb] sm:$0xff]
    %v3394 = vld [vmem:[#allocation2 + $0xf3] sm:$0x1]
    %3395 = vst.msk [vmem:[#allocation3 + $0x18] sm:$0xff] %vm2972, %v3389
    %3396 = vst.msk [vmem:[#allocation3 + $0x38] sm:$0xff] %vm2972, %v3390
    %3397 = vst.msk [vmem:[#allocation3 + $0x58] sm:$0xff] %vm2972, %v3391
    %3398 = vst.msk [vmem:[#allocation3 + $0x78] sm:$0xff] %vm2972, %v3392
    %3399 = vst.msk [vmem:[#allocation3 + $0x98] sm:$0xff] %vm2972, %v3393
    %3400 = vst.msk [vmem:[#allocation3 + $0xb8] sm:$0x1] %vm3033, %v3394
    %v3401 = vld [vmem:[#allocation2 + $0x12d] sm:$0xff]
    %v3402 = vld [vmem:[#allocation2 + $0x135] sm:$0xff]
    %v3403 = vld [vmem:[#allocation2 + $0x13d] sm:$0xff]
    %v3404 = vld [vmem:[#allocation2 + $0x145] sm:$0xff]
    %v3405 = vld [vmem:[#allocation2 + $0x14d] sm:$0xff]
    %v3406 = vld [vmem:[#allocation2 + $0x155] sm:$0x1]
    %3413 = vrot.lane.b32.xlu0 %v3401, 32
    %v3414 = vpop.permute.xlu0 %3413
    %3415 = vrot.lane.b32.xlu0 %v3402, 32
    %v3416 = vpop.permute.xlu0 %3415
    %3417 = vrot.lane.b32.xlu0 %v3403, 32
    %v3418 = vpop.permute.xlu0 %3417
    %3419 = vrot.lane.b32.xlu0 %v3404, 32
    %v3420 = vpop.permute.xlu0 %3419
    %3421 = vrot.lane.b32.xlu0 %v3405, 32
    %v3422 = vpop.permute.xlu0 %3421
    %3423 = vrot.lane.b32.xlu0 %v3406, 32
    %v3424 = vpop.permute.xlu0 %3423
    %3431 = vst.msk [vmem:[#allocation3 + $0x18] sm:$0xff] %vm3065, %v3414
    %3432 = vst.msk [vmem:[#allocation3 + $0x38] sm:$0xff] %vm3065, %v3416
    %3433 = vst.msk [vmem:[#allocation3 + $0x58] sm:$0xff] %vm3065, %v3418
    %3434 = vst.msk [vmem:[#allocation3 + $0x78] sm:$0xff] %vm3065, %v3420
    %3435 = vst.msk [vmem:[#allocation3 + $0x98] sm:$0xff] %vm3065, %v3422
    %3436 = vst.msk [vmem:[#allocation3 + $0xb8] sm:$0x1] %vm3071, %v3424
    %v3437 = vld [vmem:[#allocation2 + $0xcc] sm:$0xff]
    %v3438 = vld [vmem:[#allocation2 + $0xd4] sm:$0xff]
    %v3439 = vld [vmem:[#allocation2 + $0xdc] sm:$0xff]
    %v3440 = vld [vmem:[#allocation2 + $0xe4] sm:$0xff]
    %v3441 = vld [vmem:[#allocation2 + $0xec] sm:$0xff]
    %v3442 = vld [vmem:[#allocation2 + $0xf4] sm:$0x1]
    %3449 = vrot.lane.b32.xlu0 %v3437, 64
    %v3450 = vpop.permute.xlu0 %3449
    %3451 = vrot.lane.b32.xlu0 %v3438, 64
    %v3452 = vpop.permute.xlu0 %3451
    %3453 = vrot.lane.b32.xlu0 %v3439, 64
    %v3454 = vpop.permute.xlu0 %3453
    %3455 = vrot.lane.b32.xlu0 %v3440, 64
    %v3456 = vpop.permute.xlu0 %3455
    %3457 = vrot.lane.b32.xlu0 %v3441, 64
    %v3458 = vpop.permute.xlu0 %3457
    %3459 = vrot.lane.b32.xlu0 %v3442, 64
    %v3460 = vpop.permute.xlu0 %3459
    %3467 = vst.msk [vmem:[#allocation3 + $0x18] sm:$0xff] %vm3103, %v3450
    %3468 = vst.msk [vmem:[#allocation3 + $0x38] sm:$0xff] %vm3103, %v3452
    %3469 = vst.msk [vmem:[#allocation3 + $0x58] sm:$0xff] %vm3103, %v3454
    %3470 = vst.msk [vmem:[#allocation3 + $0x78] sm:$0xff] %vm3103, %v3456
    %3471 = vst.msk [vmem:[#allocation3 + $0x98] sm:$0xff] %vm3103, %v3458
    %3472 = vst.msk [vmem:[#allocation3 + $0xb8] sm:$0x1] %vm3109, %v3460
    %v3473 = vld [vmem:[#allocation2 + $0x12e] sm:$0xff]
    %v3474 = vld [vmem:[#allocation2 + $0x136] sm:$0xff]
    %v3475 = vld [vmem:[#allocation2 + $0x13e] sm:$0xff]
    %v3476 = vld [vmem:[#allocation2 + $0x146] sm:$0xff]
    %v3477 = vld [vmem:[#allocation2 + $0x14e] sm:$0xff]
    %v3478 = vld [vmem:[#allocation2 + $0x156] sm:$0x1]
    %3485 = vrot.lane.b32.xlu0 %v3473, 96
    %v3486 = vpop.permute.xlu0 %3485
    %3487 = vrot.lane.b32.xlu0 %v3474, 96
    %v3488 = vpop.permute.xlu0 %3487
    %3489 = vrot.lane.b32.xlu0 %v3475, 96
    %v3490 = vpop.permute.xlu0 %3489
    %3491 = vrot.lane.b32.xlu0 %v3476, 96
    %v3492 = vpop.permute.xlu0 %3491
    %3493 = vrot.lane.b32.xlu0 %v3477, 96
    %v3494 = vpop.permute.xlu0 %3493
    %3495 = vrot.lane.b32.xlu0 %v3478, 96
    %v3496 = vpop.permute.xlu0 %3495
    %3503 = vst.msk [vmem:[#allocation3 + $0x18] sm:$0xff] %vm3141, %v3486
    %3504 = vst.msk [vmem:[#allocation3 + $0x38] sm:$0xff] %vm3141, %v3488
    %3505 = vst.msk [vmem:[#allocation3 + $0x58] sm:$0xff] %vm3141, %v3490
    %3506 = vst.msk [vmem:[#allocation3 + $0x78] sm:$0xff] %vm3141, %v3492
    %3507 = vst.msk [vmem:[#allocation3 + $0x98] sm:$0xff] %vm3141, %v3494
    %3508 = vst.msk [vmem:[#allocation3 + $0xb8] sm:$0x1] %vm3147, %v3496
    %v3509 = vld [vmem:[#allocation2 + $0x31] sm:$0xff]
    %v3510 = vld [vmem:[#allocation2 + $0x39] sm:$0xff]
    %v3511 = vld [vmem:[#allocation2 + $0x41] sm:$0xff]
    %v3512 = vld [vmem:[#allocation2 + $0x49] sm:$0xff]
    %v3513 = vld [vmem:[#allocation2 + $0x51] sm:$0xff]
    %v3514 = vld [vmem:[#allocation2 + $0x59] sm:$0x1]
    %vm3521 = vcmask 1040384
    %v3522 = vrot.slane %v3509, 7
    %v3523 = vrot.slane %v3510, 7
    %v3524 = vsel %vm3521, %v3522, %v3523
    %v3525 = vrot.slane %v3511, 7
    %v3526 = vsel %vm3521, %v3523, %v3525
    %v3527 = vrot.slane %v3512, 7
    %v3528 = vsel %vm3521, %v3525, %v3527
    %v3529 = vrot.slane %v3513, 7
    %v3530 = vsel %vm3521, %v3527, %v3529
    %v3531 = vrot.slane %v3514, 7
    %v3532 = vsel %vm3521, %v3529, %v3531
    %vm3539 = vcmask 261121
    %3540 = vst.msk [vmem:[#allocation3 + $0xc0] sm:$0xfe] %vm3539, %v3522
    %3541 = vst.msk [vmem:[#allocation3 + $0xe0] sm:$0xff] %vm2972, %v3524
    %3542 = vst.msk [vmem:[#allocation3 + $0x100] sm:$0xff] %vm2972, %v3526
    %3543 = vst.msk [vmem:[#allocation3 + $0x120] sm:$0xff] %vm2972, %v3528
    %3544 = vst.msk [vmem:[#allocation3 + $0x140] sm:$0xff] %vm2972, %v3530
    %vm3545 = vcmask 254976
    %3546 = vst.msk [vmem:[#allocation3 + $0x160] sm:$0x3] %vm3545, %v3532
    %v3547 = vld [vmem:[#allocation2 + $0x93] sm:$0xff]
    %v3548 = vld [vmem:[#allocation2 + $0x9b] sm:$0xff]
    %v3549 = vld [vmem:[#allocation2 + $0xa3] sm:$0xff]
    %v3550 = vld [vmem:[#allocation2 + $0xab] sm:$0xff]
    %v3551 = vld [vmem:[#allocation2 + $0xb3] sm:$0xff]
    %v3552 = vld [vmem:[#allocation2 + $0xbb] sm:$0x1]
    %v3559 = vrot.slane %v3547, 7
    %v3560 = vrot.slane %v3548, 7
    %v3561 = vsel %vm3521, %v3559, %v3560
    %v3562 = vrot.slane %v3549, 7
    %v3563 = vsel %vm3521, %v3560, %v3562
    %v3564 = vrot.slane %v3550, 7
    %v3565 = vsel %vm3521, %v3562, %v3564
    %v3566 = vrot.slane %v3551, 7
    %v3567 = vsel %vm3521, %v3564, %v3566
    %v3568 = vrot.slane %v3552, 7
    %v3569 = vsel %vm3521, %v3566, %v3568
    %3570 = vrot.lane.b32.xlu0 %v3559, 32
    %v3571 = vpop.permute.xlu0 %3570
    %3572 = vrot.lane.b32.xlu0 %v3561, 32
    %v3573 = vpop.permute.xlu0 %3572
    %3574 = vrot.lane.b32.xlu0 %v3563, 32
    %v3575 = vpop.permute.xlu0 %3574
    %3576 = vrot.lane.b32.xlu0 %v3565, 32
    %v3577 = vpop.permute.xlu0 %3576
    %3578 = vrot.lane.b32.xlu0 %v3567, 32
    %v3579 = vpop.permute.xlu0 %3578
    %3580 = vrot.lane.b32.xlu0 %v3569, 32
    %v3581 = vpop.permute.xlu0 %3580
    %vm3588 = vcmask 523521
    %3589 = vst.msk [vmem:[#allocation3 + $0xc0] sm:$0xfe] %vm3588, %v3571
    %3590 = vst.msk [vmem:[#allocation3 + $0xe0] sm:$0xff] %vm3065, %v3573
    %3591 = vst.msk [vmem:[#allocation3 + $0x100] sm:$0xff] %vm3065, %v3575
    %3592 = vst.msk [vmem:[#allocation3 + $0x120] sm:$0xff] %vm3065, %v3577
    %3593 = vst.msk [vmem:[#allocation3 + $0x140] sm:$0xff] %vm3065, %v3579
    %vm3594 = vcmask 517376
    %3595 = vst.msk [vmem:[#allocation3 + $0x160] sm:$0x3] %vm3594, %v3581
    %v3596 = vld [vmem:[#allocation2 + $0x32] sm:$0xff]
    %v3597 = vld [vmem:[#allocation2 + $0x3a] sm:$0xff]
    %v3598 = vld [vmem:[#allocation2 + $0x42] sm:$0xff]
    %v3599 = vld [vmem:[#allocation2 + $0x4a] sm:$0xff]
    %v3600 = vld [vmem:[#allocation2 + $0x52] sm:$0xff]
    %v3601 = vld [vmem:[#allocation2 + $0x5a] sm:$0x1]
    %v3608 = vrot.slane %v3596, 7
    %v3609 = vrot.slane %v3597, 7
    %v3610 = vsel %vm3521, %v3608, %v3609
    %v3611 = vrot.slane %v3598, 7
    %v3612 = vsel %vm3521, %v3609, %v3611
    %v3613 = vrot.slane %v3599, 7
    %v3614 = vsel %vm3521, %v3611, %v3613
    %v3615 = vrot.slane %v3600, 7
    %v3616 = vsel %vm3521, %v3613, %v3615
    %v3617 = vrot.slane %v3601, 7
    %v3618 = vsel %vm3521, %v3615, %v3617
    %3619 = vrot.lane.b32.xlu0 %v3608, 64
    %v3620 = vpop.permute.xlu0 %3619
    %3621 = vrot.lane.b32.xlu0 %v3610, 64
    %v3622 = vpop.permute.xlu0 %3621
    %3623 = vrot.lane.b32.xlu0 %v3612, 64
    %v3624 = vpop.permute.xlu0 %3623
    %3625 = vrot.lane.b32.xlu0 %v3614, 64
    %v3626 = vpop.permute.xlu0 %3625
    %3627 = vrot.lane.b32.xlu0 %v3616, 64
    %v3628 = vpop.permute.xlu0 %3627
    %3629 = vrot.lane.b32.xlu0 %v3618, 64
    %v3630 = vpop.permute.xlu0 %3629
    %vm3637 = vcmask 785921
    %3638 = vst.msk [vmem:[#allocation3 + $0xc0] sm:$0xfe] %vm3637, %v3620
    %3639 = vst.msk [vmem:[#allocation3 + $0xe0] sm:$0xff] %vm3103, %v3622
    %3640 = vst.msk [vmem:[#allocation3 + $0x100] sm:$0xff] %vm3103, %v3624
    %3641 = vst.msk [vmem:[#allocation3 + $0x120] sm:$0xff] %vm3103, %v3626
    %3642 = vst.msk [vmem:[#allocation3 + $0x140] sm:$0xff] %vm3103, %v3628
    %vm3643 = vcmask 779776
    %3644 = vst.msk [vmem:[#allocation3 + $0x160] sm:$0x3] %vm3643, %v3630
    %v3645 = vld [vmem:[#allocation2 + $0x94] sm:$0xff]
    %v3646 = vld [vmem:[#allocation2 + $0x9c] sm:$0xff]
    %v3647 = vld [vmem:[#allocation2 + $0xa4] sm:$0xff]
    %v3648 = vld [vmem:[#allocation2 + $0xac] sm:$0xff]
    %v3649 = vld [vmem:[#allocation2 + $0xb4] sm:$0xff]
    %v3650 = vld [vmem:[#allocation2 + $0xbc] sm:$0x1]
    %v3657 = vrot.slane %v3645, 7
    %v3658 = vrot.slane %v3646, 7
    %v3659 = vsel %vm3521, %v3657, %v3658
    %v3660 = vrot.slane %v3647, 7
    %v3661 = vsel %vm3521, %v3658, %v3660
    %v3662 = vrot.slane %v3648, 7
    %v3663 = vsel %vm3521, %v3660, %v3662
    %v3664 = vrot.slane %v3649, 7
    %v3665 = vsel %vm3521, %v3662, %v3664
    %v3666 = vrot.slane %v3650, 7
    %v3667 = vsel %vm3521, %v3664, %v3666
    %3668 = vrot.lane.b32.xlu0 %v3657, 96
    %v3669 = vpop.permute.xlu0 %3668
    %3670 = vrot.lane.b32.xlu0 %v3659, 96
    %v3671 = vpop.permute.xlu0 %3670
    %3672 = vrot.lane.b32.xlu0 %v3661, 96
    %v3673 = vpop.permute.xlu0 %3672
    %3674 = vrot.lane.b32.xlu0 %v3663, 96
    %v3675 = vpop.permute.xlu0 %3674
    %3676 = vrot.lane.b32.xlu0 %v3665, 96
    %v3677 = vpop.permute.xlu0 %3676
    %3678 = vrot.lane.b32.xlu0 %v3667, 96
    %v3679 = vpop.permute.xlu0 %3678
    %vm3686 = vcmask 1048321
    %3687 = vst.msk [vmem:[#allocation3 + $0xc0] sm:$0xfe] %vm3686, %v3669
    %3688 = vst.msk [vmem:[#allocation3 + $0xe0] sm:$0xff] %vm3141, %v3671
    %3689 = vst.msk [vmem:[#allocation3 + $0x100] sm:$0xff] %vm3141, %v3673
    %3690 = vst.msk [vmem:[#allocation3 + $0x120] sm:$0xff] %vm3141, %v3675
    %3691 = vst.msk [vmem:[#allocation3 + $0x140] sm:$0xff] %vm3141, %v3677
    %vm3692 = vcmask 1042176
    %3693 = vst.msk [vmem:[#allocation3 + $0x160] sm:$0x3] %vm3692, %v3679
    %v3694 = vld [vmem:[#allocation2 + $0xf5] sm:$0xff]
    %v3695 = vld [vmem:[#allocation2 + $0xfd] sm:$0xff]
    %v3696 = vld [vmem:[#allocation2 + $0x105] sm:$0xff]
    %v3697 = vld [vmem:[#allocation2 + $0x10d] sm:$0xff]
    %v3698 = vld [vmem:[#allocation2 + $0x115] sm:$0xff]
    %v3699 = vld [vmem:[#allocation2 + $0x11d] sm:$0x1]
    %v3706 = vrot.slane %v3694, 7
    %v3707 = vrot.slane %v3695, 7
    %v3708 = vsel %vm3521, %v3706, %v3707
    %v3709 = vrot.slane %v3696, 7
    %v3710 = vsel %vm3521, %v3707, %v3709
    %v3711 = vrot.slane %v3697, 7
    %v3712 = vsel %vm3521, %v3709, %v3711
    %v3713 = vrot.slane %v3698, 7
    %v3714 = vsel %vm3521, %v3711, %v3713
    %v3715 = vrot.slane %v3699, 7
    %v3716 = vsel %vm3521, %v3713, %v3715
    %3723 = vst.msk [vmem:[#allocation3 + $0xc8] sm:$0xfe] %vm3539, %v3706
    %3724 = vst.msk [vmem:[#allocation3 + $0xe8] sm:$0xff] %vm2972, %v3708
    %3725 = vst.msk [vmem:[#allocation3 + $0x108] sm:$0xff] %vm2972, %v3710
    %3726 = vst.msk [vmem:[#allocation3 + $0x128] sm:$0xff] %vm2972, %v3712
    %3727 = vst.msk [vmem:[#allocation3 + $0x148] sm:$0xff] %vm2972, %v3714
    %3728 = vst.msk [vmem:[#allocation3 + $0x168] sm:$0x3] %vm3545, %v3716
    %v3729 = vld [vmem:[#allocation2 + $0x157] sm:$0xff]
    %v3730 = vld [vmem:[#allocation2 + $0x15f] sm:$0xff]
    %v3731 = vld [vmem:[#allocation2 + $0x167] sm:$0xff]
    %v3732 = vld [vmem:[#allocation2 + $0x16f] sm:$0xff]
    %v3733 = vld [vmem:[#allocation2 + $0x177] sm:$0xff]
    %v3734 = vld [vmem:[#allocation2 + $0x17f] sm:$0x1]
    %v3741 = vrot.slane %v3729, 7
    %v3742 = vrot.slane %v3730, 7
    %v3743 = vsel %vm3521, %v3741, %v3742
    %v3744 = vrot.slane %v3731, 7
    %v3745 = vsel %vm3521, %v3742, %v3744
    %v3746 = vrot.slane %v3732, 7
    %v3747 = vsel %vm3521, %v3744, %v3746
    %v3748 = vrot.slane %v3733, 7
    %v3749 = vsel %vm3521, %v3746, %v3748
    %v3750 = vrot.slane %v3734, 7
    %v3751 = vsel %vm3521, %v3748, %v3750
    %3752 = vrot.lane.b32.xlu0 %v3741, 32
    %v3753 = vpop.permute.xlu0 %3752
    %3754 = vrot.lane.b32.xlu0 %v3743, 32
    %v3755 = vpop.permute.xlu0 %3754
    %3756 = vrot.lane.b32.xlu0 %v3745, 32
    %v3757 = vpop.permute.xlu0 %3756
    %3758 = vrot.lane.b32.xlu0 %v3747, 32
    %v3759 = vpop.permute.xlu0 %3758
    %3760 = vrot.lane.b32.xlu0 %v3749, 32
    %v3761 = vpop.permute.xlu0 %3760
    %3762 = vrot.lane.b32.xlu0 %v3751, 32
    %v3763 = vpop.permute.xlu0 %3762
    %3770 = vst.msk [vmem:[#allocation3 + $0xc8] sm:$0xfe] %vm3588, %v3753
    %3771 = vst.msk [vmem:[#allocation3 + $0xe8] sm:$0xff] %vm3065, %v3755
    %3772 = vst.msk [vmem:[#allocation3 + $0x108] sm:$0xff] %vm3065, %v3757
    %3773 = vst.msk [vmem:[#allocation3 + $0x128] sm:$0xff] %vm3065, %v3759
    %3774 = vst.msk [vmem:[#allocation3 + $0x148] sm:$0xff] %vm3065, %v3761
    %3775 = vst.msk [vmem:[#allocation3 + $0x168] sm:$0x3] %vm3594, %v3763
    %v3776 = vld [vmem:[#allocation2 + $0xf6] sm:$0xff]
    %v3777 = vld [vmem:[#allocation2 + $0xfe] sm:$0xff]
    %v3778 = vld [vmem:[#allocation2 + $0x106] sm:$0xff]
    %v3779 = vld [vmem:[#allocation2 + $0x10e] sm:$0xff]
    %v3780 = vld [vmem:[#allocation2 + $0x116] sm:$0xff]
    %v3781 = vld [vmem:[#allocation2 + $0x11e] sm:$0x1]
    %v3788 = vrot.slane %v3776, 7
    %v3789 = vrot.slane %v3777, 7
    %v3790 = vsel %vm3521, %v3788, %v3789
    %v3791 = vrot.slane %v3778, 7
    %v3792 = vsel %vm3521, %v3789, %v3791
    %v3793 = vrot.slane %v3779, 7
    %v3794 = vsel %vm3521, %v3791, %v3793
    %v3795 = vrot.slane %v3780, 7
    %v3796 = vsel %vm3521, %v3793, %v3795
    %v3797 = vrot.slane %v3781, 7
    %v3798 = vsel %vm3521, %v3795, %v3797
    %3799 = vrot.lane.b32.xlu0 %v3788, 64
    %v3800 = vpop.permute.xlu0 %3799
    %3801 = vrot.lane.b32.xlu0 %v3790, 64
    %v3802 = vpop.permute.xlu0 %3801
    %3803 = vrot.lane.b32.xlu0 %v3792, 64
    %v3804 = vpop.permute.xlu0 %3803
    %3805 = vrot.lane.b32.xlu0 %v3794, 64
    %v3806 = vpop.permute.xlu0 %3805
    %3807 = vrot.lane.b32.xlu0 %v3796, 64
    %v3808 = vpop.permute.xlu0 %3807
    %3809 = vrot.lane.b32.xlu0 %v3798, 64
    %v3810 = vpop.permute.xlu0 %3809
    %3817 = vst.msk [vmem:[#allocation3 + $0xc8] sm:$0xfe] %vm3637, %v3800
    %3818 = vst.msk [vmem:[#allocation3 + $0xe8] sm:$0xff] %vm3103, %v3802
    %3819 = vst.msk [vmem:[#allocation3 + $0x108] sm:$0xff] %vm3103, %v3804
    %3820 = vst.msk [vmem:[#allocation3 + $0x128] sm:$0xff] %vm3103, %v3806
    %3821 = vst.msk [vmem:[#allocation3 + $0x148] sm:$0xff] %vm3103, %v3808
    %3822 = vst.msk [vmem:[#allocation3 + $0x168] sm:$0x3] %vm3643, %v3810
    %v3823 = vld [vmem:[#allocation2 + $0x158] sm:$0xff]
    %v3824 = vld [vmem:[#allocation2 + $0x160] sm:$0xff]
    %v3825 = vld [vmem:[#allocation2 + $0x168] sm:$0xff]
    %v3826 = vld [vmem:[#allocation2 + $0x170] sm:$0xff]
    %v3827 = vld [vmem:[#allocation2 + $0x178] sm:$0xff]
    %v3828 = vld [vmem:[#allocation2 + $0x180] sm:$0x1]
    %v3835 = vrot.slane %v3823, 7
    %v3836 = vrot.slane %v3824, 7
    %v3837 = vsel %vm3521, %v3835, %v3836
    %v3838 = vrot.slane %v3825, 7
    %v3839 = vsel %vm3521, %v3836, %v3838
    %v3840 = vrot.slane %v3826, 7
    %v3841 = vsel %vm3521, %v3838, %v3840
    %v3842 = vrot.slane %v3827, 7
    %v3843 = vsel %vm3521, %v3840, %v3842
    %v3844 = vrot.slane %v3828, 7
    %v3845 = vsel %vm3521, %v3842, %v3844
    %3846 = vrot.lane.b32.xlu0 %v3835, 96
    %v3847 = vpop.permute.xlu0 %3846
    %3848 = vrot.lane.b32.xlu0 %v3837, 96
    %v3849 = vpop.permute.xlu0 %3848
    %3850 = vrot.lane.b32.xlu0 %v3839, 96
    %v3851 = vpop.permute.xlu0 %3850
    %3852 = vrot.lane.b32.xlu0 %v3841, 96
    %v3853 = vpop.permute.xlu0 %3852
    %3854 = vrot.lane.b32.xlu0 %v3843, 96
    %v3855 = vpop.permute.xlu0 %3854
    %3856 = vrot.lane.b32.xlu0 %v3845, 96
    %v3857 = vpop.permute.xlu0 %3856
    %3864 = vst.msk [vmem:[#allocation3 + $0xc8] sm:$0xfe] %vm3686, %v3847
    %3865 = vst.msk [vmem:[#allocation3 + $0xe8] sm:$0xff] %vm3141, %v3849
    %3866 = vst.msk [vmem:[#allocation3 + $0x108] sm:$0xff] %vm3141, %v3851
    %3867 = vst.msk [vmem:[#allocation3 + $0x128] sm:$0xff] %vm3141, %v3853
    %3868 = vst.msk [vmem:[#allocation3 + $0x148] sm:$0xff] %vm3141, %v3855
    %3869 = vst.msk [vmem:[#allocation3 + $0x168] sm:$0x3] %vm3692, %v3857
    %v3870 = vld [vmem:[#allocation2 + $0x38] sm:$0xff]
    %v3871 = vld [vmem:[#allocation2 + $0x40] sm:$0xff]
    %v3872 = vld [vmem:[#allocation2 + $0x48] sm:$0xff]
    %v3873 = vld [vmem:[#allocation2 + $0x50] sm:$0xff]
    %v3874 = vld [vmem:[#allocation2 + $0x58] sm:$0xff]
    %v3875 = vld [vmem:[#allocation2 + $0x60] sm:$0x1]
    %v3882 = vrot.slane %v3870, 7
    %v3883 = vrot.slane %v3871, 7
    %v3884 = vsel %vm3521, %v3882, %v3883
    %v3885 = vrot.slane %v3872, 7
    %v3886 = vsel %vm3521, %v3883, %v3885
    %v3887 = vrot.slane %v3873, 7
    %v3888 = vsel %vm3521, %v3885, %v3887
    %v3889 = vrot.slane %v3874, 7
    %v3890 = vsel %vm3521, %v3887, %v3889
    %v3891 = vrot.slane %v3875, 7
    %v3892 = vsel %vm3521, %v3889, %v3891
    %3899 = vst.msk [vmem:[#allocation3 + $0xd0] sm:$0xfe] %vm3539, %v3882
    %3900 = vst.msk [vmem:[#allocation3 + $0xf0] sm:$0xff] %vm2972, %v3884
    %3901 = vst.msk [vmem:[#allocation3 + $0x110] sm:$0xff] %vm2972, %v3886
    %3902 = vst.msk [vmem:[#allocation3 + $0x130] sm:$0xff] %vm2972, %v3888
    %3903 = vst.msk [vmem:[#allocation3 + $0x150] sm:$0xff] %vm2972, %v3890
    %3904 = vst.msk [vmem:[#allocation3 + $0x170] sm:$0x3] %vm3545, %v3892
    %v3905 = vld [vmem:[#allocation2 + $0x9a] sm:$0xff]
    %v3906 = vld [vmem:[#allocation2 + $0xa2] sm:$0xff]
    %v3907 = vld [vmem:[#allocation2 + $0xaa] sm:$0xff]
    %v3908 = vld [vmem:[#allocation2 + $0xb2] sm:$0xff]
    %v3909 = vld [vmem:[#allocation2 + $0xba] sm:$0xff]
    %v3910 = vld [vmem:[#allocation2 + $0xc2] sm:$0x1]
    %v3917 = vrot.slane %v3905, 7
    %v3918 = vrot.slane %v3906, 7
    %v3919 = vsel %vm3521, %v3917, %v3918
    %v3920 = vrot.slane %v3907, 7
    %v3921 = vsel %vm3521, %v3918, %v3920
    %v3922 = vrot.slane %v3908, 7
    %v3923 = vsel %vm3521, %v3920, %v3922
    %v3924 = vrot.slane %v3909, 7
    %v3925 = vsel %vm3521, %v3922, %v3924
    %v3926 = vrot.slane %v3910, 7
    %v3927 = vsel %vm3521, %v3924, %v3926
    %3928 = vrot.lane.b32.xlu0 %v3917, 32
    %v3929 = vpop.permute.xlu0 %3928
    %3930 = vrot.lane.b32.xlu0 %v3919, 32
    %v3931 = vpop.permute.xlu0 %3930
    %3932 = vrot.lane.b32.xlu0 %v3921, 32
    %v3933 = vpop.permute.xlu0 %3932
    %3934 = vrot.lane.b32.xlu0 %v3923, 32
    %v3935 = vpop.permute.xlu0 %3934
    %3936 = vrot.lane.b32.xlu0 %v3925, 32
    %v3937 = vpop.permute.xlu0 %3936
    %3938 = vrot.lane.b32.xlu0 %v3927, 32
    %v3939 = vpop.permute.xlu0 %3938
    %3946 = vst.msk [vmem:[#allocation3 + $0xd0] sm:$0xfe] %vm3588, %v3929
    %3947 = vst.msk [vmem:[#allocation3 + $0xf0] sm:$0xff] %vm3065, %v3931
    %3948 = vst.msk [vmem:[#allocation3 + $0x110] sm:$0xff] %vm3065, %v3933
    %3949 = vst.msk [vmem:[#allocation3 + $0x130] sm:$0xff] %vm3065, %v3935
    %3950 = vst.msk [vmem:[#allocation3 + $0x150] sm:$0xff] %vm3065, %v3937
    %3951 = vst.msk [vmem:[#allocation3 + $0x170] sm:$0x3] %vm3594, %v3939
    %v3952 = vld [vmem:[#allocation2 + $0x39] sm:$0xff]
    %v3953 = vld [vmem:[#allocation2 + $0x41] sm:$0xff]
    %v3954 = vld [vmem:[#allocation2 + $0x49] sm:$0xff]
    %v3955 = vld [vmem:[#allocation2 + $0x51] sm:$0xff]
    %v3956 = vld [vmem:[#allocation2 + $0x59] sm:$0xff]
    %v3957 = vld [vmem:[#allocation2 + $0x61] sm:$0x1]
    %v3964 = vrot.slane %v3952, 7
    %v3965 = vrot.slane %v3953, 7
    %v3966 = vsel %vm3521, %v3964, %v3965
    %v3967 = vrot.slane %v3954, 7
    %v3968 = vsel %vm3521, %v3965, %v3967
    %v3969 = vrot.slane %v3955, 7
    %v3970 = vsel %vm3521, %v3967, %v3969
    %v3971 = vrot.slane %v3956, 7
    %v3972 = vsel %vm3521, %v3969, %v3971
    %v3973 = vrot.slane %v3957, 7
    %v3974 = vsel %vm3521, %v3971, %v3973
    %3975 = vrot.lane.b32.xlu0 %v3964, 64
    %v3976 = vpop.permute.xlu0 %3975
    %3977 = vrot.lane.b32.xlu0 %v3966, 64
    %v3978 = vpop.permute.xlu0 %3977
    %3979 = vrot.lane.b32.xlu0 %v3968, 64
    %v3980 = vpop.permute.xlu0 %3979
    %3981 = vrot.lane.b32.xlu0 %v3970, 64
    %v3982 = vpop.permute.xlu0 %3981
    %3983 = vrot.lane.b32.xlu0 %v3972, 64
    %v3984 = vpop.permute.xlu0 %3983
    %3985 = vrot.lane.b32.xlu0 %v3974, 64
    %v3986 = vpop.permute.xlu0 %3985
    %3993 = vst.msk [vmem:[#allocation3 + $0xd0] sm:$0xfe] %vm3637, %v3976
    %3994 = vst.msk [vmem:[#allocation3 + $0xf0] sm:$0xff] %vm3103, %v3978
    %3995 = vst.msk [vmem:[#allocation3 + $0x110] sm:$0xff] %vm3103, %v3980
    %3996 = vst.msk [vmem:[#allocation3 + $0x130] sm:$0xff] %vm3103, %v3982
    %3997 = vst.msk [vmem:[#allocation3 + $0x150] sm:$0xff] %vm3103, %v3984
    %3998 = vst.msk [vmem:[#allocation3 + $0x170] sm:$0x3] %vm3643, %v3986
    %v3999 = vld [vmem:[#allocation2 + $0x9b] sm:$0xff]
    %v4000 = vld [vmem:[#allocation2 + $0xa3] sm:$0xff]
    %v4001 = vld [vmem:[#allocation2 + $0xab] sm:$0xff]
    %v4002 = vld [vmem:[#allocation2 + $0xb3] sm:$0xff]
    %v4003 = vld [vmem:[#allocation2 + $0xbb] sm:$0xff]
    %v4004 = vld [vmem:[#allocation2 + $0xc3] sm:$0x1]
    %v4011 = vrot.slane %v3999, 7
    %v4012 = vrot.slane %v4000, 7
    %v4013 = vsel %vm3521, %v4011, %v4012
    %v4014 = vrot.slane %v4001, 7
    %v4015 = vsel %vm3521, %v4012, %v4014
    %v4016 = vrot.slane %v4002, 7
    %v4017 = vsel %vm3521, %v4014, %v4016
    %v4018 = vrot.slane %v4003, 7
    %v4019 = vsel %vm3521, %v4016, %v4018
    %v4020 = vrot.slane %v4004, 7
    %v4021 = vsel %vm3521, %v4018, %v4020
    %4022 = vrot.lane.b32.xlu0 %v4011, 96
    %v4023 = vpop.permute.xlu0 %4022
    %4024 = vrot.lane.b32.xlu0 %v4013, 96
    %v4025 = vpop.permute.xlu0 %4024
    %4026 = vrot.lane.b32.xlu0 %v4015, 96
    %v4027 = vpop.permute.xlu0 %4026
    %4028 = vrot.lane.b32.xlu0 %v4017, 96
    %v4029 = vpop.permute.xlu0 %4028
    %4030 = vrot.lane.b32.xlu0 %v4019, 96
    %v4031 = vpop.permute.xlu0 %4030
    %4032 = vrot.lane.b32.xlu0 %v4021, 96
    %v4033 = vpop.permute.xlu0 %4032
    %4040 = vst.msk [vmem:[#allocation3 + $0xd0] sm:$0xfe] %vm3686, %v4023
    %4041 = vst.msk [vmem:[#allocation3 + $0xf0] sm:$0xff] %vm3141, %v4025
    %4042 = vst.msk [vmem:[#allocation3 + $0x110] sm:$0xff] %vm3141, %v4027
    %4043 = vst.msk [vmem:[#allocation3 + $0x130] sm:$0xff] %vm3141, %v4029
    %4044 = vst.msk [vmem:[#allocation3 + $0x150] sm:$0xff] %vm3141, %v4031
    %4045 = vst.msk [vmem:[#allocation3 + $0x170] sm:$0x3] %vm3692, %v4033
    %v4046 = vld [vmem:[#allocation2 + $0xfc] sm:$0xff]
    %v4047 = vld [vmem:[#allocation2 + $0x104] sm:$0xff]
    %v4048 = vld [vmem:[#allocation2 + $0x10c] sm:$0xff]
    %v4049 = vld [vmem:[#allocation2 + $0x114] sm:$0xff]
    %v4050 = vld [vmem:[#allocation2 + $0x11c] sm:$0xff]
    %v4051 = vld [vmem:[#allocation2 + $0x124] sm:$0x1]
    %v4058 = vrot.slane %v4046, 7
    %v4059 = vrot.slane %v4047, 7
    %v4060 = vsel %vm3521, %v4058, %v4059
    %v4061 = vrot.slane %v4048, 7
    %v4062 = vsel %vm3521, %v4059, %v4061
    %v4063 = vrot.slane %v4049, 7
    %v4064 = vsel %vm3521, %v4061, %v4063
    %v4065 = vrot.slane %v4050, 7
    %v4066 = vsel %vm3521, %v4063, %v4065
    %v4067 = vrot.slane %v4051, 7
    %v4068 = vsel %vm3521, %v4065, %v4067
    %4075 = vst.msk [vmem:[#allocation3 + $0xd8] sm:$0xfe] %vm3539, %v4058
    %4076 = vst.msk [vmem:[#allocation3 + $0xf8] sm:$0xff] %vm2972, %v4060
    %4077 = vst.msk [vmem:[#allocation3 + $0x118] sm:$0xff] %vm2972, %v4062
    %4078 = vst.msk [vmem:[#allocation3 + $0x138] sm:$0xff] %vm2972, %v4064
    %4079 = vst.msk [vmem:[#allocation3 + $0x158] sm:$0xff] %vm2972, %v4066
    %4080 = vst.msk [vmem:[#allocation3 + $0x178] sm:$0x3] %vm3545, %v4068
    %v4081 = vld [vmem:[#allocation2 + $0x15e] sm:$0xff]
    %v4082 = vld [vmem:[#allocation2 + $0x166] sm:$0xff]
    %v4083 = vld [vmem:[#allocation2 + $0x16e] sm:$0xff]
    %v4084 = vld [vmem:[#allocation2 + $0x176] sm:$0xff]
    %v4085 = vld [vmem:[#allocation2 + $0x17e] sm:$0xff]
    %v4086 = vld [vmem:[#allocation2 + $0x186] sm:$0x1]
    %v4093 = vrot.slane %v4081, 7
    %v4094 = vrot.slane %v4082, 7
    %v4095 = vsel %vm3521, %v4093, %v4094
    %v4096 = vrot.slane %v4083, 7
    %v4097 = vsel %vm3521, %v4094, %v4096
    %v4098 = vrot.slane %v4084, 7
    %v4099 = vsel %vm3521, %v4096, %v4098
    %v4100 = vrot.slane %v4085, 7
    %v4101 = vsel %vm3521, %v4098, %v4100
    %v4102 = vrot.slane %v4086, 7
    %v4103 = vsel %vm3521, %v4100, %v4102
    %4104 = vrot.lane.b32.xlu0 %v4093, 32
    %v4105 = vpop.permute.xlu0 %4104
    %4106 = vrot.lane.b32.xlu0 %v4095, 32
    %v4107 = vpop.permute.xlu0 %4106
    %4108 = vrot.lane.b32.xlu0 %v4097, 32
    %v4109 = vpop.permute.xlu0 %4108
    %4110 = vrot.lane.b32.xlu0 %v4099, 32
    %v4111 = vpop.permute.xlu0 %4110
    %4112 = vrot.lane.b32.xlu0 %v4101, 32
    %v4113 = vpop.permute.xlu0 %4112
    %4114 = vrot.lane.b32.xlu0 %v4103, 32
    %v4115 = vpop.permute.xlu0 %4114
    %4122 = vst.msk [vmem:[#allocation3 + $0xd8] sm:$0xfe] %vm3588, %v4105
    %4123 = vst.msk [vmem:[#allocation3 + $0xf8] sm:$0xff] %vm3065, %v4107
    %4124 = vst.msk [vmem:[#allocation3 + $0x118] sm:$0xff] %vm3065, %v4109
    %4125 = vst.msk [vmem:[#allocation3 + $0x138] sm:$0xff] %vm3065, %v4111
    %4126 = vst.msk [vmem:[#allocation3 + $0x158] sm:$0xff] %vm3065, %v4113
    %4127 = vst.msk [vmem:[#allocation3 + $0x178] sm:$0x3] %vm3594, %v4115
    %v4128 = vld [vmem:[#allocation2 + $0xfd] sm:$0xff]
    %v4129 = vld [vmem:[#allocation2 + $0x105] sm:$0xff]
    %v4130 = vld [vmem:[#allocation2 + $0x10d] sm:$0xff]
    %v4131 = vld [vmem:[#allocation2 + $0x115] sm:$0xff]
    %v4132 = vld [vmem:[#allocation2 + $0x11d] sm:$0xff]
    %v4133 = vld [vmem:[#allocation2 + $0x125] sm:$0x1]
    %v4140 = vrot.slane %v4128, 7
    %v4141 = vrot.slane %v4129, 7
    %v4142 = vsel %vm3521, %v4140, %v4141
    %v4143 = vrot.slane %v4130, 7
    %v4144 = vsel %vm3521, %v4141, %v4143
    %v4145 = vrot.slane %v4131, 7
    %v4146 = vsel %vm3521, %v4143, %v4145
    %v4147 = vrot.slane %v4132, 7
    %v4148 = vsel %vm3521, %v4145, %v4147
    %v4149 = vrot.slane %v4133, 7
    %v4150 = vsel %vm3521, %v4147, %v4149
    %4151 = vrot.lane.b32.xlu0 %v4140, 64
    %v4152 = vpop.permute.xlu0 %4151
    %4153 = vrot.lane.b32.xlu0 %v4142, 64
    %v4154 = vpop.permute.xlu0 %4153
    %4155 = vrot.lane.b32.xlu0 %v4144, 64
    %v4156 = vpop.permute.xlu0 %4155
    %4157 = vrot.lane.b32.xlu0 %v4146, 64
    %v4158 = vpop.permute.xlu0 %4157
    %4159 = vrot.lane.b32.xlu0 %v4148, 64
    %v4160 = vpop.permute.xlu0 %4159
    %4161 = vrot.lane.b32.xlu0 %v4150, 64
    %v4162 = vpop.permute.xlu0 %4161
    %4169 = vst.msk [vmem:[#allocation3 + $0xd8] sm:$0xfe] %vm3637, %v4152
    %4170 = vst.msk [vmem:[#allocation3 + $0xf8] sm:$0xff] %vm3103, %v4154
    %4171 = vst.msk [vmem:[#allocation3 + $0x118] sm:$0xff] %vm3103, %v4156
    %4172 = vst.msk [vmem:[#allocation3 + $0x138] sm:$0xff] %vm3103, %v4158
    %4173 = vst.msk [vmem:[#allocation3 + $0x158] sm:$0xff] %vm3103, %v4160
    %4174 = vst.msk [vmem:[#allocation3 + $0x178] sm:$0x3] %vm3643, %v4162
    %v4175 = vld [vmem:[#allocation2 + $0x15f] sm:$0xff]
    %v4176 = vld [vmem:[#allocation2 + $0x167] sm:$0xff]
    %v4177 = vld [vmem:[#allocation2 + $0x16f] sm:$0xff]
    %v4178 = vld [vmem:[#allocation2 + $0x177] sm:$0xff]
    %v4179 = vld [vmem:[#allocation2 + $0x17f] sm:$0xff]
    %v4180 = vld [vmem:[#allocation2 + $0x187] sm:$0x1]
    %v4187 = vrot.slane %v4175, 7
    %v4188 = vrot.slane %v4176, 7
    %v4189 = vsel %vm3521, %v4187, %v4188
    %v4190 = vrot.slane %v4177, 7
    %v4191 = vsel %vm3521, %v4188, %v4190
    %v4192 = vrot.slane %v4178, 7
    %v4193 = vsel %vm3521, %v4190, %v4192
    %v4194 = vrot.slane %v4179, 7
    %v4195 = vsel %vm3521, %v4192, %v4194
    %v4196 = vrot.slane %v4180, 7
    %v4197 = vsel %vm3521, %v4194, %v4196
    %4198 = vrot.lane.b32.xlu0 %v4187, 96
    %v4199 = vpop.permute.xlu0 %4198
    %4200 = vrot.lane.b32.xlu0 %v4189, 96
    %v4201 = vpop.permute.xlu0 %4200
    %4202 = vrot.lane.b32.xlu0 %v4191, 96
    %v4203 = vpop.permute.xlu0 %4202
    %4204 = vrot.lane.b32.xlu0 %v4193, 96
    %v4205 = vpop.permute.xlu0 %4204
    %4206 = vrot.lane.b32.xlu0 %v4195, 96
    %v4207 = vpop.permute.xlu0 %4206
    %4208 = vrot.lane.b32.xlu0 %v4197, 96
    %v4209 = vpop.permute.xlu0 %4208
    %4216 = vst.msk [vmem:[#allocation3 + $0xd8] sm:$0xfe] %vm3686, %v4199
    %4217 = vst.msk [vmem:[#allocation3 + $0xf8] sm:$0xff] %vm3141, %v4201
    %4218 = vst.msk [vmem:[#allocation3 + $0x118] sm:$0xff] %vm3141, %v4203
    %4219 = vst.msk [vmem:[#allocation3 + $0x138] sm:$0xff] %vm3141, %v4205
    %4220 = vst.msk [vmem:[#allocation3 + $0x158] sm:$0xff] %vm3141, %v4207
    %4221 = vst.msk [vmem:[#allocation3 + $0x178] sm:$0x3] %vm3692, %v4209
    %v4222 = vld [vmem:[#allocation3] sm:$0xff]
    %v4223 = vld [vmem:[#allocation3 + $0x8] sm:$0xff]
    %v4224 = vld [vmem:[#allocation3 + $0x10] sm:$0xff]
    %v4225 = vld [vmem:[#allocation3 + $0x18] sm:$0xff]
    %v4226 = vld [vmem:[#allocation3 + $0x20] sm:$0xff]
    %v4227 = vld [vmem:[#allocation3 + $0x28] sm:$0xff]
    %v4228 = vld [vmem:[#allocation3 + $0x30] sm:$0xff]
    %v4229 = vld [vmem:[#allocation3 + $0x38] sm:$0xff]
    %v4230 = vld [vmem:[#allocation3 + $0x40] sm:$0xff]
    %v4231 = vld [vmem:[#allocation3 + $0x48] sm:$0xff]
    %v4232 = vld [vmem:[#allocation3 + $0x50] sm:$0xff]
    %v4233 = vld [vmem:[#allocation3 + $0x58] sm:$0xff]
    %v4234 = vld [vmem:[#allocation3 + $0x60] sm:$0xff]
    %v4235 = vld [vmem:[#allocation3 + $0x68] sm:$0xff]
    %v4236 = vld [vmem:[#allocation3 + $0x70] sm:$0xff]
    %v4237 = vld [vmem:[#allocation3 + $0x78] sm:$0xff]
    %v4238 = vld [vmem:[#allocation3 + $0x80] sm:$0xff]
    %v4239 = vld [vmem:[#allocation3 + $0x88] sm:$0xff]
    %v4240 = vld [vmem:[#allocation3 + $0x90] sm:$0xff]
    %v4241 = vld [vmem:[#allocation3 + $0x98] sm:$0xff]
    %v4242 = vld [vmem:[#allocation3 + $0xa0] sm:$0xff]
    %v4243 = vld [vmem:[#allocation3 + $0xa8] sm:$0xff]
    %v4244 = vld [vmem:[#allocation3 + $0xb0] sm:$0xff]
    %v4245 = vld [vmem:[#allocation3 + $0xb8] sm:$0xff]
    %v4246 = vld [vmem:[#allocation3 + $0xc0] sm:$0xff]
    %v4247 = vld [vmem:[#allocation3 + $0xc8] sm:$0xff]
    %v4248 = vld [vmem:[#allocation3 + $0xd0] sm:$0xff]
    %v4249 = vld [vmem:[#allocation3 + $0xd8] sm:$0xff]
    %v4250 = vld [vmem:[#allocation3 + $0xe0] sm:$0xff]
    %v4251 = vld [vmem:[#allocation3 + $0xe8] sm:$0xff]
    %v4252 = vld [vmem:[#allocation3 + $0xf0] sm:$0xff]
    %v4253 = vld [vmem:[#allocation3 + $0xf8] sm:$0xff]
    %v4254 = vld [vmem:[#allocation3 + $0x100] sm:$0xff]
    %v4255 = vld [vmem:[#allocation3 + $0x108] sm:$0xff]
    %v4256 = vld [vmem:[#allocation3 + $0x110] sm:$0xff]
    %v4257 = vld [vmem:[#allocation3 + $0x118] sm:$0xff]
    %v4258 = vld [vmem:[#allocation3 + $0x120] sm:$0xff]
    %v4259 = vld [vmem:[#allocation3 + $0x128] sm:$0xff]
    %v4260 = vld [vmem:[#allocation3 + $0x130] sm:$0xff]
    %v4261 = vld [vmem:[#allocation3 + $0x138] sm:$0xff]
    %v4262 = vld [vmem:[#allocation3 + $0x140] sm:$0xff]
    %v4263 = vld [vmem:[#allocation3 + $0x148] sm:$0xff]
    %v4264 = vld [vmem:[#allocation3 + $0x150] sm:$0xff]
    %v4265 = vld [vmem:[#allocation3 + $0x158] sm:$0xff]
    %v4266 = vld [vmem:[#allocation3 + $0x160] sm:$0xff]
    %v4267 = vld [vmem:[#allocation3 + $0x168] sm:$0xff]
    %v4268 = vld [vmem:[#allocation3 + $0x170] sm:$0xff]
    %v4269 = vld [vmem:[#allocation3 + $0x178] sm:$0xff]
    %v4270 = vld [vmem:[#allocation3 + $0x180] sm:$0x3]
    %v4271 = vld [vmem:[#allocation3 + $0x188] sm:$0x3]
    %v4272 = vld [vmem:[#allocation3 + $0x190] sm:$0x3]
    %v4273 = vld [vmem:[#allocation3 + $0x198] sm:$0x3]
    %v4274 = vld [vmem:[%s3] sm:$0xff]
    %v4275 = vld [vmem:[%s3 + $0x8] sm:$0xff]
    %v4276 = vld [vmem:[%s3 + $0x10] sm:$0xff]
    %v4277 = vld [vmem:[%s3 + $0x18] sm:$0xff]
    %v4278 = vld [vmem:[%s3 + $0x20] sm:$0xff]
    %v4279 = vld [vmem:[%s3 + $0x28] sm:$0xff]
    %v4280 = vld [vmem:[%s3 + $0x30] sm:$0xff]
    %v4281 = vld [vmem:[%s3 + $0x38] sm:$0xff]
    %v4282 = vld [vmem:[%s3 + $0x40] sm:$0xff]
    %v4283 = vld [vmem:[%s3 + $0x48] sm:$0xff]
    %v4284 = vld [vmem:[%s3 + $0x50] sm:$0xff]
    %v4285 = vld [vmem:[%s3 + $0x58] sm:$0xff]
    %v4286 = vld [vmem:[%s3 + $0x60] sm:$0xff]
    %v4287 = vld [vmem:[%s3 + $0x68] sm:$0xff]
    %v4288 = vld [vmem:[%s3 + $0x70] sm:$0xff]
    %v4289 = vld [vmem:[%s3 + $0x78] sm:$0xff]
    %v4290 = vld [vmem:[%s3 + $0x80] sm:$0xff]
    %v4291 = vld [vmem:[%s3 + $0x88] sm:$0xff]
    %v4292 = vld [vmem:[%s3 + $0x90] sm:$0xff]
    %v4293 = vld [vmem:[%s3 + $0x98] sm:$0xff]
    %v4294 = vld [vmem:[%s3 + $0xa0] sm:$0xff]
    %v4295 = vld [vmem:[%s3 + $0xa8] sm:$0xff]
    %v4296 = vld [vmem:[%s3 + $0xb0] sm:$0xff]
    %v4297 = vld [vmem:[%s3 + $0xb8] sm:$0xff]
    %v4298 = vld [vmem:[%s3 + $0xc0] sm:$0xff]
    %v4299 = vld [vmem:[%s3 + $0xc8] sm:$0xff]
    %v4300 = vld [vmem:[%s3 + $0xd0] sm:$0xff]
    %v4301 = vld [vmem:[%s3 + $0xd8] sm:$0xff]
    %v4302 = vld [vmem:[%s3 + $0xe0] sm:$0xff]
    %v4303 = vld [vmem:[%s3 + $0xe8] sm:$0xff]
    %v4304 = vld [vmem:[%s3 + $0xf0] sm:$0xff]
    %v4305 = vld [vmem:[%s3 + $0xf8] sm:$0xff]
    %v4306 = vld [vmem:[%s3 + $0x100] sm:$0xff]
    %v4307 = vld [vmem:[%s3 + $0x108] sm:$0xff]
    %v4308 = vld [vmem:[%s3 + $0x110] sm:$0xff]
    %v4309 = vld [vmem:[%s3 + $0x118] sm:$0xff]
    %v4310 = vld [vmem:[%s3 + $0x120] sm:$0xff]
    %v4311 = vld [vmem:[%s3 + $0x128] sm:$0xff]
    %v4312 = vld [vmem:[%s3 + $0x130] sm:$0xff]
    %v4313 = vld [vmem:[%s3 + $0x138] sm:$0xff]
    %v4314 = vld [vmem:[%s3 + $0x140] sm:$0xff]
    %v4315 = vld [vmem:[%s3 + $0x148] sm:$0xff]
    %v4316 = vld [vmem:[%s3 + $0x150] sm:$0xff]
    %v4317 = vld [vmem:[%s3 + $0x158] sm:$0xff]
    %v4318 = vld [vmem:[%s3 + $0x160] sm:$0xff]
    %v4319 = vld [vmem:[%s3 + $0x168] sm:$0xff]
    %v4320 = vld [vmem:[%s3 + $0x170] sm:$0xff]
    %v4321 = vld [vmem:[%s3 + $0x178] sm:$0xff]
    %v4322 = vld [vmem:[%s3 + $0x180] sm:$0xff]
    %v4323 = vld [vmem:[%s3 + $0x188] sm:$0xff]
    %v4324 = vld [vmem:[%s3 + $0x190] sm:$0xff]
    %v4325 = vld [vmem:[%s3 + $0x198] sm:$0xff]
    %v4326 = vld [vmem:[%s3 + $0x1a0] sm:$0xff]
    %v4327 = vld [vmem:[%s3 + $0x1a8] sm:$0xff]
    %v4328 = vld [vmem:[%s3 + $0x1b0] sm:$0xff]
    %v4329 = vld [vmem:[%s3 + $0x1b8] sm:$0xff]
    %v4330 = vld [vmem:[%s3 + $0x1c0] sm:$0xff]
    %v4331 = vld [vmem:[%s3 + $0x1c8] sm:$0xff]
    %v4332 = vld [vmem:[%s3 + $0x1d0] sm:$0xff]
    %v4333 = vld [vmem:[%s3 + $0x1d8] sm:$0xff]
    %v4334 = vld [vmem:[%s3 + $0x1e0] sm:$0xff]
    %v4335 = vld [vmem:[%s3 + $0x1e8] sm:$0xff]
    %v4336 = vld [vmem:[%s3 + $0x1f0] sm:$0xff]
    %v4337 = vld [vmem:[%s3 + $0x1f8] sm:$0xff]
    %v4338 = vld [vmem:[%s4] sm:$0x1]
    %v4340 = vperm.slane %v4338, 0
    %4342 = vmatpush.msra.mxu0 %v4289
    %4343 = vmatpush.msra.mxu0 %v4288
    %4344 = vmatpush.msra.mxu0 %v4287
    %4345 = vmatpush.msra.mxu0 %v4286
    %4346 = vmatpush.msra.mxu0 %v4285
    %4347 = vmatpush.msra.mxu0 %v4284
    %4348 = vmatpush.msra.mxu0 %v4283
    %4349 = vmatpush.msra.mxu0 %v4282
    %4350 = vmatpush.msra.mxu0 %v4281
    %4351 = vmatpush.msra.mxu0 %v4280
    %4352 = vmatpush.msra.mxu0 %v4279
    %4353 = vmatpush.msra.mxu0 %v4278
    %4354 = vmatpush.msra.mxu0 %v4277
    %4355 = vmatpush.msra.mxu0 %v4276
    %4356 = vmatpush.msra.mxu0 %v4275
    %4357 = vmatpush.msra.mxu0 %v4274
    %4358 = vmatmul.f32.gmra.mxu0 %v4222
    %v4359 = vpop.f32.mrf.mxu0
    %v4360 = vadd.f32 %v4340, %v4359
    %4361 = vmatmul.f32.gmra.mxu0 %v4226
    %v4362 = vpop.f32.mrf.mxu0
    %v4363 = vadd.f32 %v4340, %v4362
    %4364 = vmatmul.f32.gmra.mxu0 %v4230
    %v4365 = vpop.f32.mrf.mxu0
    %v4366 = vadd.f32 %v4340, %v4365
    %4367 = vmatmul.f32.gmra.mxu0 %v4234
    %v4368 = vpop.f32.mrf.mxu0
    %v4369 = vadd.f32 %v4340, %v4368
    %4370 = vmatmul.f32.gmra.mxu0 %v4238
    %v4371 = vpop.f32.mrf.mxu0
    %v4372 = vadd.f32 %v4340, %v4371
    %4373 = vmatmul.f32.gmra.mxu0 %v4242
    %v4374 = vpop.f32.mrf.mxu0
    %v4375 = vadd.f32 %v4340, %v4374
    %4376 = vmatmul.f32.gmra.mxu0 %v4246
    %v4377 = vpop.f32.mrf.mxu0
    %v4378 = vadd.f32 %v4340, %v4377
    %4379 = vmatmul.f32.gmra.mxu0 %v4250
    %v4380 = vpop.f32.mrf.mxu0
    %v4381 = vadd.f32 %v4340, %v4380
    %4382 = vmatmul.f32.gmra.mxu0 %v4254
    %v4383 = vpop.f32.mrf.mxu0
    %v4384 = vadd.f32 %v4340, %v4383
    %4385 = vmatmul.f32.gmra.mxu0 %v4258
    %v4386 = vpop.f32.mrf.mxu0
    %v4387 = vadd.f32 %v4340, %v4386
    %4388 = vmatmul.f32.gmra.mxu0 %v4262
    %v4389 = vpop.f32.mrf.mxu0
    %v4390 = vadd.f32 %v4340, %v4389
    %4391 = vmatmul.f32.gmra.mxu0 %v4266
    %v4392 = vpop.f32.mrf.mxu0
    %v4393 = vadd.f32 %v4340, %v4392
    %4394 = vmatmul.f32.gmra.mxu0 %v4270
    %v4395 = vpop.f32.mrf.mxu0
    %v4396 = vadd.f32 %v4340, %v4395
    %4397 = vdwg.mxu0
    %4398 = vmatpush.msra.mxu0 %v4305
    %4399 = vmatpush.msra.mxu0 %v4304
    %4400 = vmatpush.msra.mxu0 %v4303
    %4401 = vmatpush.msra.mxu0 %v4302
    %4402 = vmatpush.msra.mxu0 %v4301
    %4403 = vmatpush.msra.mxu0 %v4300
    %4404 = vmatpush.msra.mxu0 %v4299
    %4405 = vmatpush.msra.mxu0 %v4298
    %4406 = vmatpush.msra.mxu0 %v4297
    %4407 = vmatpush.msra.mxu0 %v4296
    %4408 = vmatpush.msra.mxu0 %v4295
    %4409 = vmatpush.msra.mxu0 %v4294
    %4410 = vmatpush.msra.mxu0 %v4293
    %4411 = vmatpush.msra.mxu0 %v4292
    %4412 = vmatpush.msra.mxu0 %v4291
    %4413 = vmatpush.msra.mxu0 %v4290
    %4414 = vmatmul.f32.gmra.mxu0 %v4223
    %v4415 = vpop.f32.mrf.mxu0
    %v4416 = vadd.f32 %v4360, %v4415
    %4417 = vmatmul.f32.gmra.mxu0 %v4227
    %v4418 = vpop.f32.mrf.mxu0
    %v4419 = vadd.f32 %v4363, %v4418
    %4420 = vmatmul.f32.gmra.mxu0 %v4231
    %v4421 = vpop.f32.mrf.mxu0
    %v4422 = vadd.f32 %v4366, %v4421
    %4423 = vmatmul.f32.gmra.mxu0 %v4235
    %v4424 = vpop.f32.mrf.mxu0
    %v4425 = vadd.f32 %v4369, %v4424
    %4426 = vmatmul.f32.gmra.mxu0 %v4239
    %v4427 = vpop.f32.mrf.mxu0
    %v4428 = vadd.f32 %v4372, %v4427
    %4429 = vmatmul.f32.gmra.mxu0 %v4243
    %v4430 = vpop.f32.mrf.mxu0
    %v4431 = vadd.f32 %v4375, %v4430
    %4432 = vmatmul.f32.gmra.mxu0 %v4247
    %v4433 = vpop.f32.mrf.mxu0
    %v4434 = vadd.f32 %v4378, %v4433
    %4435 = vmatmul.f32.gmra.mxu0 %v4251
    %v4436 = vpop.f32.mrf.mxu0
    %v4437 = vadd.f32 %v4381, %v4436
    %4438 = vmatmul.f32.gmra.mxu0 %v4255
    %v4439 = vpop.f32.mrf.mxu0
    %v4440 = vadd.f32 %v4384, %v4439
    %4441 = vmatmul.f32.gmra.mxu0 %v4259
    %v4442 = vpop.f32.mrf.mxu0
    %v4443 = vadd.f32 %v4387, %v4442
    %4444 = vmatmul.f32.gmra.mxu0 %v4263
    %v4445 = vpop.f32.mrf.mxu0
    %v4446 = vadd.f32 %v4390, %v4445
    %4447 = vmatmul.f32.gmra.mxu0 %v4267
    %v4448 = vpop.f32.mrf.mxu0
    %v4449 = vadd.f32 %v4393, %v4448
    %4450 = vmatmul.f32.gmra.mxu0 %v4271
    %v4451 = vpop.f32.mrf.mxu0
    %v4452 = vadd.f32 %v4396, %v4451
    %4453 = vdwg.mxu0
    %4454 = vmatpush.msra.mxu0 %v4321
    %4455 = vmatpush.msra.mxu0 %v4320
    %4456 = vmatpush.msra.mxu0 %v4319
    %4457 = vmatpush.msra.mxu0 %v4318
    %4458 = vmatpush.msra.mxu0 %v4317
    %4459 = vmatpush.msra.mxu0 %v4316
    %4460 = vmatpush.msra.mxu0 %v4315
    %4461 = vmatpush.msra.mxu0 %v4314
    %4462 = vmatpush.msra.mxu0 %v4313
    %4463 = vmatpush.msra.mxu0 %v4312
    %4464 = vmatpush.msra.mxu0 %v4311
    %4465 = vmatpush.msra.mxu0 %v4310
    %4466 = vmatpush.msra.mxu0 %v4309
    %4467 = vmatpush.msra.mxu0 %v4308
    %4468 = vmatpush.msra.mxu0 %v4307
    %4469 = vmatpush.msra.mxu0 %v4306
    %4470 = vmatmul.f32.gmra.mxu0 %v4224
    %v4471 = vpop.f32.mrf.mxu0
    %v4472 = vadd.f32 %v4416, %v4471
    %4473 = vmatmul.f32.gmra.mxu0 %v4228
    %v4474 = vpop.f32.mrf.mxu0
    %v4475 = vadd.f32 %v4419, %v4474
    %4476 = vmatmul.f32.gmra.mxu0 %v4232
    %v4477 = vpop.f32.mrf.mxu0
    %v4478 = vadd.f32 %v4422, %v4477
    %4479 = vmatmul.f32.gmra.mxu0 %v4236
    %v4480 = vpop.f32.mrf.mxu0
    %v4481 = vadd.f32 %v4425, %v4480
    %4482 = vmatmul.f32.gmra.mxu0 %v4240
    %v4483 = vpop.f32.mrf.mxu0
    %v4484 = vadd.f32 %v4428, %v4483
    %4485 = vmatmul.f32.gmra.mxu0 %v4244
    %v4486 = vpop.f32.mrf.mxu0
    %v4487 = vadd.f32 %v4431, %v4486
    %4488 = vmatmul.f32.gmra.mxu0 %v4248
    %v4489 = vpop.f32.mrf.mxu0
    %v4490 = vadd.f32 %v4434, %v4489
    %4491 = vmatmul.f32.gmra.mxu0 %v4252
    %v4492 = vpop.f32.mrf.mxu0
    %v4493 = vadd.f32 %v4437, %v4492
    %4494 = vmatmul.f32.gmra.mxu0 %v4256
    %v4495 = vpop.f32.mrf.mxu0
    %v4496 = vadd.f32 %v4440, %v4495
    %4497 = vmatmul.f32.gmra.mxu0 %v4260
    %v4498 = vpop.f32.mrf.mxu0
    %v4499 = vadd.f32 %v4443, %v4498
    %4500 = vmatmul.f32.gmra.mxu0 %v4264
    %v4501 = vpop.f32.mrf.mxu0
    %v4502 = vadd.f32 %v4446, %v4501
    %4503 = vmatmul.f32.gmra.mxu0 %v4268
    %v4504 = vpop.f32.mrf.mxu0
    %v4505 = vadd.f32 %v4449, %v4504
    %4506 = vmatmul.f32.gmra.mxu0 %v4272
    %v4507 = vpop.f32.mrf.mxu0
    %v4508 = vadd.f32 %v4452, %v4507
    %4509 = vdwg.mxu0
    %4510 = vmatpush.msra.mxu0 %v4337
    %4511 = vmatpush.msra.mxu0 %v4336
    %4512 = vmatpush.msra.mxu0 %v4335
    %4513 = vmatpush.msra.mxu0 %v4334
    %4514 = vmatpush.msra.mxu0 %v4333
    %4515 = vmatpush.msra.mxu0 %v4332
    %4516 = vmatpush.msra.mxu0 %v4331
    %4517 = vmatpush.msra.mxu0 %v4330
    %4518 = vmatpush.msra.mxu0 %v4329
    %4519 = vmatpush.msra.mxu0 %v4328
    %4520 = vmatpush.msra.mxu0 %v4327
    %4521 = vmatpush.msra.mxu0 %v4326
    %4522 = vmatpush.msra.mxu0 %v4325
    %4523 = vmatpush.msra.mxu0 %v4324
    %4524 = vmatpush.msra.mxu0 %v4323
    %4525 = vmatpush.msra.mxu0 %v4322
    %4526 = vmatmul.f32.gmra.mxu0 %v4225
    %v4527 = vpop.f32.mrf.mxu0
    %v4528 = vadd.f32 %v4472, %v4527
    %4529 = vmatmul.f32.gmra.mxu0 %v4229
    %v4530 = vpop.f32.mrf.mxu0
    %v4531 = vadd.f32 %v4475, %v4530
    %4532 = vmatmul.f32.gmra.mxu0 %v4233
    %v4533 = vpop.f32.mrf.mxu0
    %v4534 = vadd.f32 %v4478, %v4533
    %4535 = vmatmul.f32.gmra.mxu0 %v4237
    %v4536 = vpop.f32.mrf.mxu0
    %v4537 = vadd.f32 %v4481, %v4536
    %4538 = vmatmul.f32.gmra.mxu0 %v4241
    %v4539 = vpop.f32.mrf.mxu0
    %v4540 = vadd.f32 %v4484, %v4539
    %4541 = vmatmul.f32.gmra.mxu0 %v4245
    %v4542 = vpop.f32.mrf.mxu0
    %v4543 = vadd.f32 %v4487, %v4542
    %4544 = vmatmul.f32.gmra.mxu0 %v4249
    %v4545 = vpop.f32.mrf.mxu0
    %v4546 = vadd.f32 %v4490, %v4545
    %4547 = vmatmul.f32.gmra.mxu0 %v4253
    %v4548 = vpop.f32.mrf.mxu0
    %v4549 = vadd.f32 %v4493, %v4548
    %4550 = vmatmul.f32.gmra.mxu0 %v4257
    %v4551 = vpop.f32.mrf.mxu0
    %v4552 = vadd.f32 %v4496, %v4551
    %4553 = vmatmul.f32.gmra.mxu0 %v4261
    %v4554 = vpop.f32.mrf.mxu0
    %v4555 = vadd.f32 %v4499, %v4554
    %4556 = vmatmul.f32.gmra.mxu0 %v4265
    %v4557 = vpop.f32.mrf.mxu0
    %v4558 = vadd.f32 %v4502, %v4557
    %4559 = vmatmul.f32.gmra.mxu0 %v4269
    %v4560 = vpop.f32.mrf.mxu0
    %v4561 = vadd.f32 %v4505, %v4560
    %4562 = vmatmul.f32.gmra.mxu0 %v4273
    %v4563 = vpop.f32.mrf.mxu0
    %v4564 = vadd.f32 %v4508, %v4563
    %4565 = vdwg.mxu0
    %v4566 = vmax.f32 %v4528, 0.0
    %v4567 = vmax.f32 %v4531, 0.0
    %v4568 = vmax.f32 %v4534, 0.0
    %v4569 = vmax.f32 %v4537, 0.0
    %v4570 = vmax.f32 %v4540, 0.0
    %v4571 = vmax.f32 %v4543, 0.0
    %v4572 = vmax.f32 %v4546, 0.0
    %v4573 = vmax.f32 %v4549, 0.0
    %v4574 = vmax.f32 %v4552, 0.0
    %v4575 = vmax.f32 %v4555, 0.0
    %v4576 = vmax.f32 %v4558, 0.0
    %v4577 = vmax.f32 %v4561, 0.0
    %v4578 = vmax.f32 %v4564, 0.0
    %4579 = vst.msk [vmem:[#allocation4] sm:$0xff] %vm101, %v4566
    %4580 = vst.msk [vmem:[#allocation4 + $0x8] sm:$0xff] %vm101, %v4567
    %4581 = vst.msk [vmem:[#allocation4 + $0x10] sm:$0xff] %vm101, %v4568
    %4582 = vst.msk [vmem:[#allocation4 + $0x18] sm:$0xff] %vm101, %v4569
    %4583 = vst.msk [vmem:[#allocation4 + $0x20] sm:$0xff] %vm101, %v4570
    %4584 = vst.msk [vmem:[#allocation4 + $0x28] sm:$0xff] %vm101, %v4571
    %4585 = vst.msk [vmem:[#allocation4 + $0x30] sm:$0xff] %vm101, %v4572
    %4586 = vst.msk [vmem:[#allocation4 + $0x38] sm:$0xff] %vm101, %v4573
    %4587 = vst.msk [vmem:[#allocation4 + $0x40] sm:$0xff] %vm101, %v4574
    %4588 = vst.msk [vmem:[#allocation4 + $0x48] sm:$0xff] %vm101, %v4575
    %4589 = vst.msk [vmem:[#allocation4 + $0x50] sm:$0xff] %vm101, %v4576
    %4590 = vst.msk [vmem:[#allocation4 + $0x58] sm:$0xff] %vm101, %v4577
    %4591 = vst.msk [vmem:[#allocation4 + $0x60] sm:$0x3] %vm162, %v4578
    %v4592 = vld [vmem:[#allocation4] sm:$0xff]
    %v4593 = vld [vmem:[#allocation4 + $0x8] sm:$0xff]
    %v4594 = vld [vmem:[#allocation4 + $0x10] sm:$0xff]
    %v4595 = vld [vmem:[#allocation4 + $0x18] sm:$0x1]
    %4596 = vst.msk [vmem:[#allocation5] sm:$0xff] %vm101, %v4592
    %4597 = vst.msk [vmem:[#allocation5 + $0x28] sm:$0xff] %vm101, %v4593
    %4598 = vst.msk [vmem:[#allocation5 + $0x50] sm:$0xff] %vm101, %v4594
    %vm4599 = vcmask 516096
    %4600 = vst.msk [vmem:[#allocation5 + $0x78] sm:$0x1] %vm4599, %v4595
    %v4601 = vld [vmem:[#allocation4 + $0x1] sm:$0xff]
    %v4602 = vld [vmem:[#allocation4 + $0x9] sm:$0xff]
    %v4603 = vld [vmem:[#allocation4 + $0x11] sm:$0xff]
    %v4604 = vld [vmem:[#allocation4 + $0x19] sm:$0x1]
    %4609 = vrot.lane.b32.xlu0 %v4601, 64
    %v4610 = vpop.permute.xlu0 %4609
    %4611 = vrot.lane.b32.xlu0 %v4602, 64
    %v4612 = vpop.permute.xlu0 %4611
    %4613 = vrot.lane.b32.xlu0 %v4603, 64
    %v4614 = vpop.permute.xlu0 %4613
    %4615 = vrot.lane.b32.xlu0 %v4604, 64
    %v4616 = vpop.permute.xlu0 %4615
    %vm4621 = vcmask 1048064
    %4622 = vst.msk [vmem:[#allocation5] sm:$0xff] %vm4621, %v4610
    %4623 = vst.msk [vmem:[#allocation5 + $0x28] sm:$0xff] %vm4621, %v4612
    %4624 = vst.msk [vmem:[#allocation5 + $0x50] sm:$0xff] %vm4621, %v4614
    %vm4625 = vcmask 1040896
    %4626 = vst.msk [vmem:[#allocation5 + $0x78] sm:$0x1] %vm4625, %v4616
    %v4627 = vld [vmem:[#allocation4 + $0x2] sm:$0xff]
    %v4628 = vld [vmem:[#allocation4 + $0xa] sm:$0xff]
    %v4629 = vld [vmem:[#allocation4 + $0x12] sm:$0xff]
    %v4630 = vld [vmem:[#allocation4 + $0x1a] sm:$0x1]
    %4631 = vst.msk [vmem:[#allocation5 + $0x8] sm:$0xff] %vm101, %v4627
    %4632 = vst.msk [vmem:[#allocation5 + $0x30] sm:$0xff] %vm101, %v4628
    %4633 = vst.msk [vmem:[#allocation5 + $0x58] sm:$0xff] %vm101, %v4629
    %4634 = vst.msk [vmem:[#allocation5 + $0x80] sm:$0x1] %vm4599, %v4630
    %v4635 = vld [vmem:[#allocation4 + $0x7] sm:$0xff]
    %v4636 = vld [vmem:[#allocation4 + $0xf] sm:$0xff]
    %v4637 = vld [vmem:[#allocation4 + $0x17] sm:$0xff]
    %v4638 = vld [vmem:[#allocation4 + $0x1f] sm:$0x1]
    %4643 = vrot.lane.b32.xlu0 %v4635, 64
    %v4644 = vpop.permute.xlu0 %4643
    %4645 = vrot.lane.b32.xlu0 %v4636, 64
    %v4646 = vpop.permute.xlu0 %4645
    %4647 = vrot.lane.b32.xlu0 %v4637, 64
    %v4648 = vpop.permute.xlu0 %4647
    %4649 = vrot.lane.b32.xlu0 %v4638, 64
    %v4650 = vpop.permute.xlu0 %4649
    %4655 = vst.msk [vmem:[#allocation5 + $0x8] sm:$0xff] %vm4621, %v4644
    %4656 = vst.msk [vmem:[#allocation5 + $0x30] sm:$0xff] %vm4621, %v4646
    %4657 = vst.msk [vmem:[#allocation5 + $0x58] sm:$0xff] %vm4621, %v4648
    %4658 = vst.msk [vmem:[#allocation5 + $0x80] sm:$0x1] %vm4625, %v4650
    %v4659 = vld [vmem:[#allocation4 + $0x8] sm:$0xff]
    %v4660 = vld [vmem:[#allocation4 + $0x10] sm:$0xff]
    %v4661 = vld [vmem:[#allocation4 + $0x18] sm:$0xff]
    %v4662 = vld [vmem:[#allocation4 + $0x20] sm:$0x1]
    %4663 = vst.msk [vmem:[#allocation5 + $0x10] sm:$0xff] %vm101, %v4659
    %4664 = vst.msk [vmem:[#allocation5 + $0x38] sm:$0xff] %vm101, %v4660
    %4665 = vst.msk [vmem:[#allocation5 + $0x60] sm:$0xff] %vm101, %v4661
    %4666 = vst.msk [vmem:[#allocation5 + $0x88] sm:$0x1] %vm4599, %v4662
    %v4667 = vld [vmem:[#allocation4 + $0x9] sm:$0xff]
    %v4668 = vld [vmem:[#allocation4 + $0x11] sm:$0xff]
    %v4669 = vld [vmem:[#allocation4 + $0x19] sm:$0xff]
    %v4670 = vld [vmem:[#allocation4 + $0x21] sm:$0x1]
    %4675 = vrot.lane.b32.xlu0 %v4667, 64
    %v4676 = vpop.permute.xlu0 %4675
    %4677 = vrot.lane.b32.xlu0 %v4668, 64
    %v4678 = vpop.permute.xlu0 %4677
    %4679 = vrot.lane.b32.xlu0 %v4669, 64
    %v4680 = vpop.permute.xlu0 %4679
    %4681 = vrot.lane.b32.xlu0 %v4670, 64
    %v4682 = vpop.permute.xlu0 %4681
    %4687 = vst.msk [vmem:[#allocation5 + $0x10] sm:$0xff] %vm4621, %v4676
    %4688 = vst.msk [vmem:[#allocation5 + $0x38] sm:$0xff] %vm4621, %v4678
    %4689 = vst.msk [vmem:[#allocation5 + $0x60] sm:$0xff] %vm4621, %v4680
    %4690 = vst.msk [vmem:[#allocation5 + $0x88] sm:$0x1] %vm4625, %v4682
    %v4691 = vld [vmem:[#allocation4 + $0xe] sm:$0xff]
    %v4692 = vld [vmem:[#allocation4 + $0x16] sm:$0xff]
    %v4693 = vld [vmem:[#allocation4 + $0x1e] sm:$0xff]
    %v4694 = vld [vmem:[#allocation4 + $0x26] sm:$0x1]
    %4695 = vst.msk [vmem:[#allocation5 + $0x18] sm:$0xff] %vm101, %v4691
    %4696 = vst.msk [vmem:[#allocation5 + $0x40] sm:$0xff] %vm101, %v4692
    %4697 = vst.msk [vmem:[#allocation5 + $0x68] sm:$0xff] %vm101, %v4693
    %4698 = vst.msk [vmem:[#allocation5 + $0x90] sm:$0x1] %vm4599, %v4694
    %v4699 = vld [vmem:[#allocation4 + $0xf] sm:$0xff]
    %v4700 = vld [vmem:[#allocation4 + $0x17] sm:$0xff]
    %v4701 = vld [vmem:[#allocation4 + $0x1f] sm:$0xff]
    %v4702 = vld [vmem:[#allocation4 + $0x27] sm:$0x1]
    %4707 = vrot.lane.b32.xlu0 %v4699, 64
    %v4708 = vpop.permute.xlu0 %4707
    %4709 = vrot.lane.b32.xlu0 %v4700, 64
    %v4710 = vpop.permute.xlu0 %4709
    %4711 = vrot.lane.b32.xlu0 %v4701, 64
    %v4712 = vpop.permute.xlu0 %4711
    %4713 = vrot.lane.b32.xlu0 %v4702, 64
    %v4714 = vpop.permute.xlu0 %4713
    %4719 = vst.msk [vmem:[#allocation5 + $0x18] sm:$0xff] %vm4621, %v4708
    %4720 = vst.msk [vmem:[#allocation5 + $0x40] sm:$0xff] %vm4621, %v4710
    %4721 = vst.msk [vmem:[#allocation5 + $0x68] sm:$0xff] %vm4621, %v4712
    %4722 = vst.msk [vmem:[#allocation5 + $0x90] sm:$0x1] %vm4625, %v4714
    %v4723 = vld [vmem:[#allocation4 + $0x10] sm:$0xff]
    %v4724 = vld [vmem:[#allocation4 + $0x18] sm:$0xff]
    %v4725 = vld [vmem:[#allocation4 + $0x20] sm:$0xff]
    %v4726 = vld [vmem:[#allocation4 + $0x28] sm:$0x1]
    %4727 = vst.msk [vmem:[#allocation5 + $0x20] sm:$0xff] %vm101, %v4723
    %4728 = vst.msk [vmem:[#allocation5 + $0x48] sm:$0xff] %vm101, %v4724
    %4729 = vst.msk [vmem:[#allocation5 + $0x70] sm:$0xff] %vm101, %v4725
    %4730 = vst.msk [vmem:[#allocation5 + $0x98] sm:$0x1] %vm4599, %v4726
    %v4731 = vld [vmem:[#allocation4 + $0x31] sm:$0xff]
    %v4732 = vld [vmem:[#allocation4 + $0x39] sm:$0xff]
    %v4733 = vld [vmem:[#allocation4 + $0x41] sm:$0xff]
    %v4734 = vld [vmem:[#allocation4 + $0x49] sm:$0x1]
    %v4739 = vrot.slane %v4731, 7
    %v4740 = vrot.slane %v4732, 7
    %v4741 = vsel %vm3521, %v4739, %v4740
    %v4742 = vrot.slane %v4733, 7
    %v4743 = vsel %vm3521, %v4740, %v4742
    %v4744 = vrot.slane %v4734, 7
    %v4745 = vsel %vm3521, %v4742, %v4744
    %vm4750 = vcmask 523265
    %4751 = vst.msk [vmem:[#allocation5 + $0xf0] sm:$0xfe] %vm4750, %v4739
    %4752 = vst.msk [vmem:[#allocation5 + $0x118] sm:$0xff] %vm101, %v4741
    %4753 = vst.msk [vmem:[#allocation5 + $0x140] sm:$0xff] %vm101, %v4743
    %4754 = vst.msk [vmem:[#allocation5 + $0x168] sm:$0x3] %vm162, %v4745
    %v4755 = vld [vmem:[#allocation4 + $0x32] sm:$0xff]
    %v4756 = vld [vmem:[#allocation4 + $0x3a] sm:$0xff]
    %v4757 = vld [vmem:[#allocation4 + $0x42] sm:$0xff]
    %v4758 = vld [vmem:[#allocation4 + $0x4a] sm:$0x1]
    %v4763 = vrot.slane %v4755, 7
    %v4764 = vrot.slane %v4756, 7
    %v4765 = vsel %vm3521, %v4763, %v4764
    %v4766 = vrot.slane %v4757, 7
    %v4767 = vsel %vm3521, %v4764, %v4766
    %v4768 = vrot.slane %v4758, 7
    %v4769 = vsel %vm3521, %v4766, %v4768
    %4770 = vrot.lane.b32.xlu0 %v4763, 64
    %v4771 = vpop.permute.xlu0 %4770
    %4772 = vrot.lane.b32.xlu0 %v4765, 64
    %v4773 = vpop.permute.xlu0 %4772
    %4774 = vrot.lane.b32.xlu0 %v4767, 64
    %v4775 = vpop.permute.xlu0 %4774
    %4776 = vrot.lane.b32.xlu0 %v4769, 64
    %v4777 = vpop.permute.xlu0 %4776
    %vm4782 = vcmask 1048065
    %4783 = vst.msk [vmem:[#allocation5 + $0xf0] sm:$0xfe] %vm4782, %v4771
    %4784 = vst.msk [vmem:[#allocation5 + $0x118] sm:$0xff] %vm4621, %v4773
    %4785 = vst.msk [vmem:[#allocation5 + $0x140] sm:$0xff] %vm4621, %v4775
    %vm4786 = vcmask 1041920
    %4787 = vst.msk [vmem:[#allocation5 + $0x168] sm:$0x3] %vm4786, %v4777
    %v4788 = vld [vmem:[#allocation4 + $0x33] sm:$0xff]
    %v4789 = vld [vmem:[#allocation4 + $0x3b] sm:$0xff]
    %v4790 = vld [vmem:[#allocation4 + $0x43] sm:$0xff]
    %v4791 = vld [vmem:[#allocation4 + $0x4b] sm:$0x1]
    %v4796 = vrot.slane %v4788, 7
    %v4797 = vrot.slane %v4789, 7
    %v4798 = vsel %vm3521, %v4796, %v4797
    %v4799 = vrot.slane %v4790, 7
    %v4800 = vsel %vm3521, %v4797, %v4799
    %v4801 = vrot.slane %v4791, 7
    %v4802 = vsel %vm3521, %v4799, %v4801
    %4807 = vst.msk [vmem:[#allocation5 + $0xf8] sm:$0xfe] %vm4750, %v4796
    %4808 = vst.msk [vmem:[#allocation5 + $0x120] sm:$0xff] %vm101, %v4798
    %4809 = vst.msk [vmem:[#allocation5 + $0x148] sm:$0xff] %vm101, %v4800
    %4810 = vst.msk [vmem:[#allocation5 + $0x170] sm:$0x3] %vm162, %v4802
    %v4811 = vld [vmem:[#allocation4 + $0x38] sm:$0xff]
    %v4812 = vld [vmem:[#allocation4 + $0x40] sm:$0xff]
    %v4813 = vld [vmem:[#allocation4 + $0x48] sm:$0xff]
    %v4814 = vld [vmem:[#allocation4 + $0x50] sm:$0x1]
    %v4819 = vrot.slane %v4811, 7
    %v4820 = vrot.slane %v4812, 7
    %v4821 = vsel %vm3521, %v4819, %v4820
    %v4822 = vrot.slane %v4813, 7
    %v4823 = vsel %vm3521, %v4820, %v4822
    %v4824 = vrot.slane %v4814, 7
    %v4825 = vsel %vm3521, %v4822, %v4824
    %4826 = vrot.lane.b32.xlu0 %v4819, 64
    %v4827 = vpop.permute.xlu0 %4826
    %4828 = vrot.lane.b32.xlu0 %v4821, 64
    %v4829 = vpop.permute.xlu0 %4828
    %4830 = vrot.lane.b32.xlu0 %v4823, 64
    %v4831 = vpop.permute.xlu0 %4830
    %4832 = vrot.lane.b32.xlu0 %v4825, 64
    %v4833 = vpop.permute.xlu0 %4832
    %4838 = vst.msk [vmem:[#allocation5 + $0xf8] sm:$0xfe] %vm4782, %v4827
    %4839 = vst.msk [vmem:[#allocation5 + $0x120] sm:$0xff] %vm4621, %v4829
    %4840 = vst.msk [vmem:[#allocation5 + $0x148] sm:$0xff] %vm4621, %v4831
    %4841 = vst.msk [vmem:[#allocation5 + $0x170] sm:$0x3] %vm4786, %v4833
    %v4842 = vld [vmem:[#allocation4 + $0x39] sm:$0xff]
    %v4843 = vld [vmem:[#allocation4 + $0x41] sm:$0xff]
    %v4844 = vld [vmem:[#allocation4 + $0x49] sm:$0xff]
    %v4845 = vld [vmem:[#allocation4 + $0x51] sm:$0x1]
    %v4850 = vrot.slane %v4842, 7
    %v4851 = vrot.slane %v4843, 7
    %v4852 = vsel %vm3521, %v4850, %v4851
    %v4853 = vrot.slane %v4844, 7
    %v4854 = vsel %vm3521, %v4851, %v4853
    %v4855 = vrot.slane %v4845, 7
    %v4856 = vsel %vm3521, %v4853, %v4855
    %4861 = vst.msk [vmem:[#allocation5 + $0x100] sm:$0xfe] %vm4750, %v4850
    %4862 = vst.msk [vmem:[#allocation5 + $0x128] sm:$0xff] %vm101, %v4852
    %4863 = vst.msk [vmem:[#allocation5 + $0x150] sm:$0xff] %vm101, %v4854
    %4864 = vst.msk [vmem:[#allocation5 + $0x178] sm:$0x3] %vm162, %v4856
    %v4865 = vld [vmem:[#allocation4 + $0x3a] sm:$0xff]
    %v4866 = vld [vmem:[#allocation4 + $0x42] sm:$0xff]
    %v4867 = vld [vmem:[#allocation4 + $0x4a] sm:$0xff]
    %v4868 = vld [vmem:[#allocation4 + $0x52] sm:$0x1]
    %v4873 = vrot.slane %v4865, 7
    %v4874 = vrot.slane %v4866, 7
    %v4875 = vsel %vm3521, %v4873, %v4874
    %v4876 = vrot.slane %v4867, 7
    %v4877 = vsel %vm3521, %v4874, %v4876
    %v4878 = vrot.slane %v4868, 7
    %v4879 = vsel %vm3521, %v4876, %v4878
    %4880 = vrot.lane.b32.xlu0 %v4873, 64
    %v4881 = vpop.permute.xlu0 %4880
    %4882 = vrot.lane.b32.xlu0 %v4875, 64
    %v4883 = vpop.permute.xlu0 %4882
    %4884 = vrot.lane.b32.xlu0 %v4877, 64
    %v4885 = vpop.permute.xlu0 %4884
    %4886 = vrot.lane.b32.xlu0 %v4879, 64
    %v4887 = vpop.permute.xlu0 %4886
    %4892 = vst.msk [vmem:[#allocation5 + $0x100] sm:$0xfe] %vm4782, %v4881
    %4893 = vst.msk [vmem:[#allocation5 + $0x128] sm:$0xff] %vm4621, %v4883
    %4894 = vst.msk [vmem:[#allocation5 + $0x150] sm:$0xff] %vm4621, %v4885
    %4895 = vst.msk [vmem:[#allocation5 + $0x178] sm:$0x3] %vm4786, %v4887
    %v4896 = vld [vmem:[#allocation4 + $0x3f] sm:$0xff]
    %v4897 = vld [vmem:[#allocation4 + $0x47] sm:$0xff]
    %v4898 = vld [vmem:[#allocation4 + $0x4f] sm:$0xff]
    %v4899 = vld [vmem:[#allocation4 + $0x57] sm:$0x1]
    %v4904 = vrot.slane %v4896, 7
    %v4905 = vrot.slane %v4897, 7
    %v4906 = vsel %vm3521, %v4904, %v4905
    %v4907 = vrot.slane %v4898, 7
    %v4908 = vsel %vm3521, %v4905, %v4907
    %v4909 = vrot.slane %v4899, 7
    %v4910 = vsel %vm3521, %v4907, %v4909
    %4915 = vst.msk [vmem:[#allocation5 + $0x108] sm:$0xfe] %vm4750, %v4904
    %4916 = vst.msk [vmem:[#allocation5 + $0x130] sm:$0xff] %vm101, %v4906
    %4917 = vst.msk [vmem:[#allocation5 + $0x158] sm:$0xff] %vm101, %v4908
    %4918 = vst.msk [vmem:[#allocation5 + $0x180] sm:$0x3] %vm162, %v4910
    %v4919 = vld [vmem:[#allocation4 + $0x40] sm:$0xff]
    %v4920 = vld [vmem:[#allocation4 + $0x48] sm:$0xff]
    %v4921 = vld [vmem:[#allocation4 + $0x50] sm:$0xff]
    %v4922 = vld [vmem:[#allocation4 + $0x58] sm:$0x1]
    %v4927 = vrot.slane %v4919, 7
    %v4928 = vrot.slane %v4920, 7
    %v4929 = vsel %vm3521, %v4927, %v4928
    %v4930 = vrot.slane %v4921, 7
    %v4931 = vsel %vm3521, %v4928, %v4930
    %v4932 = vrot.slane %v4922, 7
    %v4933 = vsel %vm3521, %v4930, %v4932
    %4934 = vrot.lane.b32.xlu0 %v4927, 64
    %v4935 = vpop.permute.xlu0 %4934
    %4936 = vrot.lane.b32.xlu0 %v4929, 64
    %v4937 = vpop.permute.xlu0 %4936
    %4938 = vrot.lane.b32.xlu0 %v4931, 64
    %v4939 = vpop.permute.xlu0 %4938
    %4940 = vrot.lane.b32.xlu0 %v4933, 64
    %v4941 = vpop.permute.xlu0 %4940
    %4946 = vst.msk [vmem:[#allocation5 + $0x108] sm:$0xfe] %vm4782, %v4935
    %4947 = vst.msk [vmem:[#allocation5 + $0x130] sm:$0xff] %vm4621, %v4937
    %4948 = vst.msk [vmem:[#allocation5 + $0x158] sm:$0xff] %vm4621, %v4939
    %4949 = vst.msk [vmem:[#allocation5 + $0x180] sm:$0x3] %vm4786, %v4941
    %v4950 = vld [vmem:[#allocation4 + $0x41] sm:$0xff]
    %v4951 = vld [vmem:[#allocation4 + $0x49] sm:$0xff]
    %v4952 = vld [vmem:[#allocation4 + $0x51] sm:$0xff]
    %v4953 = vld [vmem:[#allocation4 + $0x59] sm:$0x1]
    %v4958 = vrot.slane %v4950, 7
    %v4959 = vrot.slane %v4951, 7
    %v4960 = vsel %vm3521, %v4958, %v4959
    %v4961 = vrot.slane %v4952, 7
    %v4962 = vsel %vm3521, %v4959, %v4961
    %v4963 = vrot.slane %v4953, 7
    %v4964 = vsel %vm3521, %v4961, %v4963
    %4969 = vst.msk [vmem:[#allocation5 + $0x110] sm:$0xfe] %vm4750, %v4958
    %4970 = vst.msk [vmem:[#allocation5 + $0x138] sm:$0xff] %vm101, %v4960
    %4971 = vst.msk [vmem:[#allocation5 + $0x160] sm:$0xff] %vm101, %v4962
    %4972 = vst.msk [vmem:[#allocation5 + $0x188] sm:$0x3] %vm162, %v4964
    %v4973 = vld [vmem:[#allocation5] sm:$0xff]
    %v4974 = vld [vmem:[#allocation5 + $0x8] sm:$0xff]
    %v4975 = vld [vmem:[#allocation5 + $0x10] sm:$0xff]
    %v4976 = vld [vmem:[#allocation5 + $0x18] sm:$0xff]
    %v4977 = vld [vmem:[#allocation5 + $0x20] sm:$0xff]
    %v4978 = vld [vmem:[#allocation5 + $0x28] sm:$0xff]
    %v4979 = vld [vmem:[#allocation5 + $0x30] sm:$0xff]
    %v4980 = vld [vmem:[#allocation5 + $0x38] sm:$0xff]
    %v4981 = vld [vmem:[#allocation5 + $0x40] sm:$0xff]
    %v4982 = vld [vmem:[#allocation5 + $0x48] sm:$0xff]
    %v4983 = vld [vmem:[#allocation5 + $0x50] sm:$0xff]
    %v4984 = vld [vmem:[#allocation5 + $0x58] sm:$0xff]
    %v4985 = vld [vmem:[#allocation5 + $0x60] sm:$0xff]
    %v4986 = vld [vmem:[#allocation5 + $0x68] sm:$0xff]
    %v4987 = vld [vmem:[#allocation5 + $0x70] sm:$0xff]
    %v4988 = vld [vmem:[#allocation5 + $0x78] sm:$0xff]
    %v4989 = vld [vmem:[#allocation5 + $0x80] sm:$0xff]
    %v4990 = vld [vmem:[#allocation5 + $0x88] sm:$0xff]
    %v4991 = vld [vmem:[#allocation5 + $0x90] sm:$0xff]
    %v4992 = vld [vmem:[#allocation5 + $0x98] sm:$0xff]
    %v4993 = vld [vmem:[#allocation5 + $0xa0] sm:$0xff]
    %v4994 = vld [vmem:[#allocation5 + $0xa8] sm:$0xff]
    %v4995 = vld [vmem:[#allocation5 + $0xb0] sm:$0xff]
    %v4996 = vld [vmem:[#allocation5 + $0xb8] sm:$0xff]
    %v4997 = vld [vmem:[#allocation5 + $0xc0] sm:$0xff]
    %v4998 = vld [vmem:[#allocation5 + $0xc8] sm:$0xff]
    %v4999 = vld [vmem:[#allocation5 + $0xd0] sm:$0xff]
    %v5000 = vld [vmem:[#allocation5 + $0xd8] sm:$0xff]
    %v5001 = vld [vmem:[#allocation5 + $0xe0] sm:$0xff]
    %v5002 = vld [vmem:[#allocation5 + $0xe8] sm:$0xff]
    %v5003 = vld [vmem:[#allocation5 + $0xf0] sm:$0xff]
    %v5004 = vld [vmem:[#allocation5 + $0xf8] sm:$0xff]
    %v5005 = vld [vmem:[#allocation5 + $0x100] sm:$0xff]
    %v5006 = vld [vmem:[#allocation5 + $0x108] sm:$0xff]
    %v5007 = vld [vmem:[#allocation5 + $0x110] sm:$0xff]
    %v5008 = vld [vmem:[#allocation5 + $0x118] sm:$0xff]
    %v5009 = vld [vmem:[#allocation5 + $0x120] sm:$0xff]
    %v5010 = vld [vmem:[#allocation5 + $0x128] sm:$0xff]
    %v5011 = vld [vmem:[#allocation5 + $0x130] sm:$0xff]
    %v5012 = vld [vmem:[#allocation5 + $0x138] sm:$0xff]
    %v5013 = vld [vmem:[#allocation5 + $0x140] sm:$0xff]
    %v5014 = vld [vmem:[#allocation5 + $0x148] sm:$0xff]
    %v5015 = vld [vmem:[#allocation5 + $0x150] sm:$0xff]
    %v5016 = vld [vmem:[#allocation5 + $0x158] sm:$0xff]
    %v5017 = vld [vmem:[#allocation5 + $0x160] sm:$0xff]
    %v5018 = vld [vmem:[#allocation5 + $0x168] sm:$0xff]
    %v5019 = vld [vmem:[#allocation5 + $0x170] sm:$0xff]
    %v5020 = vld [vmem:[#allocation5 + $0x178] sm:$0xff]
    %v5021 = vld [vmem:[#allocation5 + $0x180] sm:$0xff]
    %v5022 = vld [vmem:[#allocation5 + $0x188] sm:$0xff]
    %v5023 = vld [vmem:[#allocation5 + $0x190] sm:$0xff]
    %v5024 = vld [vmem:[#allocation5 + $0x198] sm:$0xff]
    %v5025 = vld [vmem:[#allocation5 + $0x1a0] sm:$0xff]
    %v5026 = vld [vmem:[#allocation5 + $0x1a8] sm:$0xff]
    %v5027 = vld [vmem:[#allocation5 + $0x1b0] sm:$0xff]
    %v5028 = vld [vmem:[#allocation5 + $0x1b8] sm:$0xff]
    %v5029 = vld [vmem:[#allocation5 + $0x1c0] sm:$0xff]
    %v5030 = vld [vmem:[#allocation5 + $0x1c8] sm:$0xff]
    %v5031 = vld [vmem:[#allocation5 + $0x1d0] sm:$0xff]
    %v5032 = vld [vmem:[#allocation5 + $0x1d8] sm:$0xff]
    %v5033 = vld [vmem:[#allocation5 + $0x1e0] sm:$0x3]
    %v5034 = vld [vmem:[#allocation5 + $0x1e8] sm:$0x3]
    %v5035 = vld [vmem:[#allocation5 + $0x1f0] sm:$0x3]
    %v5036 = vld [vmem:[#allocation5 + $0x1f8] sm:$0x3]
    %v5037 = vld [vmem:[#allocation5 + $0x200] sm:$0x3]
    %v5038 = vld [vmem:[%s5] sm:$0xff]
    %v5039 = vld [vmem:[%s5 + $0x8] sm:$0xff]
    %v5040 = vld [vmem:[%s5 + $0x10] sm:$0xff]
    %v5041 = vld [vmem:[%s5 + $0x18] sm:$0xff]
    %v5042 = vld [vmem:[%s5 + $0x20] sm:$0xff]
    %v5043 = vld [vmem:[%s5 + $0x28] sm:$0xff]
    %v5044 = vld [vmem:[%s5 + $0x30] sm:$0xff]
    %v5045 = vld [vmem:[%s5 + $0x38] sm:$0xff]
    %v5046 = vld [vmem:[%s5 + $0x40] sm:$0xff]
    %v5047 = vld [vmem:[%s5 + $0x48] sm:$0xff]
    %v5048 = vld [vmem:[%s5 + $0x50] sm:$0xff]
    %v5049 = vld [vmem:[%s5 + $0x58] sm:$0xff]
    %v5050 = vld [vmem:[%s5 + $0x60] sm:$0xff]
    %v5051 = vld [vmem:[%s5 + $0x68] sm:$0xff]
    %v5052 = vld [vmem:[%s5 + $0x70] sm:$0xff]
    %v5053 = vld [vmem:[%s5 + $0x78] sm:$0xff]
    %v5054 = vld [vmem:[%s5 + $0x80] sm:$0xff]
    %v5055 = vld [vmem:[%s5 + $0x88] sm:$0xff]
    %v5056 = vld [vmem:[%s5 + $0x90] sm:$0xff]
    %v5057 = vld [vmem:[%s5 + $0x98] sm:$0xff]
    %v5058 = vld [vmem:[%s5 + $0xa0] sm:$0xff]
    %v5059 = vld [vmem:[%s5 + $0xa8] sm:$0xff]
    %v5060 = vld [vmem:[%s5 + $0xb0] sm:$0xff]
    %v5061 = vld [vmem:[%s5 + $0xb8] sm:$0xff]
    %v5062 = vld [vmem:[%s5 + $0xc0] sm:$0xff]
    %v5063 = vld [vmem:[%s5 + $0xc8] sm:$0xff]
    %v5064 = vld [vmem:[%s5 + $0xd0] sm:$0xff]
    %v5065 = vld [vmem:[%s5 + $0xd8] sm:$0xff]
    %v5066 = vld [vmem:[%s5 + $0xe0] sm:$0xff]
    %v5067 = vld [vmem:[%s5 + $0xe8] sm:$0xff]
    %v5068 = vld [vmem:[%s5 + $0xf0] sm:$0xff]
    %v5069 = vld [vmem:[%s5 + $0xf8] sm:$0xff]
    %v5070 = vld [vmem:[%s5 + $0x100] sm:$0xff]
    %v5071 = vld [vmem:[%s5 + $0x108] sm:$0xff]
    %v5072 = vld [vmem:[%s5 + $0x110] sm:$0xff]
    %v5073 = vld [vmem:[%s5 + $0x118] sm:$0xff]
    %v5074 = vld [vmem:[%s5 + $0x120] sm:$0xff]
    %v5075 = vld [vmem:[%s5 + $0x128] sm:$0xff]
    %v5076 = vld [vmem:[%s5 + $0x130] sm:$0xff]
    %v5077 = vld [vmem:[%s5 + $0x138] sm:$0xff]
    %v5078 = vld [vmem:[%s5 + $0x140] sm:$0xff]
    %v5079 = vld [vmem:[%s5 + $0x148] sm:$0xff]
    %v5080 = vld [vmem:[%s5 + $0x150] sm:$0xff]
    %v5081 = vld [vmem:[%s5 + $0x158] sm:$0xff]
    %v5082 = vld [vmem:[%s5 + $0x160] sm:$0xff]
    %v5083 = vld [vmem:[%s5 + $0x168] sm:$0xff]
    %v5084 = vld [vmem:[%s5 + $0x170] sm:$0xff]
    %v5085 = vld [vmem:[%s5 + $0x178] sm:$0xff]
    %v5086 = vld [vmem:[%s5 + $0x180] sm:$0xff]
    %v5087 = vld [vmem:[%s5 + $0x188] sm:$0xff]
    %v5088 = vld [vmem:[%s5 + $0x190] sm:$0xff]
    %v5089 = vld [vmem:[%s5 + $0x198] sm:$0xff]
    %v5090 = vld [vmem:[%s5 + $0x1a0] sm:$0xff]
    %v5091 = vld [vmem:[%s5 + $0x1a8] sm:$0xff]
    %v5092 = vld [vmem:[%s5 + $0x1b0] sm:$0xff]
    %v5093 = vld [vmem:[%s5 + $0x1b8] sm:$0xff]
    %v5094 = vld [vmem:[%s5 + $0x1c0] sm:$0xff]
    %v5095 = vld [vmem:[%s5 + $0x1c8] sm:$0xff]
    %v5096 = vld [vmem:[%s5 + $0x1d0] sm:$0xff]
    %v5097 = vld [vmem:[%s5 + $0x1d8] sm:$0xff]
    %v5098 = vld [vmem:[%s5 + $0x1e0] sm:$0xff]
    %v5099 = vld [vmem:[%s5 + $0x1e8] sm:$0xff]
    %v5100 = vld [vmem:[%s5 + $0x1f0] sm:$0xff]
    %v5101 = vld [vmem:[%s5 + $0x1f8] sm:$0xff]
    %v5102 = vld [vmem:[%s5 + $0x200] sm:$0xff]
    %v5103 = vld [vmem:[%s5 + $0x208] sm:$0xff]
    %v5104 = vld [vmem:[%s5 + $0x210] sm:$0xff]
    %v5105 = vld [vmem:[%s5 + $0x218] sm:$0xff]
    %v5106 = vld [vmem:[%s5 + $0x220] sm:$0xff]
    %v5107 = vld [vmem:[%s5 + $0x228] sm:$0xff]
    %v5108 = vld [vmem:[%s5 + $0x230] sm:$0xff]
    %v5109 = vld [vmem:[%s5 + $0x238] sm:$0xff]
    %v5110 = vld [vmem:[%s6] sm:$0x1]
    %v5112 = vperm.slane %v5110, 0
    %v5115 = vsel %vm101, %v4977, 0
    %v5118 = vsel %vm101, %v4982, 0
    %v5121 = vsel %vm101, %v4987, 0
    %v5124 = vsel %vm101, %v4992, 0
    %v5127 = vsel %vm101, %v4997, 0
    %v5130 = vsel %vm101, %v5002, 0
    %v5133 = vsel %vm101, %v5007, 0
    %v5136 = vsel %vm101, %v5012, 0
    %v5139 = vsel %vm101, %v5017, 0
    %v5142 = vsel %vm101, %v5022, 0
    %v5145 = vsel %vm101, %v5027, 0
    %v5148 = vsel %vm101, %v5032, 0
    %v5151 = vsel %vm101, %v5037, 0
    %5153 = vmatpush.msra.mxu0 %v5053
    %5154 = vmatpush.msra.mxu0 %v5052
    %5155 = vmatpush.msra.mxu0 %v5051
    %5156 = vmatpush.msra.mxu0 %v5050
    %5157 = vmatpush.msra.mxu0 %v5049
    %5158 = vmatpush.msra.mxu0 %v5048
    %5159 = vmatpush.msra.mxu0 %v5047
    %5160 = vmatpush.msra.mxu0 %v5046
    %5161 = vmatpush.msra.mxu0 %v5045
    %5162 = vmatpush.msra.mxu0 %v5044
    %5163 = vmatpush.msra.mxu0 %v5043
    %5164 = vmatpush.msra.mxu0 %v5042
    %5165 = vmatpush.msra.mxu0 %v5041
    %5166 = vmatpush.msra.mxu0 %v5040
    %5167 = vmatpush.msra.mxu0 %v5039
    %5168 = vmatpush.msra.mxu0 %v5038
    %5169 = vmatmul.f32.gmra.mxu0 %v4973
    %v5170 = vpop.f32.mrf.mxu0
    %v5171 = vadd.f32 %v5112, %v5170
    %5172 = vmatmul.f32.gmra.mxu0 %v4978
    %v5173 = vpop.f32.mrf.mxu0
    %v5174 = vadd.f32 %v5112, %v5173
    %5175 = vmatmul.f32.gmra.mxu0 %v4983
    %v5176 = vpop.f32.mrf.mxu0
    %v5177 = vadd.f32 %v5112, %v5176
    %5178 = vmatmul.f32.gmra.mxu0 %v4988
    %v5179 = vpop.f32.mrf.mxu0
    %v5180 = vadd.f32 %v5112, %v5179
    %5181 = vmatmul.f32.gmra.mxu0 %v4993
    %v5182 = vpop.f32.mrf.mxu0
    %v5183 = vadd.f32 %v5112, %v5182
    %5184 = vmatmul.f32.gmra.mxu0 %v4998
    %v5185 = vpop.f32.mrf.mxu0
    %v5186 = vadd.f32 %v5112, %v5185
    %5187 = vmatmul.f32.gmra.mxu0 %v5003
    %v5188 = vpop.f32.mrf.mxu0
    %v5189 = vadd.f32 %v5112, %v5188
    %5190 = vmatmul.f32.gmra.mxu0 %v5008
    %v5191 = vpop.f32.mrf.mxu0
    %v5192 = vadd.f32 %v5112, %v5191
    %5193 = vmatmul.f32.gmra.mxu0 %v5013
    %v5194 = vpop.f32.mrf.mxu0
    %v5195 = vadd.f32 %v5112, %v5194
    %5196 = vmatmul.f32.gmra.mxu0 %v5018
    %v5197 = vpop.f32.mrf.mxu0
    %v5198 = vadd.f32 %v5112, %v5197
    %5199 = vmatmul.f32.gmra.mxu0 %v5023
    %v5200 = vpop.f32.mrf.mxu0
    %v5201 = vadd.f32 %v5112, %v5200
    %5202 = vmatmul.f32.gmra.mxu0 %v5028
    %v5203 = vpop.f32.mrf.mxu0
    %v5204 = vadd.f32 %v5112, %v5203
    %5205 = vmatmul.f32.gmra.mxu0 %v5033
    %v5206 = vpop.f32.mrf.mxu0
    %v5207 = vadd.f32 %v5112, %v5206
    %5208 = vdwg.mxu0
    %5209 = vmatpush.msra.mxu0 %v5069
    %5210 = vmatpush.msra.mxu0 %v5068
    %5211 = vmatpush.msra.mxu0 %v5067
    %5212 = vmatpush.msra.mxu0 %v5066
    %5213 = vmatpush.msra.mxu0 %v5065
    %5214 = vmatpush.msra.mxu0 %v5064
    %5215 = vmatpush.msra.mxu0 %v5063
    %5216 = vmatpush.msra.mxu0 %v5062
    %5217 = vmatpush.msra.mxu0 %v5061
    %5218 = vmatpush.msra.mxu0 %v5060
    %5219 = vmatpush.msra.mxu0 %v5059
    %5220 = vmatpush.msra.mxu0 %v5058
    %5221 = vmatpush.msra.mxu0 %v5057
    %5222 = vmatpush.msra.mxu0 %v5056
    %5223 = vmatpush.msra.mxu0 %v5055
    %5224 = vmatpush.msra.mxu0 %v5054
    %5225 = vmatmul.f32.gmra.mxu0 %v4974
    %v5226 = vpop.f32.mrf.mxu0
    %v5227 = vadd.f32 %v5171, %v5226
    %5228 = vmatmul.f32.gmra.mxu0 %v4979
    %v5229 = vpop.f32.mrf.mxu0
    %v5230 = vadd.f32 %v5174, %v5229
    %5231 = vmatmul.f32.gmra.mxu0 %v4984
    %v5232 = vpop.f32.mrf.mxu0
    %v5233 = vadd.f32 %v5177, %v5232
    %5234 = vmatmul.f32.gmra.mxu0 %v4989
    %v5235 = vpop.f32.mrf.mxu0
    %v5236 = vadd.f32 %v5180, %v5235
    %5237 = vmatmul.f32.gmra.mxu0 %v4994
    %v5238 = vpop.f32.mrf.mxu0
    %v5239 = vadd.f32 %v5183, %v5238
    %5240 = vmatmul.f32.gmra.mxu0 %v4999
    %v5241 = vpop.f32.mrf.mxu0
    %v5242 = vadd.f32 %v5186, %v5241
    %5243 = vmatmul.f32.gmra.mxu0 %v5004
    %v5244 = vpop.f32.mrf.mxu0
    %v5245 = vadd.f32 %v5189, %v5244
    %5246 = vmatmul.f32.gmra.mxu0 %v5009
    %v5247 = vpop.f32.mrf.mxu0
    %v5248 = vadd.f32 %v5192, %v5247
    %5249 = vmatmul.f32.gmra.mxu0 %v5014
    %v5250 = vpop.f32.mrf.mxu0
    %v5251 = vadd.f32 %v5195, %v5250
    %5252 = vmatmul.f32.gmra.mxu0 %v5019
    %v5253 = vpop.f32.mrf.mxu0
    %v5254 = vadd.f32 %v5198, %v5253
    %5255 = vmatmul.f32.gmra.mxu0 %v5024
    %v5256 = vpop.f32.mrf.mxu0
    %v5257 = vadd.f32 %v5201, %v5256
    %5258 = vmatmul.f32.gmra.mxu0 %v5029
    %v5259 = vpop.f32.mrf.mxu0
    %v5260 = vadd.f32 %v5204, %v5259
    %5261 = vmatmul.f32.gmra.mxu0 %v5034
    %v5262 = vpop.f32.mrf.mxu0
    %v5263 = vadd.f32 %v5207, %v5262
    %5264 = vdwg.mxu0
    %5265 = vmatpush.msra.mxu0 %v5085
    %5266 = vmatpush.msra.mxu0 %v5084
    %5267 = vmatpush.msra.mxu0 %v5083
    %5268 = vmatpush.msra.mxu0 %v5082
    %5269 = vmatpush.msra.mxu0 %v5081
    %5270 = vmatpush.msra.mxu0 %v5080
    %5271 = vmatpush.msra.mxu0 %v5079
    %5272 = vmatpush.msra.mxu0 %v5078
    %5273 = vmatpush.msra.mxu0 %v5077
    %5274 = vmatpush.msra.mxu0 %v5076
    %5275 = vmatpush.msra.mxu0 %v5075
    %5276 = vmatpush.msra.mxu0 %v5074
    %5277 = vmatpush.msra.mxu0 %v5073
    %5278 = vmatpush.msra.mxu0 %v5072
    %5279 = vmatpush.msra.mxu0 %v5071
    %5280 = vmatpush.msra.mxu0 %v5070
    %5281 = vmatmul.f32.gmra.mxu0 %v4975
    %v5282 = vpop.f32.mrf.mxu0
    %v5283 = vadd.f32 %v5227, %v5282
    %5284 = vmatmul.f32.gmra.mxu0 %v4980
    %v5285 = vpop.f32.mrf.mxu0
    %v5286 = vadd.f32 %v5230, %v5285
    %5287 = vmatmul.f32.gmra.mxu0 %v4985
    %v5288 = vpop.f32.mrf.mxu0
    %v5289 = vadd.f32 %v5233, %v5288
    %5290 = vmatmul.f32.gmra.mxu0 %v4990
    %v5291 = vpop.f32.mrf.mxu0
    %v5292 = vadd.f32 %v5236, %v5291
    %5293 = vmatmul.f32.gmra.mxu0 %v4995
    %v5294 = vpop.f32.mrf.mxu0
    %v5295 = vadd.f32 %v5239, %v5294
    %5296 = vmatmul.f32.gmra.mxu0 %v5000
    %v5297 = vpop.f32.mrf.mxu0
    %v5298 = vadd.f32 %v5242, %v5297
    %5299 = vmatmul.f32.gmra.mxu0 %v5005
    %v5300 = vpop.f32.mrf.mxu0
    %v5301 = vadd.f32 %v5245, %v5300
    %5302 = vmatmul.f32.gmra.mxu0 %v5010
    %v5303 = vpop.f32.mrf.mxu0
    %v5304 = vadd.f32 %v5248, %v5303
    %5305 = vmatmul.f32.gmra.mxu0 %v5015
    %v5306 = vpop.f32.mrf.mxu0
    %v5307 = vadd.f32 %v5251, %v5306
    %5308 = vmatmul.f32.gmra.mxu0 %v5020
    %v5309 = vpop.f32.mrf.mxu0
    %v5310 = vadd.f32 %v5254, %v5309
    %5311 = vmatmul.f32.gmra.mxu0 %v5025
    %v5312 = vpop.f32.mrf.mxu0
    %v5313 = vadd.f32 %v5257, %v5312
    %5314 = vmatmul.f32.gmra.mxu0 %v5030
    %v5315 = vpop.f32.mrf.mxu0
    %v5316 = vadd.f32 %v5260, %v5315
    %5317 = vmatmul.f32.gmra.mxu0 %v5035
    %v5318 = vpop.f32.mrf.mxu0
    %v5319 = vadd.f32 %v5263, %v5318
    %5320 = vdwg.mxu0
    %5321 = vmatpush.msra.mxu0 %v5101
    %5322 = vmatpush.msra.mxu0 %v5100
    %5323 = vmatpush.msra.mxu0 %v5099
    %5324 = vmatpush.msra.mxu0 %v5098
    %5325 = vmatpush.msra.mxu0 %v5097
    %5326 = vmatpush.msra.mxu0 %v5096
    %5327 = vmatpush.msra.mxu0 %v5095
    %5328 = vmatpush.msra.mxu0 %v5094
    %5329 = vmatpush.msra.mxu0 %v5093
    %5330 = vmatpush.msra.mxu0 %v5092
    %5331 = vmatpush.msra.mxu0 %v5091
    %5332 = vmatpush.msra.mxu0 %v5090
    %5333 = vmatpush.msra.mxu0 %v5089
    %5334 = vmatpush.msra.mxu0 %v5088
    %5335 = vmatpush.msra.mxu0 %v5087
    %5336 = vmatpush.msra.mxu0 %v5086
    %5337 = vmatmul.f32.gmra.mxu0 %v4976
    %v5338 = vpop.f32.mrf.mxu0
    %v5339 = vadd.f32 %v5283, %v5338
    %5340 = vmatmul.f32.gmra.mxu0 %v4981
    %v5341 = vpop.f32.mrf.mxu0
    %v5342 = vadd.f32 %v5286, %v5341
    %5343 = vmatmul.f32.gmra.mxu0 %v4986
    %v5344 = vpop.f32.mrf.mxu0
    %v5345 = vadd.f32 %v5289, %v5344
    %5346 = vmatmul.f32.gmra.mxu0 %v4991
    %v5347 = vpop.f32.mrf.mxu0
    %v5348 = vadd.f32 %v5292, %v5347
    %5349 = vmatmul.f32.gmra.mxu0 %v4996
    %v5350 = vpop.f32.mrf.mxu0
    %v5351 = vadd.f32 %v5295, %v5350
    %5352 = vmatmul.f32.gmra.mxu0 %v5001
    %v5353 = vpop.f32.mrf.mxu0
    %v5354 = vadd.f32 %v5298, %v5353
    %5355 = vmatmul.f32.gmra.mxu0 %v5006
    %v5356 = vpop.f32.mrf.mxu0
    %v5357 = vadd.f32 %v5301, %v5356
    %5358 = vmatmul.f32.gmra.mxu0 %v5011
    %v5359 = vpop.f32.mrf.mxu0
    %v5360 = vadd.f32 %v5304, %v5359
    %5361 = vmatmul.f32.gmra.mxu0 %v5016
    %v5362 = vpop.f32.mrf.mxu0
    %v5363 = vadd.f32 %v5307, %v5362
    %5364 = vmatmul.f32.gmra.mxu0 %v5021
    %v5365 = vpop.f32.mrf.mxu0
    %v5366 = vadd.f32 %v5310, %v5365
    %5367 = vmatmul.f32.gmra.mxu0 %v5026
    %v5368 = vpop.f32.mrf.mxu0
    %v5369 = vadd.f32 %v5313, %v5368
    %5370 = vmatmul.f32.gmra.mxu0 %v5031
    %v5371 = vpop.f32.mrf.mxu0
    %v5372 = vadd.f32 %v5316, %v5371
    %5373 = vmatmul.f32.gmra.mxu0 %v5036
    %v5374 = vpop.f32.mrf.mxu0
    %v5375 = vadd.f32 %v5319, %v5374
    %5376 = vdwg.mxu0
    %5377 = vmatpush.msra.mxu0 0.0
    %5378 = vmatpush.msra.mxu0 0.0
    %5379 = vmatpush.msra.mxu0 0.0
    %5380 = vmatpush.msra.mxu0 0.0
    %5381 = vmatpush.msra.mxu0 0.0
    %5382 = vmatpush.msra.mxu0 0.0
    %5383 = vmatpush.msra.mxu0 0.0
    %5384 = vmatpush.msra.mxu0 0.0
    %5385 = vmatpush.msra.mxu0 %v5109
    %5386 = vmatpush.msra.mxu0 %v5108
    %5387 = vmatpush.msra.mxu0 %v5107
    %5388 = vmatpush.msra.mxu0 %v5106
    %5389 = vmatpush.msra.mxu0 %v5105
    %5390 = vmatpush.msra.mxu0 %v5104
    %5391 = vmatpush.msra.mxu0 %v5103
    %5392 = vmatpush.msra.mxu0 %v5102
    %5393 = vmatmul.f32.gmra.mxu0 %v5115
    %v5394 = vpop.f32.mrf.mxu0
    %v5395 = vadd.f32 %v5339, %v5394
    %5396 = vmatmul.f32.gmra.mxu0 %v5118
    %v5397 = vpop.f32.mrf.mxu0
    %v5398 = vadd.f32 %v5342, %v5397
    %5399 = vmatmul.f32.gmra.mxu0 %v5121
    %v5400 = vpop.f32.mrf.mxu0
    %v5401 = vadd.f32 %v5345, %v5400
    %5402 = vmatmul.f32.gmra.mxu0 %v5124
    %v5403 = vpop.f32.mrf.mxu0
    %v5404 = vadd.f32 %v5348, %v5403
    %5405 = vmatmul.f32.gmra.mxu0 %v5127
    %v5406 = vpop.f32.mrf.mxu0
    %v5407 = vadd.f32 %v5351, %v5406
    %5408 = vmatmul.f32.gmra.mxu0 %v5130
    %v5409 = vpop.f32.mrf.mxu0
    %v5410 = vadd.f32 %v5354, %v5409
    %5411 = vmatmul.f32.gmra.mxu0 %v5133
    %v5412 = vpop.f32.mrf.mxu0
    %v5413 = vadd.f32 %v5357, %v5412
    %5414 = vmatmul.f32.gmra.mxu0 %v5136
    %v5415 = vpop.f32.mrf.mxu0
    %v5416 = vadd.f32 %v5360, %v5415
    %5417 = vmatmul.f32.gmra.mxu0 %v5139
    %v5418 = vpop.f32.mrf.mxu0
    %v5419 = vadd.f32 %v5363, %v5418
    %5420 = vmatmul.f32.gmra.mxu0 %v5142
    %v5421 = vpop.f32.mrf.mxu0
    %v5422 = vadd.f32 %v5366, %v5421
    %5423 = vmatmul.f32.gmra.mxu0 %v5145
    %v5424 = vpop.f32.mrf.mxu0
    %v5425 = vadd.f32 %v5369, %v5424
    %5426 = vmatmul.f32.gmra.mxu0 %v5148
    %v5427 = vpop.f32.mrf.mxu0
    %v5428 = vadd.f32 %v5372, %v5427
    %5429 = vmatmul.f32.gmra.mxu0 %v5151
    %v5430 = vpop.f32.mrf.mxu0
    %v5431 = vadd.f32 %v5375, %v5430
    %5432 = vdwg.mxu0
    %v5433 = vmax.f32 %v5395, 0.0
    %v5434 = vmax.f32 %v5398, 0.0
    %v5435 = vmax.f32 %v5401, 0.0
    %v5436 = vmax.f32 %v5404, 0.0
    %v5437 = vmax.f32 %v5407, 0.0
    %v5438 = vmax.f32 %v5410, 0.0
    %v5439 = vmax.f32 %v5413, 0.0
    %v5440 = vmax.f32 %v5416, 0.0
    %v5441 = vmax.f32 %v5419, 0.0
    %v5442 = vmax.f32 %v5422, 0.0
    %v5443 = vmax.f32 %v5425, 0.0
    %v5444 = vmax.f32 %v5428, 0.0
    %v5445 = vmax.f32 %v5431, 0.0
    %vm5446 = vcmask 130048
    %5447 = vst.msk [vmem:[#allocation6] sm:$0xff] %vm5446, %v5433
    %5448 = vst.msk [vmem:[#allocation6 + $0x8] sm:$0xff] %vm5446, %v5434
    %5449 = vst.msk [vmem:[#allocation6 + $0x10] sm:$0xff] %vm5446, %v5435
    %5450 = vst.msk [vmem:[#allocation6 + $0x18] sm:$0xff] %vm5446, %v5436
    %5451 = vst.msk [vmem:[#allocation6 + $0x20] sm:$0xff] %vm5446, %v5437
    %5452 = vst.msk [vmem:[#allocation6 + $0x28] sm:$0xff] %vm5446, %v5438
    %5453 = vst.msk [vmem:[#allocation6 + $0x30] sm:$0xff] %vm5446, %v5439
    %5454 = vst.msk [vmem:[#allocation6 + $0x38] sm:$0xff] %vm5446, %v5440
    %5455 = vst.msk [vmem:[#allocation6 + $0x40] sm:$0xff] %vm5446, %v5441
    %5456 = vst.msk [vmem:[#allocation6 + $0x48] sm:$0xff] %vm5446, %v5442
    %5457 = vst.msk [vmem:[#allocation6 + $0x50] sm:$0xff] %vm5446, %v5443
    %5458 = vst.msk [vmem:[#allocation6 + $0x58] sm:$0xff] %vm5446, %v5444
    %vm5459 = vcmask 123904
    %5460 = vst.msk [vmem:[#allocation6 + $0x60] sm:$0x3] %vm5459, %v5445
    %v5461 = vld [vmem:[#allocation6] sm:$0x1]
    %vm5462 = vcmask 122880
    %5463 = vst.msk [vmem:[#allocation7] sm:$0x1] %vm5462, %v5461
    %v5464 = vld [vmem:[#allocation6 + $0x1] sm:$0x1]
    %5466 = vrot.lane.b32.xlu0 %v5464, 16
    %v5467 = vpop.permute.xlu0 %5466
    %vm5469 = vcmask 254080
    %5470 = vst.msk [vmem:[#allocation7] sm:$0x1] %vm5469, %v5467
    %v5471 = vld [vmem:[#allocation6 + $0x2] sm:$0x1]
    %5473 = vrot.lane.b32.xlu0 %v5471, 32
    %v5474 = vpop.permute.xlu0 %5473
    %vm5476 = vcmask 385280
    %5477 = vst.msk [vmem:[#allocation7] sm:$0x1] %vm5476, %v5474
    %v5478 = vld [vmem:[#allocation6 + $0x3] sm:$0x1]
    %5480 = vrot.lane.b32.xlu0 %v5478, 48
    %v5481 = vpop.permute.xlu0 %5480
    %vm5483 = vcmask 516480
    %5484 = vst.msk [vmem:[#allocation7] sm:$0x1] %vm5483, %v5481
    %v5485 = vld [vmem:[#allocation6 + $0x7] sm:$0x1]
    %5487 = vrot.lane.b32.xlu0 %v5485, 64
    %v5488 = vpop.permute.xlu0 %5487
    %vm5490 = vcmask 647680
    %5491 = vst.msk [vmem:[#allocation7] sm:$0x1] %vm5490, %v5488
    %v5492 = vld [vmem:[#allocation6 + $0x8] sm:$0x1]
    %5494 = vrot.lane.b32.xlu0 %v5492, 80
    %v5495 = vpop.permute.xlu0 %5494
    %vm5497 = vcmask 778880
    %5498 = vst.msk [vmem:[#allocation7] sm:$0x1] %vm5497, %v5495
    %v5499 = vld [vmem:[#allocation6 + $0x9] sm:$0x1]
    %5501 = vrot.lane.b32.xlu0 %v5499, 96
    %v5502 = vpop.permute.xlu0 %5501
    %vm5504 = vcmask 910080
    %5505 = vst.msk [vmem:[#allocation7] sm:$0x1] %vm5504, %v5502
    %v5506 = vld [vmem:[#allocation6 + $0xa] sm:$0x1]
    %5508 = vrot.lane.b32.xlu0 %v5506, 112
    %v5509 = vpop.permute.xlu0 %5508
    %vm5511 = vcmask 1041280
    %5512 = vst.msk [vmem:[#allocation7] sm:$0x1] %vm5511, %v5509
    %v5513 = vld [vmem:[#allocation6 + $0xe] sm:$0x1]
    %5514 = vst.msk [vmem:[#allocation7 + $0x2] sm:$0x1] %vm5462, %v5513
    %v5515 = vld [vmem:[#allocation6 + $0xf] sm:$0x1]
    %5517 = vrot.lane.b32.xlu0 %v5515, 16
    %v5518 = vpop.permute.xlu0 %5517
    %5520 = vst.msk [vmem:[#allocation7 + $0x2] sm:$0x1] %vm5469, %v5518
    %v5521 = vld [vmem:[#allocation6 + $0x10] sm:$0x1]
    %5523 = vrot.lane.b32.xlu0 %v5521, 32
    %v5524 = vpop.permute.xlu0 %5523
    %5526 = vst.msk [vmem:[#allocation7 + $0x2] sm:$0x1] %vm5476, %v5524
    %v5527 = vld [vmem:[#allocation6 + $0x11] sm:$0x1]
    %5529 = vrot.lane.b32.xlu0 %v5527, 48
    %v5530 = vpop.permute.xlu0 %5529
    %5532 = vst.msk [vmem:[#allocation7 + $0x2] sm:$0x1] %vm5483, %v5530
    %v5533 = vld [vmem:[#allocation6 + $0x15] sm:$0x1]
    %5535 = vrot.lane.b32.xlu0 %v5533, 64
    %v5536 = vpop.permute.xlu0 %5535
    %5538 = vst.msk [vmem:[#allocation7 + $0x2] sm:$0x1] %vm5490, %v5536
    %v5539 = vld [vmem:[#allocation6 + $0x16] sm:$0x1]
    %5541 = vrot.lane.b32.xlu0 %v5539, 80
    %v5542 = vpop.permute.xlu0 %5541
    %5544 = vst.msk [vmem:[#allocation7 + $0x2] sm:$0x1] %vm5497, %v5542
    %v5545 = vld [vmem:[#allocation6 + $0x17] sm:$0x1]
    %5547 = vrot.lane.b32.xlu0 %v5545, 96
    %v5548 = vpop.permute.xlu0 %5547
    %5550 = vst.msk [vmem:[#allocation7 + $0x2] sm:$0x1] %vm5504, %v5548
    %v5551 = vld [vmem:[#allocation6 + $0x18] sm:$0x1]
    %5553 = vrot.lane.b32.xlu0 %v5551, 112
    %v5554 = vpop.permute.xlu0 %5553
    %5556 = vst.msk [vmem:[#allocation7 + $0x2] sm:$0x1] %vm5511, %v5554
    %v5557 = vld [vmem:[#allocation6 + $0x31] sm:$0x1]
    %5558 = vst.msk [vmem:[#allocation7 + $0x1] sm:$0x1] %vm5462, %v5557
    %v5559 = vld [vmem:[#allocation6 + $0x32] sm:$0x1]
    %5561 = vrot.lane.b32.xlu0 %v5559, 16
    %v5562 = vpop.permute.xlu0 %5561
    %5564 = vst.msk [vmem:[#allocation7 + $0x1] sm:$0x1] %vm5469, %v5562
    %v5565 = vld [vmem:[#allocation6 + $0x33] sm:$0x1]
    %5567 = vrot.lane.b32.xlu0 %v5565, 32
    %v5568 = vpop.permute.xlu0 %5567
    %5570 = vst.msk [vmem:[#allocation7 + $0x1] sm:$0x1] %vm5476, %v5568
    %v5571 = vld [vmem:[#allocation6 + $0x34] sm:$0x1]
    %5573 = vrot.lane.b32.xlu0 %v5571, 48
    %v5574 = vpop.permute.xlu0 %5573
    %5576 = vst.msk [vmem:[#allocation7 + $0x1] sm:$0x1] %vm5483, %v5574
    %v5577 = vld [vmem:[#allocation6 + $0x38] sm:$0x1]
    %5579 = vrot.lane.b32.xlu0 %v5577, 64
    %v5580 = vpop.permute.xlu0 %5579
    %5582 = vst.msk [vmem:[#allocation7 + $0x1] sm:$0x1] %vm5490, %v5580
    %v5583 = vld [vmem:[#allocation6 + $0x39] sm:$0x1]
    %5585 = vrot.lane.b32.xlu0 %v5583, 80
    %v5586 = vpop.permute.xlu0 %5585
    %5588 = vst.msk [vmem:[#allocation7 + $0x1] sm:$0x1] %vm5497, %v5586
    %v5589 = vld [vmem:[#allocation6 + $0x3a] sm:$0x1]
    %5591 = vrot.lane.b32.xlu0 %v5589, 96
    %v5592 = vpop.permute.xlu0 %5591
    %5594 = vst.msk [vmem:[#allocation7 + $0x1] sm:$0x1] %vm5504, %v5592
    %v5595 = vld [vmem:[#allocation6 + $0x3b] sm:$0x1]
    %5597 = vrot.lane.b32.xlu0 %v5595, 112
    %v5598 = vpop.permute.xlu0 %5597
    %5600 = vst.msk [vmem:[#allocation7 + $0x1] sm:$0x1] %vm5511, %v5598
    %v5601 = vld [vmem:[#allocation6 + $0x3f] sm:$0x1]
    %5602 = vst.msk [vmem:[#allocation7 + $0x3] sm:$0x1] %vm5462, %v5601
    %v5603 = vld [vmem:[#allocation6 + $0x40] sm:$0x1]
    %5605 = vrot.lane.b32.xlu0 %v5603, 16
    %v5606 = vpop.permute.xlu0 %5605
    %5608 = vst.msk [vmem:[#allocation7 + $0x3] sm:$0x1] %vm5469, %v5606
    %v5609 = vld [vmem:[#allocation6 + $0x41] sm:$0x1]
    %5611 = vrot.lane.b32.xlu0 %v5609, 32
    %v5612 = vpop.permute.xlu0 %5611
    %5614 = vst.msk [vmem:[#allocation7 + $0x3] sm:$0x1] %vm5476, %v5612
    %v5615 = vld [vmem:[#allocation6 + $0x42] sm:$0x1]
    %5617 = vrot.lane.b32.xlu0 %v5615, 48
    %v5618 = vpop.permute.xlu0 %5617
    %5620 = vst.msk [vmem:[#allocation7 + $0x3] sm:$0x1] %vm5483, %v5618
    %v5621 = vld [vmem:[#allocation6 + $0x46] sm:$0x1]
    %5623 = vrot.lane.b32.xlu0 %v5621, 64
    %v5624 = vpop.permute.xlu0 %5623
    %5626 = vst.msk [vmem:[#allocation7 + $0x3] sm:$0x1] %vm5490, %v5624
    %v5627 = vld [vmem:[#allocation6 + $0x47] sm:$0x1]
    %5629 = vrot.lane.b32.xlu0 %v5627, 80
    %v5630 = vpop.permute.xlu0 %5629
    %5632 = vst.msk [vmem:[#allocation7 + $0x3] sm:$0x1] %vm5497, %v5630
    %v5633 = vld [vmem:[#allocation6 + $0x48] sm:$0x1]
    %5635 = vrot.lane.b32.xlu0 %v5633, 96
    %v5636 = vpop.permute.xlu0 %5635
    %5638 = vst.msk [vmem:[#allocation7 + $0x3] sm:$0x1] %vm5504, %v5636
    %v5639 = vld [vmem:[#allocation6 + $0x49] sm:$0x1]
    %5641 = vrot.lane.b32.xlu0 %v5639, 112
    %v5642 = vpop.permute.xlu0 %5641
    %5644 = vst.msk [vmem:[#allocation7 + $0x3] sm:$0x1] %vm5511, %v5642
    %v5645 = vld [vmem:[#allocation7] sm:$0xf]
    %v5646 = vld [vmem:[%s7] sm:$0xff]
    %v5647 = vld [vmem:[%s7 + $0x8] sm:$0xff]
    %v5648 = vld [vmem:[%s7 + $0x10] sm:$0xff]
    %v5649 = vld [vmem:[%s7 + $0x18] sm:$0xff]
    %v5650 = vld [vmem:[%s7 + $0x20] sm:$0xff]
    %v5651 = vld [vmem:[%s7 + $0x28] sm:$0xff]
    %v5652 = vld [vmem:[%s7 + $0x30] sm:$0xff]
    %v5653 = vld [vmem:[%s7 + $0x38] sm:$0xff]
    %v5654 = vld [vmem:[%s7 + $0x40] sm:$0xff]
    %v5655 = vld [vmem:[%s7 + $0x48] sm:$0xff]
    %v5656 = vld [vmem:[%s7 + $0x50] sm:$0xff]
    %v5657 = vld [vmem:[%s7 + $0x58] sm:$0xff]
    %v5658 = vld [vmem:[%s7 + $0x60] sm:$0xff]
    %v5659 = vld [vmem:[%s7 + $0x68] sm:$0xff]
    %v5660 = vld [vmem:[%s7 + $0x70] sm:$0xff]
    %v5661 = vld [vmem:[%s7 + $0x78] sm:$0xff]
    %v5662 = vld [vmem:[%s7 + $0x80] sm:$0xff]
    %v5663 = vld [vmem:[%s7 + $0x88] sm:$0xff]
    %v5664 = vld [vmem:[%s7 + $0x90] sm:$0xff]
    %v5665 = vld [vmem:[%s7 + $0x98] sm:$0xff]
    %v5666 = vld [vmem:[%s7 + $0xa0] sm:$0xff]
    %v5667 = vld [vmem:[%s7 + $0xa8] sm:$0xff]
    %v5668 = vld [vmem:[%s7 + $0xb0] sm:$0xff]
    %v5669 = vld [vmem:[%s7 + $0xb8] sm:$0xff]
    %v5670 = vld [vmem:[%s7 + $0xc0] sm:$0xff]
    %v5671 = vld [vmem:[%s7 + $0xc8] sm:$0xff]
    %v5672 = vld [vmem:[%s7 + $0xd0] sm:$0xff]
    %v5673 = vld [vmem:[%s7 + $0xd8] sm:$0xff]
    %v5674 = vld [vmem:[%s7 + $0xe0] sm:$0xff]
    %v5675 = vld [vmem:[%s7 + $0xe8] sm:$0xff]
    %v5676 = vld [vmem:[%s7 + $0xf0] sm:$0xff]
    %v5677 = vld [vmem:[%s7 + $0xf8] sm:$0xff]
    %v5678 = vld [vmem:[%s8] sm:$0x1]
    %v5680 = vperm.slane %v5678, 0
    %5683 = vst [vmem:[#allocation1] ss:$4 sm:$0xff] %v5645
    %v5684 = vld.sshfl [vmem:[#allocation1] sm:$0xff pattern:$0x73625140]
    %v5685 = vld.sshfl [vmem:[#allocation1 + $0x8] sm:$0xff pattern:$0x73625140]
    %5688 = vmatpush.msra.mxu0 %v5661
    %5689 = vmatpush.msra.mxu0 %v5660
    %5690 = vmatpush.msra.mxu0 %v5659
    %5691 = vmatpush.msra.mxu0 %v5658
    %5692 = vmatpush.msra.mxu0 %v5657
    %5693 = vmatpush.msra.mxu0 %v5656
    %5694 = vmatpush.msra.mxu0 %v5655
    %5695 = vmatpush.msra.mxu0 %v5654
    %5696 = vmatpush.msra.mxu0 %v5653
    %5697 = vmatpush.msra.mxu0 %v5652
    %5698 = vmatpush.msra.mxu0 %v5651
    %5699 = vmatpush.msra.mxu0 %v5650
    %5700 = vmatpush.msra.mxu0 %v5649
    %5701 = vmatpush.msra.mxu0 %v5648
    %5702 = vmatpush.msra.mxu0 %v5647
    %5703 = vmatpush.msra.mxu0 %v5646
    %5704 = vmatmul.f32.gmra.mxu0 %v5684
    %v5705 = vpop.f32.mrf.mxu0
    %v5706 = vadd.f32 %v5680, %v5705
    %5707 = vdwg.mxu0
    %5708 = vmatpush.msra.mxu0 %v5677
    %5709 = vmatpush.msra.mxu0 %v5676
    %5710 = vmatpush.msra.mxu0 %v5675
    %5711 = vmatpush.msra.mxu0 %v5674
    %5712 = vmatpush.msra.mxu0 %v5673
    %5713 = vmatpush.msra.mxu0 %v5672
    %5714 = vmatpush.msra.mxu0 %v5671
    %5715 = vmatpush.msra.mxu0 %v5670
    %5716 = vmatpush.msra.mxu0 %v5669
    %5717 = vmatpush.msra.mxu0 %v5668
    %5718 = vmatpush.msra.mxu0 %v5667
    %5719 = vmatpush.msra.mxu0 %v5666
    %5720 = vmatpush.msra.mxu0 %v5665
    %5721 = vmatpush.msra.mxu0 %v5664
    %5722 = vmatpush.msra.mxu0 %v5663
    %5723 = vmatpush.msra.mxu0 %v5662
    %5724 = vmatmul.f32.gmra.mxu0 %v5685
    %v5725 = vpop.f32.mrf.mxu0
    %v5726 = vadd.f32 %v5706, %v5725
    %5727 = vdwg.mxu0
    %v5728 = vmax.f32 %v5726, 0.0
    %v5729 = vld [vmem:[%s9] sm:$0xff]
    %v5730 = vld [vmem:[%s9 + $0x8] sm:$0xff]
    %v5731 = vld [vmem:[%s9 + $0x10] sm:$0xff]
    %v5732 = vld [vmem:[%s9 + $0x18] sm:$0xff]
    %v5733 = vld [vmem:[%s9 + $0x20] sm:$0xff]
    %v5734 = vld [vmem:[%s9 + $0x28] sm:$0xff]
    %v5735 = vld [vmem:[%s9 + $0x30] sm:$0xff]
    %v5736 = vld [vmem:[%s9 + $0x38] sm:$0xff]
    %v5737 = vld [vmem:[%s10] sm:$0x1]
    %v5739 = vperm.slane %v5737, 0
    %v5742 = vsel %vm101, %v5728, 0
    %5744 = vmatpush.msra.mxu0 0.0
    %5745 = vmatpush.msra.mxu0 0.0
    %5746 = vmatpush.msra.mxu0 0.0
    %5747 = vmatpush.msra.mxu0 0.0
    %5748 = vmatpush.msra.mxu0 0.0
    %5749 = vmatpush.msra.mxu0 0.0
    %5750 = vmatpush.msra.mxu0 0.0
    %5751 = vmatpush.msra.mxu0 0.0
    %5752 = vmatpush.msra.mxu0 %v5736
    %5753 = vmatpush.msra.mxu0 %v5735
    %5754 = vmatpush.msra.mxu0 %v5734
    %5755 = vmatpush.msra.mxu0 %v5733
    %5756 = vmatpush.msra.mxu0 %v5732
    %5757 = vmatpush.msra.mxu0 %v5731
    %5758 = vmatpush.msra.mxu0 %v5730
    %5759 = vmatpush.msra.mxu0 %v5729
    %5760 = vmatmul.f32.gmra.mxu0 %v5742
    %v5761 = vpop.f32.mrf.mxu0
    %v5762 = vadd.f32 %v5739, %v5761
    %5763 = vdwg.mxu0
    %v5764 = vmax.f32 %v5762, 0.0
    %v5765 = vld [vmem:[%s11] sm:$0xff]
    %v5766 = vld [vmem:[%s11 + $0x8] sm:$0xff]
    %v5767 = vld [vmem:[%s11 + $0x10] sm:$0xff]
    %v5768 = vld [vmem:[%s11 + $0x18] sm:$0xff]
    %v5769 = vld [vmem:[%s12] sm:$0x1]
    %v5771 = vperm.slane %v5769, 0
    %v5774 = vsel %vm2972, %v5764, 0
    %5776 = vmatpush.msra.mxu0 0.0
    %5777 = vmatpush.msra.mxu0 0.0
    %5778 = vmatpush.msra.mxu0 0.0
    %5779 = vmatpush.msra.mxu0 0.0
    %5780 = vmatpush.msra.mxu0 0.0
    %5781 = vmatpush.msra.mxu0 0.0
    %5782 = vmatpush.msra.mxu0 0.0
    %5783 = vmatpush.msra.mxu0 0.0
    %5784 = vmatpush.msra.mxu0 0.0
    %5785 = vmatpush.msra.mxu0 0.0
    %5786 = vmatpush.msra.mxu0 0.0
    %5787 = vmatpush.msra.mxu0 0.0
    %5788 = vmatpush.msra.mxu0 %v5768
    %5789 = vmatpush.msra.mxu0 %v5767
    %5790 = vmatpush.msra.mxu0 %v5766
    %5791 = vmatpush.msra.mxu0 %v5765
    %5792 = vmatmul.f32.gmra.mxu0 %v5774
    %v5793 = vpop.f32.mrf.mxu0
    %v5794 = vadd.f32 %v5771, %v5793
    %5795 = vdwg.mxu0
    %vm5796 = vcmask 25600
    %5797 = vst.msk [vmem:[#allocation8] sm:$0x3] %vm5796, %v5794
    // Predicated region
    $region54: #{conv_dqn_forward.1} parent=1 // pred_check
      _
    $region55: #{conv_dqn_forward.1} parent=1 // pred_check_branch
      %5799 = sbr.rel (0) target = $region57
    $region56: #{conv_dqn_forward.1} parent=1 // pred_region
      %5801 = vsyncadd [#allocation9], 0
      %s5803 = sshll.u32 [#allocation8], 4
      %s5804 = int_to_ptr.vmem [resolvable:$true] %s5803
      %s5805 = sshll.u32 %s13, 4
      %s5806 = int_to_ptr.hbm [resolvable:$true] %s5805
      %5808 = dma.vmem_to_hbm [thread:$0]  %s5804, 32, %s5806, [#allocation9]
    $region57: #{conv_dqn_forward.1} parent=1 // pred_fallthru
      _
    // Predicated region
    $region58: #{conv_dqn_forward.1} parent=1 // pred_check
      _
    $region59: #{conv_dqn_forward.1} parent=1 // pred_check_branch
      %5810 = sbr.rel (0) target = $region61
    $region60: #{conv_dqn_forward.1} parent=1 // pred_region
      %5812 = dma.done [#allocation9], 32
    $region61: #{conv_dqn_forward.1} parent=1 // pred_fallthru
      _
    %5813 = vsyncpa [#allocation9], 1

</llo_original>
